<compile_context>
chip_gen: v6e
topology: v6e:2x2x1
jax: 0.10.0
libtpu: 0.0.40
codegen_flags: <defaults>
</compile_context>

<pallas_src>
import functools

import jax
import jax.numpy as jnp
from jax import lax
from jax.experimental import pallas as pl
from jax.experimental.pallas import tpu as pltpu


def _quat_conv_kernel(x_ref, w_ref, b_ref, o_ref, acc_ref, *,
                      kh, kw, pad, hout, wout, cq, oq, no, nop):
    """One grid step == `tb` whole images.

    x_ref  : (tb, Hp, Wp, C)     bf16  spatially padded NHWC input block
    w_ref  : (kh*kw, C, NOP)     bf16  block-diag per-position weights (lane-padded)
    b_ref  : (1, NOP)            f32   concatenated biases (lane-padded)
    o_ref  : (tb*Hout*Wout, NOP) f32   lane-dense output block
    acc_ref: (tb*Hout*Wout, NOP) f32   VMEM scratch accumulator
    """
    tb = x_ref.shape[0]
    c = x_ref.shape[3]
    m = tb * hout * wout

    # Bias folded into the accumulator init.  The scratch persists across grid
    # steps, so it must be (re)initialised every step.
    acc_ref[...] = jnp.broadcast_to(b_ref[...], (m, nop))

    # Implicit GEMM.  The kj (width) shift is hoisted out of the ki loop: one
    # sublane-shifted copy of the block per kj, then kh back-to-back
    # accumulating MXU dots against it.  The (tb,Hout,Wout,C)->(m,C) flatten
    # collapses only leading dims (Wout is sublane-pack aligned), so the dot
    # operands need no relayout between consecutive dots.
    xq = None
    for kj in range(kw):
        xs = x_ref[:, :, kj:kj + wout, :]                 # (tb, Hp, Wout, C) bf16
        for ki in range(kh):
            patch = xs[:, ki:ki + hout].reshape(m, c)
            acc_ref[...] += jnp.dot(patch, w_ref[ki * kw + kj],
                                    preferred_element_type=jnp.float32)
        if kj == pad:
            # Raw q1 components at the output locations (centre window),
            # upcast to f32 for the Hamilton product.
            xq = xs[:, pad:pad + hout].reshape(m, c).astype(jnp.float32)

    # Elementwise Hamilton product q1 (x) * q2 (conv(x)+b), all in f32.
    acc = acc_ref[...]
    a1, b1, c1, d1 = [xq[:, g * cq:(g + 1) * cq] for g in range(4)]
    a2, b2, c2, d2 = [acc[:, g * oq:(g + 1) * oq] for g in range(4)]

    real  = a1 * a2 - b1 * b2 - c1 * c2 - d1 * d2
    imag1 = a1 * b2 + b1 * a2 + c1 * d2 - d1 * c2
    imag2 = a1 * c2 - b1 * d2 + c1 * a2 + d1 * b2
    imag3 = a1 * d2 + b1 * c2 - c1 * b2 + d1 * a2

    # Single lane-dense (m, NOP) store; the NOP - 4*Oq pad lanes are zeros and
    # are sliced off in the wrapper.
    parts = [real, imag1, imag2, imag3]
    if nop > no:
        parts.append(jnp.zeros((m, nop - no), jnp.float32))
    o_ref[...] = jnp.concatenate(parts, axis=-1).astype(o_ref.dtype)


def quaternion_conv2d(x, weights, biases, *, kernel_size, stride=1, padding=0,
                      tile_rows=2048):
    """x: (N, C, H, W) f32.  weights: list of 4 arrays (Oq, Cq, KH, KW) f32.
    biases: list of 4 arrays (Oq,) f32.  Returns (N, 4*Oq, Hout, Wout) f32."""
    n, c, h, w = x.shape
    cq = c // 4
    oq = weights[0].shape[0]
    kh = kw = kernel_size
    hout = (h + 2 * padding - kh) // stride + 1
    wout = (w + 2 * padding - kw) // stride + 1
    assert oq == cq and hout == h and wout == w and stride == 1, \
        "quaternion elementwise product requires out==in channels, 'same' conv"
    # TODO(synk): other stride / non-'same' configs are unreachable given the
    # module's elementwise-product shape constraint, so they are not implemented.
    assert 0 <= padding < kw

    no = 4 * oq
    nop = max(128, ((no + 127) // 128) * 128)   # lane-dense output width

    # ---- glue: layout only (no im2col) -------------------------------------
    # NCHW -> NHWC keeps the component grouping [comp0|comp1|comp2|comp3] on
    # the channel (lane) axis; pad spatially for the 'same' conv; bf16 halves
    # HBM/VMEM traffic and feeds the MXU directly.
    x_nhwc = jnp.transpose(x, (0, 2, 3, 1))
    x_blk = jnp.pad(x_nhwc, ((0, 0), (padding, padding),
                             (padding, padding), (0, 0))).astype(jnp.bfloat16)
    hp, wp = h + 2 * padding, w + 2 * padding

    # Block-diagonal per-position weights: each quaternion component's conv
    # only sees its own channel group, so the four (Cq, Oq) weight slices sit
    # on the diagonal of a (C, NOP) matrix per kernel position; columns
    # [4*Oq:NOP] are zero (output lane padding).  bf16 for the MXU.
    w_bd = jnp.zeros((kh * kw, c, nop), jnp.float32)
    for g in range(4):
        wg = jnp.transpose(weights[g], (2, 3, 1, 0)).reshape(kh * kw, cq, oq)
        w_bd = w_bd.at[:, g * cq:(g + 1) * cq, g * oq:(g + 1) * oq].set(wg)
    w_bd = w_bd.astype(jnp.bfloat16)
    b_all = jnp.zeros((1, nop), jnp.float32)
    b_all = b_all.at[0, :no].set(jnp.concatenate(biases))

    # ---- tiling: images per grid step (generation-aware VMEM budget) -------
    rows_per_img = hout * wout
    try:
        vmem_cap = int(pltpu.get_tpu_info().vmem_capacity_bytes)
    except Exception:
        vmem_cap = 64 * 1024 * 1024           # conservative (v7x per-TC) fallback
    vmem_budget = vmem_cap // 2               # leave half for compiler temporaries

    in_img = hp * wp * c * 2                  # bf16 input block
    shift_img = hp * wout * c * 2             # one live kj-shifted copy
    out_img = rows_per_img * nop * 4          # f32 output block
    per_img = 2 * in_img + shift_img + 2 * out_img + out_img   # dbl-buf io + scratch
    fixed = 2 * (kh * kw * c * nop * 2) + nop * 4               # weights + bias
    tb_vmem = max(1, (vmem_budget - fixed) // max(per_img, 1))

    tb = max(1, min(n, max(1, tile_rows // rows_per_img), tb_vmem))
    if n >= 2:
        # Keep >= 2 "parallel" grid steps so dual-TensorCore chips (v7x) get
        # work on both cores; costs at most one ~0.35us step on v5e/v6e.
        tb = min(tb, -(-n // 2))
    steps = -(-n // tb)                       # cdiv; ragged batches are padded
    n_pad = steps * tb
    if n_pad != n:
        x_blk = jnp.pad(x_blk, ((0, n_pad - n), (0, 0), (0, 0), (0, 0)))

    m_step = tb * rows_per_img
    assert m_step % 8 == 0, "output rows per grid step must be sublane aligned"

    kernel = functools.partial(_quat_conv_kernel, kh=kh, kw=kw, pad=padding,
                               hout=hout, wout=wout, cq=cq, oq=oq,
                               no=no, nop=nop)

    flops = (2 * n_pad * rows_per_img * c * nop * kh * kw
             + 28 * n_pad * rows_per_img * oq)
    bytes_accessed = (x_blk.size * 2 + w_bd.size * 2 + b_all.size * 4
                      + n_pad * rows_per_img * nop * 4)

    out = pl.pallas_call(
        kernel,
        out_shape=jax.ShapeDtypeStruct((n_pad * rows_per_img, nop), jnp.float32),
        grid_spec=pltpu.PrefetchScalarGridSpec(
            num_scalar_prefetch=0,
            grid=(steps,),
            in_specs=[
                pl.BlockSpec((tb, hp, wp, c), lambda i: (i, 0, 0, 0)),
                pl.BlockSpec((kh * kw, c, nop), lambda i: (0, 0, 0)),
                pl.BlockSpec((1, nop), lambda i: (0, 0)),
            ],
            out_specs=pl.BlockSpec((m_step, nop), lambda i: (i, 0)),
            scratch_shapes=[pltpu.VMEM((m_step, nop), jnp.float32)],
        ),
        compiler_params=pltpu.CompilerParams(
            dimension_semantics=("parallel",),
            vmem_limit_bytes=int(vmem_budget)),
        cost_estimate=pl.CostEstimate(flops=int(flops), transcendentals=0,
                                      bytes_accessed=int(bytes_accessed)),
    )(x_blk, w_bd, b_all)

    # (n_pad*Hout*Wout, NOP) -> NCHW, dropping batch and lane padding.
    out = out.reshape(n_pad, hout, wout, nop)[:n, :, :, :no]
    return jnp.transpose(out, (0, 3, 1, 2))


# ---------------- references (plain JAX) for validation ---------------------
def _ref_forward(x, weights, biases, stride, padding, mxu_dtype=None):
    if mxu_dtype is not None:
        x_conv = x.astype(mxu_dtype)
        x_q1 = x_conv.astype(jnp.float32)
        w_conv = [wi.astype(mxu_dtype) for wi in weights]
    else:
        x_conv, x_q1, w_conv = x, x, list(weights)
    q1 = jnp.split(x_q1, 4, axis=1)
    convs = []
    for xi, wi, bi in zip(jnp.split(x_conv, 4, axis=1), w_conv, biases):
        yi = lax.conv_general_dilated(
            xi, wi, (stride, stride), [(padding, padding)] * 2,
            dimension_numbers=("NCHW", "OIHW", "NCHW"),
            preferred_element_type=jnp.float32)
        convs.append(yi + bi[None, :, None, None])
    a1, b1, c1, d1 = q1
    a2, b2, c2, d2 = convs
    real  = a1 * a2 - b1 * b2 - c1 * c2 - d1 * d2
    imag1 = a1 * b2 + b1 * a2 + c1 * d2 - d1 * c2
    imag2 = a1 * c2 - b1 * d2 + c1 * a2 + d1 * b2
    imag3 = a1 * d2 + b1 * c2 - c1 * b2 + d1 * a2
    return jnp.concatenate([real, imag1, imag2, imag3], axis=1)


if __name__ == "__main__":
    # Small shapes consistent with the module: in=out=8 channels (2 per
    # quaternion component), 3x3 conv, stride 1, padding 1 ("same").
    N, C, H, W = 2, 8, 16, 16
    OUT_C, K, STRIDE, PAD = 8, 3, 1, 1
    cq, oq = C // 4, OUT_C // 4

    key = jax.random.PRNGKey(0)
    keys = jax.random.split(key, 9)
    x = jax.random.normal(keys[0], (N, C, H, W), dtype=jnp.float32)

    fan_in = cq * K * K
    bound = 1.0 / (fan_in ** 0.5)
    weights = [jax.random.uniform(keys[1 + i], (oq, cq, K, K),
                                  minval=-bound, maxval=bound,
                                  dtype=jnp.float32) for i in range(4)]
    biases = [jax.random.uniform(keys[5 + i], (oq,),
                                 minval=-bound, maxval=bound,
                                 dtype=jnp.float32) for i in range(4)]

    out = quaternion_conv2d(x, weights, biases,
                            kernel_size=K, stride=STRIDE, padding=PAD)
    out = jax.block_until_ready(out)
    assert out.shape == (N, OUT_C, H, W), out.shape

    # Tight check against a bf16-input / f32-accumulate reference (exactly the
    # precision the kernel uses on the MXU and for q1); loose check against the
    # pure-f32 reference (gap is dominated by bf16 rounding of x and w).
    ref_bf16 = _ref_forward(x, weights, biases, STRIDE, PAD,
                            mxu_dtype=jnp.bfloat16)
    ref_f32 = _ref_forward(x, weights, biases, STRIDE, PAD)
    assert jnp.allclose(out, ref_bf16, atol=2e-3, rtol=2e-3), \
        float(jnp.max(jnp.abs(out - ref_bf16)))
    assert jnp.allclose(out, ref_f32, atol=2.5e-1, rtol=5e-2), \
        float(jnp.max(jnp.abs(out - ref_f32)))
    print("KERNEL_OK")
</pallas_src>

<mosaic_0001>
module attributes {stable_mosaic.version = 11 : i64} {
  func.func @_quat_conv_kernel(%arg0: i32, %arg1: memref<1x18x18x8xbf16, #tpu.memory_space<vmem>>, %arg2: memref<9x8x128xbf16, #tpu.memory_space<vmem>>, %arg3: memref<1x128xf32, #tpu.memory_space<vmem>>, %arg4: memref<256x128xf32, #tpu.memory_space<vmem>>, %arg5: memref<256x128xf32, #tpu.memory_space<vmem>>) attributes {dimension_semantics = [#tpu.dimension_semantics<parallel>], iteration_bounds = array<i64: 2>, scalar_prefetch = 0 : i64, scratch_operands = 1 : i64, tpu.core_type = #tpu.core_type<tc>, window_params = [{transform_indices = @transform_0, window_bounds = array<i64: 1, 18, 18, 8>}, {pipeline_mode = #tpu.pipeline_mode<synchronous>, transform_indices = @transform_1, window_bounds = array<i64: 9, 8, 128>}, {pipeline_mode = #tpu.pipeline_mode<synchronous>, transform_indices = @transform_2, window_bounds = array<i64: 1, 128>}, {transform_indices = @transform_3, window_bounds = array<i64: 256, 128>}]} {
    %c0 = arith.constant 0 : index
    %c0_0 = arith.constant 0 : index
    %0 = vector.load %arg3[%c0, %c0_0] : memref<1x128xf32, #tpu.memory_space<vmem>>, vector<1x128xf32>
    %1 = vector.shape_cast %0 : vector<1x128xf32> to vector<1x128xf32>
    %2 = vector.broadcast %1 : vector<1x128xf32> to vector<256x128xf32>
    %c0_1 = arith.constant 0 : index
    %c0_2 = arith.constant 0 : index
    %3 = vector.load %arg5[%c0_1, %c0_2] : memref<256x128xf32, #tpu.memory_space<vmem>>, vector<256x128xf32>
    tpu.vector_store %arg5[%c0_1, %c0_2], %2 {strides = array<i32>} : memref<256x128xf32, #tpu.memory_space<vmem>>, vector<256x128xf32>,
    %c0_3 = arith.constant 0 : index
    %c0_4 = arith.constant 0 : index
    %c0_5 = arith.constant 0 : index
    %c0_6 = arith.constant 0 : index
    %4 = vector.load %arg1[%c0_3, %c0_4, %c0_5, %c0_6] : memref<1x18x18x8xbf16, #tpu.memory_space<vmem>>, vector<1x18x16x8xbf16>
    %5 = vector.extract_strided_slice %4 {offsets = [0, 0, 0, 0], sizes = [1, 16, 16, 8], strides = [1, 1, 1, 1]} : vector<1x18x16x8xbf16> to vector<1x16x16x8xbf16>
    %6 = vector.shape_cast %5 : vector<1x16x16x8xbf16> to vector<256x8xbf16>
    %c0_7 = arith.constant 0 : index
    %c0_8 = arith.constant 0 : index
    %7 = vector.load %arg5[%c0_7, %c0_8] : memref<256x128xf32, #tpu.memory_space<vmem>>, vector<256x128xf32>
    %c0_9 = arith.constant 0 : index
    %c0_10 = arith.constant 0 : index
    %c0_11 = arith.constant 0 : index
    %8 = vector.load %arg2[%c0_9, %c0_10, %c0_11] : memref<9x8x128xbf16, #tpu.memory_space<vmem>>, vector<1x8x128xbf16>
    %9 = vector.shape_cast %8 : vector<1x8x128xbf16> to vector<8x128xbf16>
    %cst = arith.constant dense<0.000000e+00> : vector<256x128xf32>
    %10 = tpu.matmul %6, %9, %cst {dimension_numbers = #tpu.dot_dimension_numbers<[1], [0], [0], [1], [0, 0, 1, 1], [], []>} : vector<256x8xbf16>, vector<8x128xbf16>, vector<256x128xf32> -> vector<256x128xf32>
    %11 = arith.addf %7, %10 : vector<256x128xf32>
    %c0_12 = arith.constant 0 : index
    %c0_13 = arith.constant 0 : index
    %12 = vector.load %arg5[%c0_12, %c0_13] : memref<256x128xf32, #tpu.memory_space<vmem>>, vector<256x128xf32>
    tpu.vector_store %arg5[%c0_12, %c0_13], %11 {strides = array<i32>} : memref<256x128xf32, #tpu.memory_space<vmem>>, vector<256x128xf32>,
    %13 = vector.extract_strided_slice %4 {offsets = [0, 1, 0, 0], sizes = [1, 16, 16, 8], strides = [1, 1, 1, 1]} : vector<1x18x16x8xbf16> to vector<1x16x16x8xbf16>
    %14 = vector.shape_cast %13 : vector<1x16x16x8xbf16> to vector<256x8xbf16>
    %c0_14 = arith.constant 0 : index
    %c0_15 = arith.constant 0 : index
    %15 = vector.load %arg5[%c0_14, %c0_15] : memref<256x128xf32, #tpu.memory_space<vmem>>, vector<256x128xf32>
    %c3 = arith.constant 3 : index
    %c0_16 = arith.constant 0 : index
    %c0_17 = arith.constant 0 : index
    %16 = vector.load %arg2[%c3, %c0_16, %c0_17] : memref<9x8x128xbf16, #tpu.memory_space<vmem>>, vector<1x8x128xbf16>
    %17 = vector.shape_cast %16 : vector<1x8x128xbf16> to vector<8x128xbf16>
    %cst_18 = arith.constant dense<0.000000e+00> : vector<256x128xf32>
    %18 = tpu.matmul %14, %17, %cst_18 {dimension_numbers = #tpu.dot_dimension_numbers<[1], [0], [0], [1], [0, 0, 1, 1], [], []>} : vector<256x8xbf16>, vector<8x128xbf16>, vector<256x128xf32> -> vector<256x128xf32>
    %19 = arith.addf %15, %18 : vector<256x128xf32>
    %c0_19 = arith.constant 0 : index
    %c0_20 = arith.constant 0 : index
    %20 = vector.load %arg5[%c0_19, %c0_20] : memref<256x128xf32, #tpu.memory_space<vmem>>, vector<256x128xf32>
    tpu.vector_store %arg5[%c0_19, %c0_20], %19 {strides = array<i32>} : memref<256x128xf32, #tpu.memory_space<vmem>>, vector<256x128xf32>,
    %21 = vector.extract_strided_slice %4 {offsets = [0, 2, 0, 0], sizes = [1, 16, 16, 8], strides = [1, 1, 1, 1]} : vector<1x18x16x8xbf16> to vector<1x16x16x8xbf16>
    %22 = vector.shape_cast %21 : vector<1x16x16x8xbf16> to vector<256x8xbf16>
    %c0_21 = arith.constant 0 : index
    %c0_22 = arith.constant 0 : index
    %23 = vector.load %arg5[%c0_21, %c0_22] : memref<256x128xf32, #tpu.memory_space<vmem>>, vector<256x128xf32>
    %c6 = arith.constant 6 : index
    %c0_23 = arith.constant 0 : index
    %c0_24 = arith.constant 0 : index
    %24 = vector.load %arg2[%c6, %c0_23, %c0_24] : memref<9x8x128xbf16, #tpu.memory_space<vmem>>, vector<1x8x128xbf16>
    %25 = vector.shape_cast %24 : vector<1x8x128xbf16> to vector<8x128xbf16>
    %cst_25 = arith.constant dense<0.000000e+00> : vector<256x128xf32>
    %26 = tpu.matmul %22, %25, %cst_25 {dimension_numbers = #tpu.dot_dimension_numbers<[1], [0], [0], [1], [0, 0, 1, 1], [], []>} : vector<256x8xbf16>, vector<8x128xbf16>, vector<256x128xf32> -> vector<256x128xf32>
    %27 = arith.addf %23, %26 : vector<256x128xf32>
    %c0_26 = arith.constant 0 : index
    %c0_27 = arith.constant 0 : index
    %28 = vector.load %arg5[%c0_26, %c0_27] : memref<256x128xf32, #tpu.memory_space<vmem>>, vector<256x128xf32>
    tpu.vector_store %arg5[%c0_26, %c0_27], %27 {strides = array<i32>} : memref<256x128xf32, #tpu.memory_space<vmem>>, vector<256x128xf32>,
    %c0_28 = arith.constant 0 : index
    %c0_29 = arith.constant 0 : index
    %c1 = arith.constant 1 : index
    %c0_30 = arith.constant 0 : index
    %29 = vector.load %arg1[%c0_28, %c0_29, %c1, %c0_30] : memref<1x18x18x8xbf16, #tpu.memory_space<vmem>>, vector<1x18x16x8xbf16>
    %30 = vector.extract_strided_slice %29 {offsets = [0, 0, 0, 0], sizes = [1, 16, 16, 8], strides = [1, 1, 1, 1]} : vector<1x18x16x8xbf16> to vector<1x16x16x8xbf16>
    %31 = vector.shape_cast %30 : vector<1x16x16x8xbf16> to vector<256x8xbf16>
    %c0_31 = arith.constant 0 : index
    %c0_32 = arith.constant 0 : index
    %32 = vector.load %arg5[%c0_31, %c0_32] : memref<256x128xf32, #tpu.memory_space<vmem>>, vector<256x128xf32>
    %c1_33 = arith.constant 1 : index
    %c0_34 = arith.constant 0 : index
    %c0_35 = arith.constant 0 : index
    %33 = vector.load %arg2[%c1_33, %c0_34, %c0_35] : memref<9x8x128xbf16, #tpu.memory_space<vmem>>, vector<1x8x128xbf16>
    %34 = vector.shape_cast %33 : vector<1x8x128xbf16> to vector<8x128xbf16>
    %cst_36 = arith.constant dense<0.000000e+00> : vector<256x128xf32>
    %35 = tpu.matmul %31, %34, %cst_36 {dimension_numbers = #tpu.dot_dimension_numbers<[1], [0], [0], [1], [0, 0, 1, 1], [], []>} : vector<256x8xbf16>, vector<8x128xbf16>, vector<256x128xf32> -> vector<256x128xf32>
    %36 = arith.addf %32, %35 : vector<256x128xf32>
    %c0_37 = arith.constant 0 : index
    %c0_38 = arith.constant 0 : index
    %37 = vector.load %arg5[%c0_37, %c0_38] : memref<256x128xf32, #tpu.memory_space<vmem>>, vector<256x128xf32>
    tpu.vector_store %arg5[%c0_37, %c0_38], %36 {strides = array<i32>} : memref<256x128xf32, #tpu.memory_space<vmem>>, vector<256x128xf32>,
    %38 = vector.extract_strided_slice %29 {offsets = [0, 1, 0, 0], sizes = [1, 16, 16, 8], strides = [1, 1, 1, 1]} : vector<1x18x16x8xbf16> to vector<1x16x16x8xbf16>
    %39 = vector.shape_cast %38 : vector<1x16x16x8xbf16> to vector<256x8xbf16>
    %c0_39 = arith.constant 0 : index
    %c0_40 = arith.constant 0 : index
    %40 = vector.load %arg5[%c0_39, %c0_40] : memref<256x128xf32, #tpu.memory_space<vmem>>, vector<256x128xf32>
    %c4 = arith.constant 4 : index
    %c0_41 = arith.constant 0 : index
    %c0_42 = arith.constant 0 : index
    %41 = vector.load %arg2[%c4, %c0_41, %c0_42] : memref<9x8x128xbf16, #tpu.memory_space<vmem>>, vector<1x8x128xbf16>
    %42 = vector.shape_cast %41 : vector<1x8x128xbf16> to vector<8x128xbf16>
    %cst_43 = arith.constant dense<0.000000e+00> : vector<256x128xf32>
    %43 = tpu.matmul %39, %42, %cst_43 {dimension_numbers = #tpu.dot_dimension_numbers<[1], [0], [0], [1], [0, 0, 1, 1], [], []>} : vector<256x8xbf16>, vector<8x128xbf16>, vector<256x128xf32> -> vector<256x128xf32>
    %44 = arith.addf %40, %43 : vector<256x128xf32>
    %c0_44 = arith.constant 0 : index
    %c0_45 = arith.constant 0 : index
    %45 = vector.load %arg5[%c0_44, %c0_45] : memref<256x128xf32, #tpu.memory_space<vmem>>, vector<256x128xf32>
    tpu.vector_store %arg5[%c0_44, %c0_45], %44 {strides = array<i32>} : memref<256x128xf32, #tpu.memory_space<vmem>>, vector<256x128xf32>,
    %46 = vector.extract_strided_slice %29 {offsets = [0, 2, 0, 0], sizes = [1, 16, 16, 8], strides = [1, 1, 1, 1]} : vector<1x18x16x8xbf16> to vector<1x16x16x8xbf16>
    %47 = vector.shape_cast %46 : vector<1x16x16x8xbf16> to vector<256x8xbf16>
    %c0_46 = arith.constant 0 : index
    %c0_47 = arith.constant 0 : index
    %48 = vector.load %arg5[%c0_46, %c0_47] : memref<256x128xf32, #tpu.memory_space<vmem>>, vector<256x128xf32>
    %c7 = arith.constant 7 : index
    %c0_48 = arith.constant 0 : index
    %c0_49 = arith.constant 0 : index
    %49 = vector.load %arg2[%c7, %c0_48, %c0_49] : memref<9x8x128xbf16, #tpu.memory_space<vmem>>, vector<1x8x128xbf16>
    %50 = vector.shape_cast %49 : vector<1x8x128xbf16> to vector<8x128xbf16>
    %cst_50 = arith.constant dense<0.000000e+00> : vector<256x128xf32>
    %51 = tpu.matmul %47, %50, %cst_50 {dimension_numbers = #tpu.dot_dimension_numbers<[1], [0], [0], [1], [0, 0, 1, 1], [], []>} : vector<256x8xbf16>, vector<8x128xbf16>, vector<256x128xf32> -> vector<256x128xf32>
    %52 = arith.addf %48, %51 : vector<256x128xf32>
    %c0_51 = arith.constant 0 : index
    %c0_52 = arith.constant 0 : index
    %53 = vector.load %arg5[%c0_51, %c0_52] : memref<256x128xf32, #tpu.memory_space<vmem>>, vector<256x128xf32>
    tpu.vector_store %arg5[%c0_51, %c0_52], %52 {strides = array<i32>} : memref<256x128xf32, #tpu.memory_space<vmem>>, vector<256x128xf32>,
    %54 = vector.extract_strided_slice %29 {offsets = [0, 1, 0, 0], sizes = [1, 16, 16, 8], strides = [1, 1, 1, 1]} : vector<1x18x16x8xbf16> to vector<1x16x16x8xbf16>
    %55 = vector.shape_cast %54 : vector<1x16x16x8xbf16> to vector<256x8xbf16>
    %56 = arith.extf %55 : vector<256x8xbf16> to vector<256x8xf32>
    %c0_53 = arith.constant 0 : index
    %c0_54 = arith.constant 0 : index
    %c2 = arith.constant 2 : index
    %c0_55 = arith.constant 0 : index
    %57 = vector.load %arg1[%c0_53, %c0_54, %c2, %c0_55] : memref<1x18x18x8xbf16, #tpu.memory_space<vmem>>, vector<1x18x16x8xbf16>
    %58 = vector.extract_strided_slice %57 {offsets = [0, 0, 0, 0], sizes = [1, 16, 16, 8], strides = [1, 1, 1, 1]} : vector<1x18x16x8xbf16> to vector<1x16x16x8xbf16>
    %59 = vector.shape_cast %58 : vector<1x16x16x8xbf16> to vector<256x8xbf16>
    %c0_56 = arith.constant 0 : index
    %c0_57 = arith.constant 0 : index
    %60 = vector.load %arg5[%c0_56, %c0_57] : memref<256x128xf32, #tpu.memory_space<vmem>>, vector<256x128xf32>
    %c2_58 = arith.constant 2 : index
    %c0_59 = arith.constant 0 : index
    %c0_60 = arith.constant 0 : index
    %61 = vector.load %arg2[%c2_58, %c0_59, %c0_60] : memref<9x8x128xbf16, #tpu.memory_space<vmem>>, vector<1x8x128xbf16>
    %62 = vector.shape_cast %61 : vector<1x8x128xbf16> to vector<8x128xbf16>
    %cst_61 = arith.constant dense<0.000000e+00> : vector<256x128xf32>
    %63 = tpu.matmul %59, %62, %cst_61 {dimension_numbers = #tpu.dot_dimension_numbers<[1], [0], [0], [1], [0, 0, 1, 1], [], []>} : vector<256x8xbf16>, vector<8x128xbf16>, vector<256x128xf32> -> vector<256x128xf32>
    %64 = arith.addf %60, %63 : vector<256x128xf32>
    %c0_62 = arith.constant 0 : index
    %c0_63 = arith.constant 0 : index
    %65 = vector.load %arg5[%c0_62, %c0_63] : memref<256x128xf32, #tpu.memory_space<vmem>>, vector<256x128xf32>
    tpu.vector_store %arg5[%c0_62, %c0_63], %64 {strides = array<i32>} : memref<256x128xf32, #tpu.memory_space<vmem>>, vector<256x128xf32>,
    %66 = vector.extract_strided_slice %57 {offsets = [0, 1, 0, 0], sizes = [1, 16, 16, 8], strides = [1, 1, 1, 1]} : vector<1x18x16x8xbf16> to vector<1x16x16x8xbf16>
    %67 = vector.shape_cast %66 : vector<1x16x16x8xbf16> to vector<256x8xbf16>
    %c0_64 = arith.constant 0 : index
    %c0_65 = arith.constant 0 : index
    %68 = vector.load %arg5[%c0_64, %c0_65] : memref<256x128xf32, #tpu.memory_space<vmem>>, vector<256x128xf32>
    %c5 = arith.constant 5 : index
    %c0_66 = arith.constant 0 : index
    %c0_67 = arith.constant 0 : index
    %69 = vector.load %arg2[%c5, %c0_66, %c0_67] : memref<9x8x128xbf16, #tpu.memory_space<vmem>>, vector<1x8x128xbf16>
    %70 = vector.shape_cast %69 : vector<1x8x128xbf16> to vector<8x128xbf16>
    %cst_68 = arith.constant dense<0.000000e+00> : vector<256x128xf32>
    %71 = tpu.matmul %67, %70, %cst_68 {dimension_numbers = #tpu.dot_dimension_numbers<[1], [0], [0], [1], [0, 0, 1, 1], [], []>} : vector<256x8xbf16>, vector<8x128xbf16>, vector<256x128xf32> -> vector<256x128xf32>
    %72 = arith.addf %68, %71 : vector<256x128xf32>
    %c0_69 = arith.constant 0 : index
    %c0_70 = arith.constant 0 : index
    %73 = vector.load %arg5[%c0_69, %c0_70] : memref<256x128xf32, #tpu.memory_space<vmem>>, vector<256x128xf32>
    tpu.vector_store %arg5[%c0_69, %c0_70], %72 {strides = array<i32>} : memref<256x128xf32, #tpu.memory_space<vmem>>, vector<256x128xf32>,
    %74 = vector.extract_strided_slice %57 {offsets = [0, 2, 0, 0], sizes = [1, 16, 16, 8], strides = [1, 1, 1, 1]} : vector<1x18x16x8xbf16> to vector<1x16x16x8xbf16>
    %75 = vector.shape_cast %74 : vector<1x16x16x8xbf16> to vector<256x8xbf16>
    %c0_71 = arith.constant 0 : index
    %c0_72 = arith.constant 0 : index
    %76 = vector.load %arg5[%c0_71, %c0_72] : memref<256x128xf32, #tpu.memory_space<vmem>>, vector<256x128xf32>
    %c8 = arith.constant 8 : index
    %c0_73 = arith.constant 0 : index
    %c0_74 = arith.constant 0 : index
    %77 = vector.load %arg2[%c8, %c0_73, %c0_74] : memref<9x8x128xbf16, #tpu.memory_space<vmem>>, vector<1x8x128xbf16>
    %78 = vector.shape_cast %77 : vector<1x8x128xbf16> to vector<8x128xbf16>
    %cst_75 = arith.constant dense<0.000000e+00> : vector<256x128xf32>
    %79 = tpu.matmul %75, %78, %cst_75 {dimension_numbers = #tpu.dot_dimension_numbers<[1], [0], [0], [1], [0, 0, 1, 1], [], []>} : vector<256x8xbf16>, vector<8x128xbf16>, vector<256x128xf32> -> vector<256x128xf32>
    %80 = arith.addf %76, %79 : vector<256x128xf32>
    %c0_76 = arith.constant 0 : index
    %c0_77 = arith.constant 0 : index
    %81 = vector.load %arg5[%c0_76, %c0_77] : memref<256x128xf32, #tpu.memory_space<vmem>>, vector<256x128xf32>
    tpu.vector_store %arg5[%c0_76, %c0_77], %80 {strides = array<i32>} : memref<256x128xf32, #tpu.memory_space<vmem>>, vector<256x128xf32>,
    %c0_78 = arith.constant 0 : index
    %c0_79 = arith.constant 0 : index
    %82 = vector.load %arg5[%c0_78, %c0_79] : memref<256x128xf32, #tpu.memory_space<vmem>>, vector<256x128xf32>
    %83 = vector.extract_strided_slice %56 {offsets = [0, 0], sizes = [256, 2], strides = [1, 1]} : vector<256x8xf32> to vector<256x2xf32>
    %84 = vector.extract_strided_slice %56 {offsets = [0, 2], sizes = [256, 2], strides = [1, 1]} : vector<256x8xf32> to vector<256x2xf32>
    %85 = vector.extract_strided_slice %56 {offsets = [0, 4], sizes = [256, 2], strides = [1, 1]} : vector<256x8xf32> to vector<256x2xf32>
    %86 = vector.extract_strided_slice %56 {offsets = [0, 6], sizes = [256, 2], strides = [1, 1]} : vector<256x8xf32> to vector<256x2xf32>
    %87 = vector.extract_strided_slice %82 {offsets = [0, 0], sizes = [256, 2], strides = [1, 1]} : vector<256x128xf32> to vector<256x2xf32>
    %88 = vector.extract_strided_slice %82 {offsets = [0, 2], sizes = [256, 2], strides = [1, 1]} : vector<256x128xf32> to vector<256x2xf32>
    %89 = vector.extract_strided_slice %82 {offsets = [0, 4], sizes = [256, 2], strides = [1, 1]} : vector<256x128xf32> to vector<256x2xf32>
    %90 = vector.extract_strided_slice %82 {offsets = [0, 6], sizes = [256, 2], strides = [1, 1]} : vector<256x128xf32> to vector<256x2xf32>
    %91 = arith.mulf %83, %87 : vector<256x2xf32>
    %92 = arith.mulf %84, %88 : vector<256x2xf32>
    %93 = arith.subf %91, %92 : vector<256x2xf32>
    %94 = arith.mulf %85, %89 : vector<256x2xf32>
    %95 = arith.subf %93, %94 : vector<256x2xf32>
    %96 = arith.mulf %86, %90 : vector<256x2xf32>
    %97 = arith.subf %95, %96 : vector<256x2xf32>
    %98 = arith.mulf %83, %88 : vector<256x2xf32>
    %99 = arith.mulf %84, %87 : vector<256x2xf32>
    %100 = arith.addf %98, %99 : vector<256x2xf32>
    %101 = arith.mulf %85, %90 : vector<256x2xf32>
    %102 = arith.addf %100, %101 : vector<256x2xf32>
    %103 = arith.mulf %86, %89 : vector<256x2xf32>
    %104 = arith.subf %102, %103 : vector<256x2xf32>
    %105 = arith.mulf %83, %89 : vector<256x2xf32>
    %106 = arith.mulf %84, %90 : vector<256x2xf32>
    %107 = arith.subf %105, %106 : vector<256x2xf32>
    %108 = arith.mulf %85, %87 : vector<256x2xf32>
    %109 = arith.addf %107, %108 : vector<256x2xf32>
    %110 = arith.mulf %86, %88 : vector<256x2xf32>
    %111 = arith.addf %109, %110 : vector<256x2xf32>
    %112 = arith.mulf %83, %90 : vector<256x2xf32>
    %113 = arith.mulf %84, %89 : vector<256x2xf32>
    %114 = arith.addf %112, %113 : vector<256x2xf32>
    %115 = arith.mulf %85, %88 : vector<256x2xf32>
    %116 = arith.subf %114, %115 : vector<256x2xf32>
    %117 = arith.mulf %86, %87 : vector<256x2xf32>
    %118 = arith.addf %116, %117 : vector<256x2xf32>
    %cst_80 = arith.constant 0.000000e+00 : f32
    %119 = vector.broadcast %cst_80 : f32 to vector<256x120xf32>
    %120 = tpu.concatenate %97, %104, %111, %118, %119 in 1 : vector<256x2xf32>, vector<256x2xf32>, vector<256x2xf32>, vector<256x2xf32>, vector<256x120xf32> -> vector<256x128xf32>
    %c0_81 = arith.constant 0 : index
    %c0_82 = arith.constant 0 : index
    %121 = vector.load %arg4[%c0_81, %c0_82] : memref<256x128xf32, #tpu.memory_space<vmem>>, vector<256x128xf32>
    tpu.vector_store %arg4[%c0_81, %c0_82], %120 {strides = array<i32>} : memref<256x128xf32, #tpu.memory_space<vmem>>, vector<256x128xf32>,
    return
  }
  func.func @transform_0(%arg0: i32) -> (i32, i32, i32, i32) {
    %c0_i32 = arith.constant 0 : i32
    %c0_i32_0 = arith.constant 0 : i32
    %c0_i32_1 = arith.constant 0 : i32
    %c0_i32_2 = arith.constant 0 : i32
    return %arg0, %c0_i32, %c0_i32_0, %c0_i32_1 : i32, i32, i32, i32
  }
  func.func @transform_1(%arg0: i32) -> (i32, i32, i32) {
    %c0_i32 = arith.constant 0 : i32
    %c0_i32_0 = arith.constant 0 : i32
    %c0_i32_1 = arith.constant 0 : i32
    %c0_i32_2 = arith.constant 0 : i32
    return %c0_i32, %c0_i32_0, %c0_i32_1 : i32, i32, i32
  }
  func.func @transform_2(%arg0: i32) -> (i32, i32) {
    %c0_i32 = arith.constant 0 : i32
    %c0_i32_0 = arith.constant 0 : i32
    %c0_i32_1 = arith.constant 0 : i32
    return %c0_i32, %c0_i32_0 : i32, i32
  }
  func.func @transform_3(%arg0: i32) -> (i32, i32) {
    %c0_i32 = arith.constant 0 : i32
    %c0_i32_0 = arith.constant 0 : i32
    return %arg0, %c0_i32 : i32, i32
  }
}

</mosaic_0001>

<llo_original>
// kernel: tpu_custom_call.1
$region0: #{tpu_custom_call.1}
  #allocation0 [shape = 'u32[]', space=smem, size = 0x4, offset = 0x4, fixed_abs, tag = 'smem constant byte address 0x4 - core index']
  #allocation1 [shape = 'u32[144,128]{1,0:T(1,128)}', space=vmem, size = 0x12000, scoped, tag = 'internal scratch']
  #allocation2 [shape = 'f32[256,128]{1,0:T(8,128)}', space=vmem, size = 0x20000, scoped, tag = 'scratch operand']
  %s0 = inlined_call_operand.vmem [shape: bf16[2,18,18,8], index: 0, kind: input, shape index: {}]
  %s1 = inlined_call_operand.vmem [shape: bf16[9,8,128], index: 1, kind: input, shape index: {}]
  %s2 = inlined_call_operand.vmem [shape: f32[1,128], index: 2, kind: input, shape index: {}]
  %s3 = inlined_call_operand.hbm [shape: f32[512,128], index: 3, kind: output, shape index: {}]
  %s4 = sld [smem:[#allocation0]]
  $region45: #{tpu_custom_call.1} parent=0
    _
  %s6 = ssub.s32 1, %s4
  %s7 = scalar_select 0, %s6, %s4
  $region1: #{tpu_custom_call.1} parent=0
    #allocation3 [shape = 'u8[262144]{0}', space=vmem, size = 0x40000, scoped, tag = 'output window, operand 0']
    #allocation4 [shape = 's32[2]{0}', space=sflag, size = 0x8, scoped, tag = 'scoped memory for tpu_custom_call.1']
    %8 = vsyncpa [#allocation4], 0
    %s9 = scalar_lea.sflag [#allocation4], 1
    %10 = vsyncpa %s9, 0
    loop: start=0, step=1, limit=4
    $region2: #{tpu_custom_call.1} parent=1 // loop_pre_header
      _
    $region3: #{tpu_custom_call.1} parent=1 // loop_header
      %s12 = sphi 0, %s16
      %p13 = scmp.ge.s32.totalorder %s12, 4
      %s22 = sphi 0, %s24
      %s25 = sphi 0, %s22
      %s26 = sphi 0, %s25
      %s42 = sphi 0, %s26
      %s46 = sphi 0, %s46
      %s48 = sphi 0, %s46
      %s49 = sphi 0, %s48
      %s63 = sphi 0, %s49
      %s67 = sphi 0, %s67
      %s69 = sphi 0, %s67
      %s70 = sphi 0, %s69
      %s84 = sphi 0, %s70
      %s90 = sphi 0, %s92
      %s93 = sphi 0, %s90
      %s94 = sphi 0, %s93
      %s110 = sphi 0, %s94
    $region4: #{tpu_custom_call.1} parent=1 // loop_header_branch
      %15 = sbr.rel (%p13) target = $region8
    $region5: #{tpu_custom_call.1} parent=1 // loop_body
      %s17 = ssub.s32 %s12, 1
      %s18 = ssub.s32 %s12, 2
      %s19 = sadd.s32 %s12, 1
      %s20 = ssub.s32 %s12, %s19
      %p21 = scmp.eq.s32.totalorder %s20, 0
      %s23 = sadd.s32 %s22, 1
      %s24 = scalar_select %p21, %s22, %s23
      %p27 = pneg %p21
      %p28 = scmp.eq.s32.totalorder %s12, 1
      %p29 = por %p27, %p28
      %p30 = scmp.ne.s32.totalorder %s22, %s25
      %p31 = scmp.eq.s32.totalorder %s12, 0
      %p32 = por %p30, %p31
      %p33 = scmp.ne.s32.totalorder %s22, %s25
      %p34 = scmp.eq.s32.totalorder %s17, 1
      %p35 = por %p33, %p34
      %p36 = scmp.ne.s32.totalorder %s25, %s26
      %p37 = scmp.eq.s32.totalorder %s17, 0
      %p38 = por %p36, %p37
      %p39 = scmp.ne.s32.totalorder %s25, %s26
      %p40 = scmp.eq.s32.totalorder %s18, 1
      %p41 = por %p39, %p40
      %p43 = scmp.ne.s32.totalorder %s26, %s42
      %p44 = scmp.eq.s32.totalorder %s18, 0
      %p45 = por %p43, %p44
      %s47 = sadd.s32 %s46, 1
      %p50 = scmp.eq.s32.totalorder %s12, 1
      %p51 = scmp.ne.s32.totalorder %s46, %s48
      %p52 = scmp.eq.s32.totalorder %s12, 0
      %p53 = por %p51, %p52
      %p54 = scmp.ne.s32.totalorder %s46, %s48
      %p55 = scmp.eq.s32.totalorder %s17, 1
      %p56 = por %p54, %p55
      %p57 = scmp.ne.s32.totalorder %s48, %s49
      %p58 = scmp.eq.s32.totalorder %s17, 0
      %p59 = por %p57, %p58
      %p60 = scmp.ne.s32.totalorder %s48, %s49
      %p61 = scmp.eq.s32.totalorder %s18, 1
      %p62 = por %p60, %p61
      %p64 = scmp.ne.s32.totalorder %s49, %s63
      %p65 = scmp.eq.s32.totalorder %s18, 0
      %p66 = por %p64, %p65
      %s68 = sadd.s32 %s67, 1
      %p71 = scmp.eq.s32.totalorder %s12, 1
      %p72 = scmp.ne.s32.totalorder %s67, %s69
      %p73 = scmp.eq.s32.totalorder %s12, 0
      %p74 = por %p72, %p73
      %p75 = scmp.ne.s32.totalorder %s67, %s69
      %p76 = scmp.eq.s32.totalorder %s17, 1
      %p77 = por %p75, %p76
      %p78 = scmp.ne.s32.totalorder %s69, %s70
      %p79 = scmp.eq.s32.totalorder %s17, 0
      %p80 = por %p78, %p79
      %p81 = scmp.ne.s32.totalorder %s69, %s70
      %p82 = scmp.eq.s32.totalorder %s18, 1
      %p83 = por %p81, %p82
      %p85 = scmp.ne.s32.totalorder %s70, %s84
      %p86 = scmp.eq.s32.totalorder %s18, 0
      %p87 = por %p85, %p86
      %s88 = ssub.s32 %s12, %s19
      %p89 = scmp.eq.s32.totalorder %s88, 0
      %s91 = sadd.s32 %s90, 1
      %s92 = scalar_select %p89, %s90, %s91
      %p95 = pneg %p89
      %p96 = scmp.eq.s32.totalorder %s12, 1
      %p97 = por %p95, %p96
      %p98 = scmp.ne.s32.totalorder %s90, %s93
      %p99 = scmp.eq.s32.totalorder %s12, 0
      %p100 = por %p98, %p99
      %p101 = scmp.ne.s32.totalorder %s90, %s93
      %p102 = scmp.eq.s32.totalorder %s17, 1
      %p103 = por %p101, %p102
      %p104 = scmp.ne.s32.totalorder %s93, %s94
      %p105 = scmp.eq.s32.totalorder %s17, 0
      %p106 = por %p104, %p105
      %p107 = scmp.ne.s32.totalorder %s93, %s94
      %p108 = scmp.eq.s32.totalorder %s18, 1
      %p109 = por %p107, %p108
      %p111 = scmp.ne.s32.totalorder %s94, %s110
      %p112 = scmp.eq.s32.totalorder %s18, 0
      %p113 = por %p111, %p112
      %p114 = scmp.le.s32.totalorder 1, %s12
      %p115 = scmp.lt.s32.totalorder %s12, 3
      %p116 = pnand %p114, %p115
      %p117 = pneg %p116
      // Predicated region
      $region9: #{tpu_custom_call.1} parent=5 // pred_check
        _
      $region10: #{tpu_custom_call.1} parent=5 // pred_check_branch
        %119 = sbr.rel (%p116) target = $region12
      $region11: #{tpu_custom_call.1} parent=5 // pred_region
        %s120 = ssub.s32 %s12, 1
        // Predicated region
        $region13: #{tpu_custom_call.1} parent=11 // pred_check
          %p121 = pneg %p59
        $region14: #{tpu_custom_call.1} parent=11 // pred_check_branch
          %123 = sbr.rel (%p121) target = $region16
        $region15: #{tpu_custom_call.1} parent=11 // pred_region
          _
        $region16: #{tpu_custom_call.1} parent=11 // pred_fallthru
          _
        // Predicated region
        $region17: #{tpu_custom_call.1} parent=11 // pred_check
          %p124 = pneg %p80
        $region18: #{tpu_custom_call.1} parent=11 // pred_check_branch
          %126 = sbr.rel (%p124) target = $region20
        $region19: #{tpu_custom_call.1} parent=11 // pred_region
          _
        $region20: #{tpu_custom_call.1} parent=11 // pred_fallthru
          _
      $region12: #{tpu_custom_call.1} parent=5 // pred_fallthru
        _
      %p127 = scmp.lt.s32.totalorder %s12, 2
      // Predicated region
      $region21: #{tpu_custom_call.1} parent=5 // pred_check
        %p128 = pneg %p127
      $region22: #{tpu_custom_call.1} parent=5 // pred_check_branch
        %130 = sbr.rel (%p128) target = $region24
      $region23: #{tpu_custom_call.1} parent=5 // pred_region
        // Predicated region
        $region25: #{tpu_custom_call.1} parent=23 // pred_check
          %p131 = pneg %p32
        $region26: #{tpu_custom_call.1} parent=23 // pred_check_branch
          %133 = sbr.rel (%p131) target = $region28
        $region27: #{tpu_custom_call.1} parent=23 // pred_region
          %p134 = scmp.lt.s32.totalorder %s12, 1
          %s135 = scalar_select %p134, %s12, 1
          %s136 = smul.addr %s135, 54
          %s137 = smul.addr %s136, 4
          %s138 = scalar_lea.vmem %s0, %s137
        $region28: #{tpu_custom_call.1} parent=23 // pred_fallthru
          _
      $region24: #{tpu_custom_call.1} parent=5 // pred_fallthru
        _
      %p139 = scmp.le.s32.totalorder 1, %s12
      %p140 = scmp.lt.s32.totalorder %s12, 3
      %p141 = pnand %p139, %p140
      %p142 = pneg %p141
      // Predicated region
      $region29: #{tpu_custom_call.1} parent=5 // pred_check
        _
      $region30: #{tpu_custom_call.1} parent=5 // pred_check_branch
        %144 = sbr.rel (%p141) target = $region32
      $region31: #{tpu_custom_call.1} parent=5 // pred_region
        %s145 = ssub.s32 %s12, 1
        %p146 = scmp.lt.s32.totalorder %s17, 1
        %s147 = scalar_select %p146, %s17, 1
        %s148 = smul.addr %s147, 54
        %s149 = smul.addr %s148, 4
        %s150 = scalar_lea.vmem %s0, %s149
        %p151 = pneg %p38
        %p152 = pneg %p35
        %p153 = pneg %p59
        %p154 = pneg %p56
        %p155 = pneg %p80
        %p156 = pneg %p77
        %p157 = pneg %p106
        %p158 = pneg %p103
        %s159 = sand.u32 %s93, 1
        %s160 = scalar_lea.sflag [#allocation4], %s159
        %s161 = sand.u32 %s93, 1
        %s162 = smul.addr %s161, 256
        %s163 = scalar_lea.vmem [#allocation3], %s162
        %p164 = scmp.lt.s32.totalorder %s17, 1
        %s165 = scalar_select %p164, %s17, 1
        %s166 = smul.addr %s165, 54
        %s167 = smul.addr %s166, 4
        %s168 = scalar_lea.vmem %s0, %s167
        %s169 = smul.u32 32, %s17
        %v171 = vld [vmem:[%s2] sm:$0x1]
        %v173 = vlaneseq
        %v174 = vshrl.u32 %v173, 7
        %v175 = vsub.s32 0, %v174
        %v176 = vrot.slane %v171, %v175
        %178 = vst [vmem:[#allocation2] sm:$0xff] %v176
        %179 = vst [vmem:[#allocation2 + $0x8] sm:$0xff] %v176
        %180 = vst [vmem:[#allocation2 + $0x10] sm:$0xff] %v176
        %181 = vst [vmem:[#allocation2 + $0x18] sm:$0xff] %v176
        %182 = vst [vmem:[#allocation2 + $0x20] sm:$0xff] %v176
        %183 = vst [vmem:[#allocation2 + $0x28] sm:$0xff] %v176
        %184 = vst [vmem:[#allocation2 + $0x30] sm:$0xff] %v176
        %185 = vst [vmem:[#allocation2 + $0x38] sm:$0xff] %v176
        %186 = vst [vmem:[#allocation2 + $0x40] sm:$0xff] %v176
        %187 = vst [vmem:[#allocation2 + $0x48] sm:$0xff] %v176
        %188 = vst [vmem:[#allocation2 + $0x50] sm:$0xff] %v176
        %189 = vst [vmem:[#allocation2 + $0x58] sm:$0xff] %v176
        %190 = vst [vmem:[#allocation2 + $0x60] sm:$0xff] %v176
        %191 = vst [vmem:[#allocation2 + $0x68] sm:$0xff] %v176
        %192 = vst [vmem:[#allocation2 + $0x70] sm:$0xff] %v176
        %193 = vst [vmem:[#allocation2 + $0x78] sm:$0xff] %v176
        %194 = vst [vmem:[#allocation2 + $0x80] sm:$0xff] %v176
        %195 = vst [vmem:[#allocation2 + $0x88] sm:$0xff] %v176
        %196 = vst [vmem:[#allocation2 + $0x90] sm:$0xff] %v176
        %197 = vst [vmem:[#allocation2 + $0x98] sm:$0xff] %v176
        %198 = vst [vmem:[#allocation2 + $0xa0] sm:$0xff] %v176
        %199 = vst [vmem:[#allocation2 + $0xa8] sm:$0xff] %v176
        %200 = vst [vmem:[#allocation2 + $0xb0] sm:$0xff] %v176
        %201 = vst [vmem:[#allocation2 + $0xb8] sm:$0xff] %v176
        %202 = vst [vmem:[#allocation2 + $0xc0] sm:$0xff] %v176
        %203 = vst [vmem:[#allocation2 + $0xc8] sm:$0xff] %v176
        %204 = vst [vmem:[#allocation2 + $0xd0] sm:$0xff] %v176
        %205 = vst [vmem:[#allocation2 + $0xd8] sm:$0xff] %v176
        %206 = vst [vmem:[#allocation2 + $0xe0] sm:$0xff] %v176
        %207 = vst [vmem:[#allocation2 + $0xe8] sm:$0xff] %v176
        %208 = vst [vmem:[#allocation2 + $0xf0] sm:$0xff] %v176
        %209 = vst [vmem:[#allocation2 + $0xf8] sm:$0xff] %v176
        %v210 = vld [vmem:[%s168] sm:$0xf]
        %v211 = vld [vmem:[%s168 + $0x4] sm:$0xf]
        %v212 = vld [vmem:[%s168 + $0xc] sm:$0xf]
        %v213 = vld [vmem:[%s168 + $0x10] sm:$0xf]
        %v214 = vld [vmem:[%s168 + $0x18] sm:$0xf]
        %v215 = vld [vmem:[%s168 + $0x1c] sm:$0xf]
        %v216 = vld [vmem:[%s168 + $0x24] sm:$0xf]
        %v217 = vld [vmem:[%s168 + $0x28] sm:$0xf]
        %v218 = vld [vmem:[%s168 + $0x30] sm:$0xf]
        %v219 = vld [vmem:[%s168 + $0x34] sm:$0xf]
        %v220 = vld [vmem:[%s168 + $0x3c] sm:$0xf]
        %v221 = vld [vmem:[%s168 + $0x40] sm:$0xf]
        %v222 = vld [vmem:[%s168 + $0x48] sm:$0xf]
        %v223 = vld [vmem:[%s168 + $0x4c] sm:$0xf]
        %v224 = vld [vmem:[%s168 + $0x54] sm:$0xf]
        %v225 = vld [vmem:[%s168 + $0x58] sm:$0xf]
        %v226 = vld [vmem:[%s168 + $0x60] sm:$0xf]
        %v227 = vld [vmem:[%s168 + $0x64] sm:$0xf]
        %v228 = vld [vmem:[%s168 + $0x6c] sm:$0xf]
        %v229 = vld [vmem:[%s168 + $0x70] sm:$0xf]
        %v230 = vld [vmem:[%s168 + $0x78] sm:$0xf]
        %v231 = vld [vmem:[%s168 + $0x7c] sm:$0xf]
        %v232 = vld [vmem:[%s168 + $0x84] sm:$0xf]
        %v233 = vld [vmem:[%s168 + $0x88] sm:$0xf]
        %v234 = vld [vmem:[%s168 + $0x90] sm:$0xf]
        %v235 = vld [vmem:[%s168 + $0x94] sm:$0xf]
        %v236 = vld [vmem:[%s168 + $0x9c] sm:$0xf]
        %v237 = vld [vmem:[%s168 + $0xa0] sm:$0xf]
        %v238 = vld [vmem:[%s168 + $0xa8] sm:$0xf]
        %v239 = vld [vmem:[%s168 + $0xac] sm:$0xf]
        %v240 = vld [vmem:[%s168 + $0xb4] sm:$0xf]
        %v241 = vld [vmem:[%s168 + $0xb8] sm:$0xf]
        %v242 = vld [vmem:[%s168 + $0xc0] sm:$0xf]
        %v243 = vld [vmem:[%s168 + $0xc4] sm:$0xf]
        %v244 = vld [vmem:[%s168 + $0xcc] sm:$0xf]
        %v245 = vld [vmem:[%s168 + $0xd0] sm:$0xf]
        %v246 = vld [vmem:[#allocation2] sm:$0xff]
        %v247 = vld [vmem:[#allocation2 + $0x8] sm:$0xff]
        %v248 = vld [vmem:[#allocation2 + $0x10] sm:$0xff]
        %v249 = vld [vmem:[#allocation2 + $0x18] sm:$0xff]
        %v250 = vld [vmem:[#allocation2 + $0x20] sm:$0xff]
        %v251 = vld [vmem:[#allocation2 + $0x28] sm:$0xff]
        %v252 = vld [vmem:[#allocation2 + $0x30] sm:$0xff]
        %v253 = vld [vmem:[#allocation2 + $0x38] sm:$0xff]
        %v254 = vld [vmem:[#allocation2 + $0x40] sm:$0xff]
        %v255 = vld [vmem:[#allocation2 + $0x48] sm:$0xff]
        %v256 = vld [vmem:[#allocation2 + $0x50] sm:$0xff]
        %v257 = vld [vmem:[#allocation2 + $0x58] sm:$0xff]
        %v258 = vld [vmem:[#allocation2 + $0x60] sm:$0xff]
        %v259 = vld [vmem:[#allocation2 + $0x68] sm:$0xff]
        %v260 = vld [vmem:[#allocation2 + $0x70] sm:$0xff]
        %v261 = vld [vmem:[#allocation2 + $0x78] sm:$0xff]
        %v262 = vld [vmem:[#allocation2 + $0x80] sm:$0xff]
        %v263 = vld [vmem:[#allocation2 + $0x88] sm:$0xff]
        %v264 = vld [vmem:[#allocation2 + $0x90] sm:$0xff]
        %v265 = vld [vmem:[#allocation2 + $0x98] sm:$0xff]
        %v266 = vld [vmem:[#allocation2 + $0xa0] sm:$0xff]
        %v267 = vld [vmem:[#allocation2 + $0xa8] sm:$0xff]
        %v268 = vld [vmem:[#allocation2 + $0xb0] sm:$0xff]
        %v269 = vld [vmem:[#allocation2 + $0xb8] sm:$0xff]
        %v270 = vld [vmem:[#allocation2 + $0xc0] sm:$0xff]
        %v271 = vld [vmem:[#allocation2 + $0xc8] sm:$0xff]
        %v272 = vld [vmem:[#allocation2 + $0xd0] sm:$0xff]
        %v273 = vld [vmem:[#allocation2 + $0xd8] sm:$0xff]
        %v274 = vld [vmem:[#allocation2 + $0xe0] sm:$0xff]
        %v275 = vld [vmem:[#allocation2 + $0xe8] sm:$0xff]
        %v276 = vld [vmem:[#allocation2 + $0xf0] sm:$0xff]
        %v277 = vld [vmem:[#allocation2 + $0xf8] sm:$0xff]
        %v278 = vld [vmem:[%s1] sm:$0xf]
        %v311 = vunpack.c.l.b16 %v210
        %v312 = vunpack.c.l.b16 %v211
        %v313 = vunpack.c.l.b16 %v212
        %v314 = vunpack.c.l.b16 %v213
        %v315 = vunpack.c.l.b16 %v214
        %v316 = vunpack.c.l.b16 %v215
        %v317 = vunpack.c.l.b16 %v216
        %v318 = vunpack.c.l.b16 %v217
        %v319 = vunpack.c.l.b16 %v218
        %v320 = vunpack.c.l.b16 %v219
        %v321 = vunpack.c.l.b16 %v220
        %v322 = vunpack.c.l.b16 %v221
        %v323 = vunpack.c.l.b16 %v222
        %v324 = vunpack.c.l.b16 %v223
        %v325 = vunpack.c.l.b16 %v224
        %v326 = vunpack.c.l.b16 %v225
        %v327 = vunpack.c.l.b16 %v226
        %v328 = vunpack.c.l.b16 %v227
        %v329 = vunpack.c.l.b16 %v228
        %v330 = vunpack.c.l.b16 %v229
        %v331 = vunpack.c.l.b16 %v230
        %v332 = vunpack.c.l.b16 %v231
        %v333 = vunpack.c.l.b16 %v232
        %v334 = vunpack.c.l.b16 %v233
        %v335 = vunpack.c.l.b16 %v234
        %v336 = vunpack.c.l.b16 %v235
        %v337 = vunpack.c.l.b16 %v236
        %v338 = vunpack.c.l.b16 %v237
        %v339 = vunpack.c.l.b16 %v238
        %v340 = vunpack.c.l.b16 %v239
        %v341 = vunpack.c.l.b16 %v240
        %v342 = vunpack.c.l.b16 %v241
        %v343 = vpack.c.b16 %v312, %v311
        %v344 = vpack.c.b16 %v314, %v313
        %v345 = vpack.c.b16 %v316, %v315
        %v346 = vpack.c.b16 %v318, %v317
        %v347 = vpack.c.b16 %v320, %v319
        %v348 = vpack.c.b16 %v322, %v321
        %v349 = vpack.c.b16 %v324, %v323
        %v350 = vpack.c.b16 %v326, %v325
        %v351 = vpack.c.b16 %v328, %v327
        %v352 = vpack.c.b16 %v330, %v329
        %v353 = vpack.c.b16 %v332, %v331
        %v354 = vpack.c.b16 %v334, %v333
        %v355 = vpack.c.b16 %v336, %v335
        %v356 = vpack.c.b16 %v338, %v337
        %v357 = vpack.c.b16 %v340, %v339
        %v358 = vpack.c.b16 %v342, %v341
        %vm359 = vcmask 64512
        %v361 = vsel %vm359, %v343, 0
        %v364 = vsel %vm359, %v344, 0
        %v367 = vsel %vm359, %v345, 0
        %v370 = vsel %vm359, %v346, 0
        %v373 = vsel %vm359, %v347, 0
        %v376 = vsel %vm359, %v348, 0
        %v379 = vsel %vm359, %v349, 0
        %v382 = vsel %vm359, %v350, 0
        %v385 = vsel %vm359, %v351, 0
        %v388 = vsel %vm359, %v352, 0
        %v391 = vsel %vm359, %v353, 0
        %v394 = vsel %vm359, %v354, 0
        %v397 = vsel %vm359, %v355, 0
        %v400 = vsel %vm359, %v356, 0
        %v403 = vsel %vm359, %v357, 0
        %v406 = vsel %vm359, %v358, 0
        %vm408 = vcmask 1043456
        %v410 = vsel %vm408, %v278, 0
        %412 = vmatprep.subr.bf16.mxu0 0
        %413 = vmatpush1.bf16.msra.mxu0 0
        %414 = vmatprep.subr.bf16.mxu0 0
        %415 = vmatpush1.bf16.msra.mxu0 0
        %416 = vmatprep.subr.bf16.mxu0 0
        %417 = vmatpush1.bf16.msra.mxu0 0
        %418 = vmatprep.subr.bf16.mxu0 0
        %419 = vmatpush1.bf16.msra.mxu0 0
        %420 = vmatprep.subr.bf16.mxu0 0
        %421 = vmatpush1.bf16.msra.mxu0 0
        %422 = vmatprep.subr.bf16.mxu0 0
        %423 = vmatpush1.bf16.msra.mxu0 0
        %424 = vmatprep.subr.bf16.mxu0 0
        %425 = vmatpush1.bf16.msra.mxu0 0
        %426 = vmatprep.subr.bf16.mxu0 0
        %427 = vmatpush1.bf16.msra.mxu0 %v410
        %428 = vmatprep.subr.bf16.mxu0 0
        %429 = vmatpush2.bf16.msra.mxu0 0
        %430 = vmatprep.subr.bf16.mxu0 0
        %431 = vmatpush2.bf16.msra.mxu0 0
        %432 = vmatprep.subr.bf16.mxu0 0
        %433 = vmatpush2.bf16.msra.mxu0 0
        %434 = vmatprep.subr.bf16.mxu0 0
        %435 = vmatpush2.bf16.msra.mxu0 0
        %436 = vmatprep.subr.bf16.mxu0 0
        %437 = vmatpush2.bf16.msra.mxu0 0
        %438 = vmatprep.subr.bf16.mxu0 0
        %439 = vmatpush2.bf16.msra.mxu0 0
        %440 = vmatprep.subr.bf16.mxu0 0
        %441 = vmatpush2.bf16.msra.mxu0 0
        %442 = vmatprep.subr.bf16.mxu0 0
        %443 = vmatpush2.bf16.msra.mxu0 0
        %444 = vmatprep.mubr.bf16.mxu0 0
        %445 = vmatmul.mubr.bf16.gmra.mxu0 %v361
        %v446 = vpop.f32.mrf.mxu0
        %v447 = vadd.f32 0.0, %v446
        %v448 = vpop.f32.mrf.mxu0
        %v449 = vpop.f32.mrf.mxu0
        %v450 = vadd.f32 0.0, %v449
        %v451 = vpop.f32.mrf.mxu0
        %452 = vmatprep.mubr.bf16.mxu0 0
        %453 = vmatmul.mubr.bf16.gmra.mxu0 %v364
        %v454 = vpop.f32.mrf.mxu0
        %v455 = vadd.f32 0.0, %v454
        %v456 = vpop.f32.mrf.mxu0
        %v457 = vpop.f32.mrf.mxu0
        %v458 = vadd.f32 0.0, %v457
        %v459 = vpop.f32.mrf.mxu0
        %460 = vmatprep.mubr.bf16.mxu0 0
        %461 = vmatmul.mubr.bf16.gmra.mxu0 %v367
        %v462 = vpop.f32.mrf.mxu0
        %v463 = vadd.f32 0.0, %v462
        %v464 = vpop.f32.mrf.mxu0
        %v465 = vpop.f32.mrf.mxu0
        %v466 = vadd.f32 0.0, %v465
        %v467 = vpop.f32.mrf.mxu0
        %468 = vmatprep.mubr.bf16.mxu0 0
        %469 = vmatmul.mubr.bf16.gmra.mxu0 %v370
        %v470 = vpop.f32.mrf.mxu0
        %v471 = vadd.f32 0.0, %v470
        %v472 = vpop.f32.mrf.mxu0
        %v473 = vpop.f32.mrf.mxu0
        %v474 = vadd.f32 0.0, %v473
        %v475 = vpop.f32.mrf.mxu0
        %476 = vmatprep.mubr.bf16.mxu0 0
        %477 = vmatmul.mubr.bf16.gmra.mxu0 %v373
        %v478 = vpop.f32.mrf.mxu0
        %v479 = vadd.f32 0.0, %v478
        %v480 = vpop.f32.mrf.mxu0
        %v481 = vpop.f32.mrf.mxu0
        %v482 = vadd.f32 0.0, %v481
        %v483 = vpop.f32.mrf.mxu0
        %484 = vmatprep.mubr.bf16.mxu0 0
        %485 = vmatmul.mubr.bf16.gmra.mxu0 %v376
        %v486 = vpop.f32.mrf.mxu0
        %v487 = vadd.f32 0.0, %v486
        %v488 = vpop.f32.mrf.mxu0
        %v489 = vpop.f32.mrf.mxu0
        %v490 = vadd.f32 0.0, %v489
        %v491 = vpop.f32.mrf.mxu0
        %492 = vmatprep.mubr.bf16.mxu0 0
        %493 = vmatmul.mubr.bf16.gmra.mxu0 %v379
        %v494 = vpop.f32.mrf.mxu0
        %v495 = vadd.f32 0.0, %v494
        %v496 = vpop.f32.mrf.mxu0
        %v497 = vpop.f32.mrf.mxu0
        %v498 = vadd.f32 0.0, %v497
        %v499 = vpop.f32.mrf.mxu0
        %500 = vmatprep.mubr.bf16.mxu0 0
        %501 = vmatmul.mubr.bf16.gmra.mxu0 %v382
        %v502 = vpop.f32.mrf.mxu0
        %v503 = vadd.f32 0.0, %v502
        %v504 = vpop.f32.mrf.mxu0
        %v505 = vpop.f32.mrf.mxu0
        %v506 = vadd.f32 0.0, %v505
        %v507 = vpop.f32.mrf.mxu0
        %508 = vmatprep.mubr.bf16.mxu0 0
        %509 = vmatmul.mubr.bf16.gmra.mxu0 %v385
        %v510 = vpop.f32.mrf.mxu0
        %v511 = vadd.f32 0.0, %v510
        %v512 = vpop.f32.mrf.mxu0
        %v513 = vpop.f32.mrf.mxu0
        %v514 = vadd.f32 0.0, %v513
        %v515 = vpop.f32.mrf.mxu0
        %516 = vmatprep.mubr.bf16.mxu0 0
        %517 = vmatmul.mubr.bf16.gmra.mxu0 %v388
        %v518 = vpop.f32.mrf.mxu0
        %v519 = vadd.f32 0.0, %v518
        %v520 = vpop.f32.mrf.mxu0
        %v521 = vpop.f32.mrf.mxu0
        %v522 = vadd.f32 0.0, %v521
        %v523 = vpop.f32.mrf.mxu0
        %524 = vmatprep.mubr.bf16.mxu0 0
        %525 = vmatmul.mubr.bf16.gmra.mxu0 %v391
        %v526 = vpop.f32.mrf.mxu0
        %v527 = vadd.f32 0.0, %v526
        %v528 = vpop.f32.mrf.mxu0
        %v529 = vpop.f32.mrf.mxu0
        %v530 = vadd.f32 0.0, %v529
        %v531 = vpop.f32.mrf.mxu0
        %532 = vmatprep.mubr.bf16.mxu0 0
        %533 = vmatmul.mubr.bf16.gmra.mxu0 %v394
        %v534 = vpop.f32.mrf.mxu0
        %v535 = vadd.f32 0.0, %v534
        %v536 = vpop.f32.mrf.mxu0
        %v537 = vpop.f32.mrf.mxu0
        %v538 = vadd.f32 0.0, %v537
        %v539 = vpop.f32.mrf.mxu0
        %540 = vmatprep.mubr.bf16.mxu0 0
        %541 = vmatmul.mubr.bf16.gmra.mxu0 %v397
        %v542 = vpop.f32.mrf.mxu0
        %v543 = vadd.f32 0.0, %v542
        %v544 = vpop.f32.mrf.mxu0
        %v545 = vpop.f32.mrf.mxu0
        %v546 = vadd.f32 0.0, %v545
        %v547 = vpop.f32.mrf.mxu0
        %548 = vmatprep.mubr.bf16.mxu0 0
        %549 = vmatmul.mubr.bf16.gmra.mxu0 %v400
        %v550 = vpop.f32.mrf.mxu0
        %v551 = vadd.f32 0.0, %v550
        %v552 = vpop.f32.mrf.mxu0
        %v553 = vpop.f32.mrf.mxu0
        %v554 = vadd.f32 0.0, %v553
        %v555 = vpop.f32.mrf.mxu0
        %556 = vmatprep.mubr.bf16.mxu0 0
        %557 = vmatmul.mubr.bf16.gmra.mxu0 %v403
        %v558 = vpop.f32.mrf.mxu0
        %v559 = vadd.f32 0.0, %v558
        %v560 = vpop.f32.mrf.mxu0
        %v561 = vpop.f32.mrf.mxu0
        %v562 = vadd.f32 0.0, %v561
        %v563 = vpop.f32.mrf.mxu0
        %564 = vmatprep.mubr.bf16.mxu0 0
        %565 = vmatmul.mubr.bf16.gmra.mxu0 %v406
        %v566 = vpop.f32.mrf.mxu0
        %v567 = vadd.f32 0.0, %v566
        %v568 = vpop.f32.mrf.mxu0
        %v569 = vpop.f32.mrf.mxu0
        %v570 = vadd.f32 0.0, %v569
        %v571 = vpop.f32.mrf.mxu0
        %572 = vdwg.mxu0
        %v573 = vadd.f32 %v246, %v447
        %v574 = vadd.f32 %v247, %v450
        %v575 = vadd.f32 %v248, %v455
        %v576 = vadd.f32 %v249, %v458
        %v577 = vadd.f32 %v250, %v463
        %v578 = vadd.f32 %v251, %v466
        %v579 = vadd.f32 %v252, %v471
        %v580 = vadd.f32 %v253, %v474
        %v581 = vadd.f32 %v254, %v479
        %v582 = vadd.f32 %v255, %v482
        %v583 = vadd.f32 %v256, %v487
        %v584 = vadd.f32 %v257, %v490
        %v585 = vadd.f32 %v258, %v495
        %v586 = vadd.f32 %v259, %v498
        %v587 = vadd.f32 %v260, %v503
        %v588 = vadd.f32 %v261, %v506
        %v589 = vadd.f32 %v262, %v511
        %v590 = vadd.f32 %v263, %v514
        %v591 = vadd.f32 %v264, %v519
        %v592 = vadd.f32 %v265, %v522
        %v593 = vadd.f32 %v266, %v527
        %v594 = vadd.f32 %v267, %v530
        %v595 = vadd.f32 %v268, %v535
        %v596 = vadd.f32 %v269, %v538
        %v597 = vadd.f32 %v270, %v543
        %v598 = vadd.f32 %v271, %v546
        %v599 = vadd.f32 %v272, %v551
        %v600 = vadd.f32 %v273, %v554
        %v601 = vadd.f32 %v274, %v559
        %v602 = vadd.f32 %v275, %v562
        %v603 = vadd.f32 %v276, %v567
        %v604 = vadd.f32 %v277, %v570
        %605 = vst [vmem:[#allocation2] sm:$0xff] %v573
        %606 = vst [vmem:[#allocation2 + $0x8] sm:$0xff] %v574
        %607 = vst [vmem:[#allocation2 + $0x10] sm:$0xff] %v575
        %608 = vst [vmem:[#allocation2 + $0x18] sm:$0xff] %v576
        %609 = vst [vmem:[#allocation2 + $0x20] sm:$0xff] %v577
        %610 = vst [vmem:[#allocation2 + $0x28] sm:$0xff] %v578
        %611 = vst [vmem:[#allocation2 + $0x30] sm:$0xff] %v579
        %612 = vst [vmem:[#allocation2 + $0x38] sm:$0xff] %v580
        %613 = vst [vmem:[#allocation2 + $0x40] sm:$0xff] %v581
        %614 = vst [vmem:[#allocation2 + $0x48] sm:$0xff] %v582
        %615 = vst [vmem:[#allocation2 + $0x50] sm:$0xff] %v583
        %616 = vst [vmem:[#allocation2 + $0x58] sm:$0xff] %v584
        %617 = vst [vmem:[#allocation2 + $0x60] sm:$0xff] %v585
        %618 = vst [vmem:[#allocation2 + $0x68] sm:$0xff] %v586
        %619 = vst [vmem:[#allocation2 + $0x70] sm:$0xff] %v587
        %620 = vst [vmem:[#allocation2 + $0x78] sm:$0xff] %v588
        %621 = vst [vmem:[#allocation2 + $0x80] sm:$0xff] %v589
        %622 = vst [vmem:[#allocation2 + $0x88] sm:$0xff] %v590
        %623 = vst [vmem:[#allocation2 + $0x90] sm:$0xff] %v591
        %624 = vst [vmem:[#allocation2 + $0x98] sm:$0xff] %v592
        %625 = vst [vmem:[#allocation2 + $0xa0] sm:$0xff] %v593
        %626 = vst [vmem:[#allocation2 + $0xa8] sm:$0xff] %v594
        %627 = vst [vmem:[#allocation2 + $0xb0] sm:$0xff] %v595
        %628 = vst [vmem:[#allocation2 + $0xb8] sm:$0xff] %v596
        %629 = vst [vmem:[#allocation2 + $0xc0] sm:$0xff] %v597
        %630 = vst [vmem:[#allocation2 + $0xc8] sm:$0xff] %v598
        %631 = vst [vmem:[#allocation2 + $0xd0] sm:$0xff] %v599
        %632 = vst [vmem:[#allocation2 + $0xd8] sm:$0xff] %v600
        %633 = vst [vmem:[#allocation2 + $0xe0] sm:$0xff] %v601
        %634 = vst [vmem:[#allocation2 + $0xe8] sm:$0xff] %v602
        %635 = vst [vmem:[#allocation2 + $0xf0] sm:$0xff] %v603
        %636 = vst [vmem:[#allocation2 + $0xf8] sm:$0xff] %v604
        %v637 = vld [vmem:[#allocation2] sm:$0xff]
        %v638 = vld [vmem:[#allocation2 + $0x8] sm:$0xff]
        %v639 = vld [vmem:[#allocation2 + $0x10] sm:$0xff]
        %v640 = vld [vmem:[#allocation2 + $0x18] sm:$0xff]
        %v641 = vld [vmem:[#allocation2 + $0x20] sm:$0xff]
        %v642 = vld [vmem:[#allocation2 + $0x28] sm:$0xff]
        %v643 = vld [vmem:[#allocation2 + $0x30] sm:$0xff]
        %v644 = vld [vmem:[#allocation2 + $0x38] sm:$0xff]
        %v645 = vld [vmem:[#allocation2 + $0x40] sm:$0xff]
        %v646 = vld [vmem:[#allocation2 + $0x48] sm:$0xff]
        %v647 = vld [vmem:[#allocation2 + $0x50] sm:$0xff]
        %v648 = vld [vmem:[#allocation2 + $0x58] sm:$0xff]
        %v649 = vld [vmem:[#allocation2 + $0x60] sm:$0xff]
        %v650 = vld [vmem:[#allocation2 + $0x68] sm:$0xff]
        %v651 = vld [vmem:[#allocation2 + $0x70] sm:$0xff]
        %v652 = vld [vmem:[#allocation2 + $0x78] sm:$0xff]
        %v653 = vld [vmem:[#allocation2 + $0x80] sm:$0xff]
        %v654 = vld [vmem:[#allocation2 + $0x88] sm:$0xff]
        %v655 = vld [vmem:[#allocation2 + $0x90] sm:$0xff]
        %v656 = vld [vmem:[#allocation2 + $0x98] sm:$0xff]
        %v657 = vld [vmem:[#allocation2 + $0xa0] sm:$0xff]
        %v658 = vld [vmem:[#allocation2 + $0xa8] sm:$0xff]
        %v659 = vld [vmem:[#allocation2 + $0xb0] sm:$0xff]
        %v660 = vld [vmem:[#allocation2 + $0xb8] sm:$0xff]
        %v661 = vld [vmem:[#allocation2 + $0xc0] sm:$0xff]
        %v662 = vld [vmem:[#allocation2 + $0xc8] sm:$0xff]
        %v663 = vld [vmem:[#allocation2 + $0xd0] sm:$0xff]
        %v664 = vld [vmem:[#allocation2 + $0xd8] sm:$0xff]
        %v665 = vld [vmem:[#allocation2 + $0xe0] sm:$0xff]
        %v666 = vld [vmem:[#allocation2 + $0xe8] sm:$0xff]
        %v667 = vld [vmem:[#allocation2 + $0xf0] sm:$0xff]
        %v668 = vld [vmem:[#allocation2 + $0xf8] sm:$0xff]
        %s669 = scalar_lea.vmem %s1, 12
        %v670 = vld [vmem:[%s669] sm:$0xf]
        %v673 = vunpack.c.l.b16 %v242
        %v674 = vunpack.c.l.b16 %v243
        %v675 = vpack.c.b16 %v674, %v673
        %v677 = vsel %vm359, %v675, 0
        %v680 = vsel %vm408, %v670, 0
        %682 = vmatprep.subr.bf16.mxu0 0
        %683 = vmatpush1.bf16.msra.mxu0 0
        %684 = vmatprep.subr.bf16.mxu0 0
        %685 = vmatpush1.bf16.msra.mxu0 0
        %686 = vmatprep.subr.bf16.mxu0 0
        %687 = vmatpush1.bf16.msra.mxu0 0
        %688 = vmatprep.subr.bf16.mxu0 0
        %689 = vmatpush1.bf16.msra.mxu0 0
        %690 = vmatprep.subr.bf16.mxu0 0
        %691 = vmatpush1.bf16.msra.mxu0 0
        %692 = vmatprep.subr.bf16.mxu0 0
        %693 = vmatpush1.bf16.msra.mxu0 0
        %694 = vmatprep.subr.bf16.mxu0 0
        %695 = vmatpush1.bf16.msra.mxu0 0
        %696 = vmatprep.subr.bf16.mxu0 0
        %697 = vmatpush1.bf16.msra.mxu0 %v680
        %698 = vmatprep.subr.bf16.mxu0 0
        %699 = vmatpush2.bf16.msra.mxu0 0
        %700 = vmatprep.subr.bf16.mxu0 0
        %701 = vmatpush2.bf16.msra.mxu0 0
        %702 = vmatprep.subr.bf16.mxu0 0
        %703 = vmatpush2.bf16.msra.mxu0 0
        %704 = vmatprep.subr.bf16.mxu0 0
        %705 = vmatpush2.bf16.msra.mxu0 0
        %706 = vmatprep.subr.bf16.mxu0 0
        %707 = vmatpush2.bf16.msra.mxu0 0
        %708 = vmatprep.subr.bf16.mxu0 0
        %709 = vmatpush2.bf16.msra.mxu0 0
        %710 = vmatprep.subr.bf16.mxu0 0
        %711 = vmatpush2.bf16.msra.mxu0 0
        %712 = vmatprep.subr.bf16.mxu0 0
        %713 = vmatpush2.bf16.msra.mxu0 0
        %714 = vmatprep.mubr.bf16.mxu0 0
        %715 = vmatmul.mubr.bf16.gmra.mxu0 %v364
        %v716 = vpop.f32.mrf.mxu0
        %v717 = vadd.f32 0.0, %v716
        %v718 = vpop.f32.mrf.mxu0
        %v719 = vpop.f32.mrf.mxu0
        %v720 = vadd.f32 0.0, %v719
        %v721 = vpop.f32.mrf.mxu0
        %722 = vmatprep.mubr.bf16.mxu0 0
        %723 = vmatmul.mubr.bf16.gmra.mxu0 %v367
        %v724 = vpop.f32.mrf.mxu0
        %v725 = vadd.f32 0.0, %v724
        %v726 = vpop.f32.mrf.mxu0
        %v727 = vpop.f32.mrf.mxu0
        %v728 = vadd.f32 0.0, %v727
        %v729 = vpop.f32.mrf.mxu0
        %730 = vmatprep.mubr.bf16.mxu0 0
        %731 = vmatmul.mubr.bf16.gmra.mxu0 %v370
        %v732 = vpop.f32.mrf.mxu0
        %v733 = vadd.f32 0.0, %v732
        %v734 = vpop.f32.mrf.mxu0
        %v735 = vpop.f32.mrf.mxu0
        %v736 = vadd.f32 0.0, %v735
        %v737 = vpop.f32.mrf.mxu0
        %738 = vmatprep.mubr.bf16.mxu0 0
        %739 = vmatmul.mubr.bf16.gmra.mxu0 %v373
        %v740 = vpop.f32.mrf.mxu0
        %v741 = vadd.f32 0.0, %v740
        %v742 = vpop.f32.mrf.mxu0
        %v743 = vpop.f32.mrf.mxu0
        %v744 = vadd.f32 0.0, %v743
        %v745 = vpop.f32.mrf.mxu0
        %746 = vmatprep.mubr.bf16.mxu0 0
        %747 = vmatmul.mubr.bf16.gmra.mxu0 %v376
        %v748 = vpop.f32.mrf.mxu0
        %v749 = vadd.f32 0.0, %v748
        %v750 = vpop.f32.mrf.mxu0
        %v751 = vpop.f32.mrf.mxu0
        %v752 = vadd.f32 0.0, %v751
        %v753 = vpop.f32.mrf.mxu0
        %754 = vmatprep.mubr.bf16.mxu0 0
        %755 = vmatmul.mubr.bf16.gmra.mxu0 %v379
        %v756 = vpop.f32.mrf.mxu0
        %v757 = vadd.f32 0.0, %v756
        %v758 = vpop.f32.mrf.mxu0
        %v759 = vpop.f32.mrf.mxu0
        %v760 = vadd.f32 0.0, %v759
        %v761 = vpop.f32.mrf.mxu0
        %762 = vmatprep.mubr.bf16.mxu0 0
        %763 = vmatmul.mubr.bf16.gmra.mxu0 %v382
        %v764 = vpop.f32.mrf.mxu0
        %v765 = vadd.f32 0.0, %v764
        %v766 = vpop.f32.mrf.mxu0
        %v767 = vpop.f32.mrf.mxu0
        %v768 = vadd.f32 0.0, %v767
        %v769 = vpop.f32.mrf.mxu0
        %770 = vmatprep.mubr.bf16.mxu0 0
        %771 = vmatmul.mubr.bf16.gmra.mxu0 %v385
        %v772 = vpop.f32.mrf.mxu0
        %v773 = vadd.f32 0.0, %v772
        %v774 = vpop.f32.mrf.mxu0
        %v775 = vpop.f32.mrf.mxu0
        %v776 = vadd.f32 0.0, %v775
        %v777 = vpop.f32.mrf.mxu0
        %778 = vmatprep.mubr.bf16.mxu0 0
        %779 = vmatmul.mubr.bf16.gmra.mxu0 %v388
        %v780 = vpop.f32.mrf.mxu0
        %v781 = vadd.f32 0.0, %v780
        %v782 = vpop.f32.mrf.mxu0
        %v783 = vpop.f32.mrf.mxu0
        %v784 = vadd.f32 0.0, %v783
        %v785 = vpop.f32.mrf.mxu0
        %786 = vmatprep.mubr.bf16.mxu0 0
        %787 = vmatmul.mubr.bf16.gmra.mxu0 %v391
        %v788 = vpop.f32.mrf.mxu0
        %v789 = vadd.f32 0.0, %v788
        %v790 = vpop.f32.mrf.mxu0
        %v791 = vpop.f32.mrf.mxu0
        %v792 = vadd.f32 0.0, %v791
        %v793 = vpop.f32.mrf.mxu0
        %794 = vmatprep.mubr.bf16.mxu0 0
        %795 = vmatmul.mubr.bf16.gmra.mxu0 %v394
        %v796 = vpop.f32.mrf.mxu0
        %v797 = vadd.f32 0.0, %v796
        %v798 = vpop.f32.mrf.mxu0
        %v799 = vpop.f32.mrf.mxu0
        %v800 = vadd.f32 0.0, %v799
        %v801 = vpop.f32.mrf.mxu0
        %802 = vmatprep.mubr.bf16.mxu0 0
        %803 = vmatmul.mubr.bf16.gmra.mxu0 %v397
        %v804 = vpop.f32.mrf.mxu0
        %v805 = vadd.f32 0.0, %v804
        %v806 = vpop.f32.mrf.mxu0
        %v807 = vpop.f32.mrf.mxu0
        %v808 = vadd.f32 0.0, %v807
        %v809 = vpop.f32.mrf.mxu0
        %810 = vmatprep.mubr.bf16.mxu0 0
        %811 = vmatmul.mubr.bf16.gmra.mxu0 %v400
        %v812 = vpop.f32.mrf.mxu0
        %v813 = vadd.f32 0.0, %v812
        %v814 = vpop.f32.mrf.mxu0
        %v815 = vpop.f32.mrf.mxu0
        %v816 = vadd.f32 0.0, %v815
        %v817 = vpop.f32.mrf.mxu0
        %818 = vmatprep.mubr.bf16.mxu0 0
        %819 = vmatmul.mubr.bf16.gmra.mxu0 %v403
        %v820 = vpop.f32.mrf.mxu0
        %v821 = vadd.f32 0.0, %v820
        %v822 = vpop.f32.mrf.mxu0
        %v823 = vpop.f32.mrf.mxu0
        %v824 = vadd.f32 0.0, %v823
        %v825 = vpop.f32.mrf.mxu0
        %826 = vmatprep.mubr.bf16.mxu0 0
        %827 = vmatmul.mubr.bf16.gmra.mxu0 %v406
        %v828 = vpop.f32.mrf.mxu0
        %v829 = vadd.f32 0.0, %v828
        %v830 = vpop.f32.mrf.mxu0
        %v831 = vpop.f32.mrf.mxu0
        %v832 = vadd.f32 0.0, %v831
        %v833 = vpop.f32.mrf.mxu0
        %834 = vmatprep.mubr.bf16.mxu0 0
        %835 = vmatmul.mubr.bf16.gmra.mxu0 %v677
        %v836 = vpop.f32.mrf.mxu0
        %v837 = vadd.f32 0.0, %v836
        %v838 = vpop.f32.mrf.mxu0
        %v839 = vpop.f32.mrf.mxu0
        %v840 = vadd.f32 0.0, %v839
        %v841 = vpop.f32.mrf.mxu0
        %842 = vdwg.mxu0
        %v843 = vadd.f32 %v637, %v717
        %v844 = vadd.f32 %v638, %v720
        %v845 = vadd.f32 %v639, %v725
        %v846 = vadd.f32 %v640, %v728
        %v847 = vadd.f32 %v641, %v733
        %v848 = vadd.f32 %v642, %v736
        %v849 = vadd.f32 %v643, %v741
        %v850 = vadd.f32 %v644, %v744
        %v851 = vadd.f32 %v645, %v749
        %v852 = vadd.f32 %v646, %v752
        %v853 = vadd.f32 %v647, %v757
        %v854 = vadd.f32 %v648, %v760
        %v855 = vadd.f32 %v649, %v765
        %v856 = vadd.f32 %v650, %v768
        %v857 = vadd.f32 %v651, %v773
        %v858 = vadd.f32 %v652, %v776
        %v859 = vadd.f32 %v653, %v781
        %v860 = vadd.f32 %v654, %v784
        %v861 = vadd.f32 %v655, %v789
        %v862 = vadd.f32 %v656, %v792
        %v863 = vadd.f32 %v657, %v797
        %v864 = vadd.f32 %v658, %v800
        %v865 = vadd.f32 %v659, %v805
        %v866 = vadd.f32 %v660, %v808
        %v867 = vadd.f32 %v661, %v813
        %v868 = vadd.f32 %v662, %v816
        %v869 = vadd.f32 %v663, %v821
        %v870 = vadd.f32 %v664, %v824
        %v871 = vadd.f32 %v665, %v829
        %v872 = vadd.f32 %v666, %v832
        %v873 = vadd.f32 %v667, %v837
        %v874 = vadd.f32 %v668, %v840
        %875 = vst [vmem:[#allocation2] sm:$0xff] %v843
        %876 = vst [vmem:[#allocation2 + $0x8] sm:$0xff] %v844
        %877 = vst [vmem:[#allocation2 + $0x10] sm:$0xff] %v845
        %878 = vst [vmem:[#allocation2 + $0x18] sm:$0xff] %v846
        %879 = vst [vmem:[#allocation2 + $0x20] sm:$0xff] %v847
        %880 = vst [vmem:[#allocation2 + $0x28] sm:$0xff] %v848
        %881 = vst [vmem:[#allocation2 + $0x30] sm:$0xff] %v849
        %882 = vst [vmem:[#allocation2 + $0x38] sm:$0xff] %v850
        %883 = vst [vmem:[#allocation2 + $0x40] sm:$0xff] %v851
        %884 = vst [vmem:[#allocation2 + $0x48] sm:$0xff] %v852
        %885 = vst [vmem:[#allocation2 + $0x50] sm:$0xff] %v853
        %886 = vst [vmem:[#allocation2 + $0x58] sm:$0xff] %v854
        %887 = vst [vmem:[#allocation2 + $0x60] sm:$0xff] %v855
        %888 = vst [vmem:[#allocation2 + $0x68] sm:$0xff] %v856
        %889 = vst [vmem:[#allocation2 + $0x70] sm:$0xff] %v857
        %890 = vst [vmem:[#allocation2 + $0x78] sm:$0xff] %v858
        %891 = vst [vmem:[#allocation2 + $0x80] sm:$0xff] %v859
        %892 = vst [vmem:[#allocation2 + $0x88] sm:$0xff] %v860
        %893 = vst [vmem:[#allocation2 + $0x90] sm:$0xff] %v861
        %894 = vst [vmem:[#allocation2 + $0x98] sm:$0xff] %v862
        %895 = vst [vmem:[#allocation2 + $0xa0] sm:$0xff] %v863
        %896 = vst [vmem:[#allocation2 + $0xa8] sm:$0xff] %v864
        %897 = vst [vmem:[#allocation2 + $0xb0] sm:$0xff] %v865
        %898 = vst [vmem:[#allocation2 + $0xb8] sm:$0xff] %v866
        %899 = vst [vmem:[#allocation2 + $0xc0] sm:$0xff] %v867
        %900 = vst [vmem:[#allocation2 + $0xc8] sm:$0xff] %v868
        %901 = vst [vmem:[#allocation2 + $0xd0] sm:$0xff] %v869
        %902 = vst [vmem:[#allocation2 + $0xd8] sm:$0xff] %v870
        %903 = vst [vmem:[#allocation2 + $0xe0] sm:$0xff] %v871
        %904 = vst [vmem:[#allocation2 + $0xe8] sm:$0xff] %v872
        %905 = vst [vmem:[#allocation2 + $0xf0] sm:$0xff] %v873
        %906 = vst [vmem:[#allocation2 + $0xf8] sm:$0xff] %v874
        %v907 = vld [vmem:[#allocation2] sm:$0xff]
        %v908 = vld [vmem:[#allocation2 + $0x8] sm:$0xff]
        %v909 = vld [vmem:[#allocation2 + $0x10] sm:$0xff]
        %v910 = vld [vmem:[#allocation2 + $0x18] sm:$0xff]
        %v911 = vld [vmem:[#allocation2 + $0x20] sm:$0xff]
        %v912 = vld [vmem:[#allocation2 + $0x28] sm:$0xff]
        %v913 = vld [vmem:[#allocation2 + $0x30] sm:$0xff]
        %v914 = vld [vmem:[#allocation2 + $0x38] sm:$0xff]
        %v915 = vld [vmem:[#allocation2 + $0x40] sm:$0xff]
        %v916 = vld [vmem:[#allocation2 + $0x48] sm:$0xff]
        %v917 = vld [vmem:[#allocation2 + $0x50] sm:$0xff]
        %v918 = vld [vmem:[#allocation2 + $0x58] sm:$0xff]
        %v919 = vld [vmem:[#allocation2 + $0x60] sm:$0xff]
        %v920 = vld [vmem:[#allocation2 + $0x68] sm:$0xff]
        %v921 = vld [vmem:[#allocation2 + $0x70] sm:$0xff]
        %v922 = vld [vmem:[#allocation2 + $0x78] sm:$0xff]
        %v923 = vld [vmem:[#allocation2 + $0x80] sm:$0xff]
        %v924 = vld [vmem:[#allocation2 + $0x88] sm:$0xff]
        %v925 = vld [vmem:[#allocation2 + $0x90] sm:$0xff]
        %v926 = vld [vmem:[#allocation2 + $0x98] sm:$0xff]
        %v927 = vld [vmem:[#allocation2 + $0xa0] sm:$0xff]
        %v928 = vld [vmem:[#allocation2 + $0xa8] sm:$0xff]
        %v929 = vld [vmem:[#allocation2 + $0xb0] sm:$0xff]
        %v930 = vld [vmem:[#allocation2 + $0xb8] sm:$0xff]
        %v931 = vld [vmem:[#allocation2 + $0xc0] sm:$0xff]
        %v932 = vld [vmem:[#allocation2 + $0xc8] sm:$0xff]
        %v933 = vld [vmem:[#allocation2 + $0xd0] sm:$0xff]
        %v934 = vld [vmem:[#allocation2 + $0xd8] sm:$0xff]
        %v935 = vld [vmem:[#allocation2 + $0xe0] sm:$0xff]
        %v936 = vld [vmem:[#allocation2 + $0xe8] sm:$0xff]
        %v937 = vld [vmem:[#allocation2 + $0xf0] sm:$0xff]
        %v938 = vld [vmem:[#allocation2 + $0xf8] sm:$0xff]
        %s939 = scalar_lea.vmem %s1, 24
        %v940 = vld [vmem:[%s939] sm:$0xf]
        %v943 = vunpack.c.l.b16 %v244
        %v944 = vunpack.c.l.b16 %v245
        %v945 = vpack.c.b16 %v944, %v943
        %v947 = vsel %vm359, %v945, 0
        %v950 = vsel %vm408, %v940, 0
        %952 = vmatprep.subr.bf16.mxu0 0
        %953 = vmatpush1.bf16.msra.mxu0 0
        %954 = vmatprep.subr.bf16.mxu0 0
        %955 = vmatpush1.bf16.msra.mxu0 0
        %956 = vmatprep.subr.bf16.mxu0 0
        %957 = vmatpush1.bf16.msra.mxu0 0
        %958 = vmatprep.subr.bf16.mxu0 0
        %959 = vmatpush1.bf16.msra.mxu0 0
        %960 = vmatprep.subr.bf16.mxu0 0
        %961 = vmatpush1.bf16.msra.mxu0 0
        %962 = vmatprep.subr.bf16.mxu0 0
        %963 = vmatpush1.bf16.msra.mxu0 0
        %964 = vmatprep.subr.bf16.mxu0 0
        %965 = vmatpush1.bf16.msra.mxu0 0
        %966 = vmatprep.subr.bf16.mxu0 0
        %967 = vmatpush1.bf16.msra.mxu0 %v950
        %968 = vmatprep.subr.bf16.mxu0 0
        %969 = vmatpush2.bf16.msra.mxu0 0
        %970 = vmatprep.subr.bf16.mxu0 0
        %971 = vmatpush2.bf16.msra.mxu0 0
        %972 = vmatprep.subr.bf16.mxu0 0
        %973 = vmatpush2.bf16.msra.mxu0 0
        %974 = vmatprep.subr.bf16.mxu0 0
        %975 = vmatpush2.bf16.msra.mxu0 0
        %976 = vmatprep.subr.bf16.mxu0 0
        %977 = vmatpush2.bf16.msra.mxu0 0
        %978 = vmatprep.subr.bf16.mxu0 0
        %979 = vmatpush2.bf16.msra.mxu0 0
        %980 = vmatprep.subr.bf16.mxu0 0
        %981 = vmatpush2.bf16.msra.mxu0 0
        %982 = vmatprep.subr.bf16.mxu0 0
        %983 = vmatpush2.bf16.msra.mxu0 0
        %984 = vmatprep.mubr.bf16.mxu0 0
        %985 = vmatmul.mubr.bf16.gmra.mxu0 %v367
        %v986 = vpop.f32.mrf.mxu0
        %v987 = vadd.f32 0.0, %v986
        %v988 = vpop.f32.mrf.mxu0
        %v989 = vpop.f32.mrf.mxu0
        %v990 = vadd.f32 0.0, %v989
        %v991 = vpop.f32.mrf.mxu0
        %992 = vmatprep.mubr.bf16.mxu0 0
        %993 = vmatmul.mubr.bf16.gmra.mxu0 %v370
        %v994 = vpop.f32.mrf.mxu0
        %v995 = vadd.f32 0.0, %v994
        %v996 = vpop.f32.mrf.mxu0
        %v997 = vpop.f32.mrf.mxu0
        %v998 = vadd.f32 0.0, %v997
        %v999 = vpop.f32.mrf.mxu0
        %1000 = vmatprep.mubr.bf16.mxu0 0
        %1001 = vmatmul.mubr.bf16.gmra.mxu0 %v373
        %v1002 = vpop.f32.mrf.mxu0
        %v1003 = vadd.f32 0.0, %v1002
        %v1004 = vpop.f32.mrf.mxu0
        %v1005 = vpop.f32.mrf.mxu0
        %v1006 = vadd.f32 0.0, %v1005
        %v1007 = vpop.f32.mrf.mxu0
        %1008 = vmatprep.mubr.bf16.mxu0 0
        %1009 = vmatmul.mubr.bf16.gmra.mxu0 %v376
        %v1010 = vpop.f32.mrf.mxu0
        %v1011 = vadd.f32 0.0, %v1010
        %v1012 = vpop.f32.mrf.mxu0
        %v1013 = vpop.f32.mrf.mxu0
        %v1014 = vadd.f32 0.0, %v1013
        %v1015 = vpop.f32.mrf.mxu0
        %1016 = vmatprep.mubr.bf16.mxu0 0
        %1017 = vmatmul.mubr.bf16.gmra.mxu0 %v379
        %v1018 = vpop.f32.mrf.mxu0
        %v1019 = vadd.f32 0.0, %v1018
        %v1020 = vpop.f32.mrf.mxu0
        %v1021 = vpop.f32.mrf.mxu0
        %v1022 = vadd.f32 0.0, %v1021
        %v1023 = vpop.f32.mrf.mxu0
        %1024 = vmatprep.mubr.bf16.mxu0 0
        %1025 = vmatmul.mubr.bf16.gmra.mxu0 %v382
        %v1026 = vpop.f32.mrf.mxu0
        %v1027 = vadd.f32 0.0, %v1026
        %v1028 = vpop.f32.mrf.mxu0
        %v1029 = vpop.f32.mrf.mxu0
        %v1030 = vadd.f32 0.0, %v1029
        %v1031 = vpop.f32.mrf.mxu0
        %1032 = vmatprep.mubr.bf16.mxu0 0
        %1033 = vmatmul.mubr.bf16.gmra.mxu0 %v385
        %v1034 = vpop.f32.mrf.mxu0
        %v1035 = vadd.f32 0.0, %v1034
        %v1036 = vpop.f32.mrf.mxu0
        %v1037 = vpop.f32.mrf.mxu0
        %v1038 = vadd.f32 0.0, %v1037
        %v1039 = vpop.f32.mrf.mxu0
        %1040 = vmatprep.mubr.bf16.mxu0 0
        %1041 = vmatmul.mubr.bf16.gmra.mxu0 %v388
        %v1042 = vpop.f32.mrf.mxu0
        %v1043 = vadd.f32 0.0, %v1042
        %v1044 = vpop.f32.mrf.mxu0
        %v1045 = vpop.f32.mrf.mxu0
        %v1046 = vadd.f32 0.0, %v1045
        %v1047 = vpop.f32.mrf.mxu0
        %1048 = vmatprep.mubr.bf16.mxu0 0
        %1049 = vmatmul.mubr.bf16.gmra.mxu0 %v391
        %v1050 = vpop.f32.mrf.mxu0
        %v1051 = vadd.f32 0.0, %v1050
        %v1052 = vpop.f32.mrf.mxu0
        %v1053 = vpop.f32.mrf.mxu0
        %v1054 = vadd.f32 0.0, %v1053
        %v1055 = vpop.f32.mrf.mxu0
        %1056 = vmatprep.mubr.bf16.mxu0 0
        %1057 = vmatmul.mubr.bf16.gmra.mxu0 %v394
        %v1058 = vpop.f32.mrf.mxu0
        %v1059 = vadd.f32 0.0, %v1058
        %v1060 = vpop.f32.mrf.mxu0
        %v1061 = vpop.f32.mrf.mxu0
        %v1062 = vadd.f32 0.0, %v1061
        %v1063 = vpop.f32.mrf.mxu0
        %1064 = vmatprep.mubr.bf16.mxu0 0
        %1065 = vmatmul.mubr.bf16.gmra.mxu0 %v397
        %v1066 = vpop.f32.mrf.mxu0
        %v1067 = vadd.f32 0.0, %v1066
        %v1068 = vpop.f32.mrf.mxu0
        %v1069 = vpop.f32.mrf.mxu0
        %v1070 = vadd.f32 0.0, %v1069
        %v1071 = vpop.f32.mrf.mxu0
        %1072 = vmatprep.mubr.bf16.mxu0 0
        %1073 = vmatmul.mubr.bf16.gmra.mxu0 %v400
        %v1074 = vpop.f32.mrf.mxu0
        %v1075 = vadd.f32 0.0, %v1074
        %v1076 = vpop.f32.mrf.mxu0
        %v1077 = vpop.f32.mrf.mxu0
        %v1078 = vadd.f32 0.0, %v1077
        %v1079 = vpop.f32.mrf.mxu0
        %1080 = vmatprep.mubr.bf16.mxu0 0
        %1081 = vmatmul.mubr.bf16.gmra.mxu0 %v403
        %v1082 = vpop.f32.mrf.mxu0
        %v1083 = vadd.f32 0.0, %v1082
        %v1084 = vpop.f32.mrf.mxu0
        %v1085 = vpop.f32.mrf.mxu0
        %v1086 = vadd.f32 0.0, %v1085
        %v1087 = vpop.f32.mrf.mxu0
        %1088 = vmatprep.mubr.bf16.mxu0 0
        %1089 = vmatmul.mubr.bf16.gmra.mxu0 %v406
        %v1090 = vpop.f32.mrf.mxu0
        %v1091 = vadd.f32 0.0, %v1090
        %v1092 = vpop.f32.mrf.mxu0
        %v1093 = vpop.f32.mrf.mxu0
        %v1094 = vadd.f32 0.0, %v1093
        %v1095 = vpop.f32.mrf.mxu0
        %1096 = vmatprep.mubr.bf16.mxu0 0
        %1097 = vmatmul.mubr.bf16.gmra.mxu0 %v677
        %v1098 = vpop.f32.mrf.mxu0
        %v1099 = vadd.f32 0.0, %v1098
        %v1100 = vpop.f32.mrf.mxu0
        %v1101 = vpop.f32.mrf.mxu0
        %v1102 = vadd.f32 0.0, %v1101
        %v1103 = vpop.f32.mrf.mxu0
        %1104 = vmatprep.mubr.bf16.mxu0 0
        %1105 = vmatmul.mubr.bf16.gmra.mxu0 %v947
        %v1106 = vpop.f32.mrf.mxu0
        %v1107 = vadd.f32 0.0, %v1106
        %v1108 = vpop.f32.mrf.mxu0
        %v1109 = vpop.f32.mrf.mxu0
        %v1110 = vadd.f32 0.0, %v1109
        %v1111 = vpop.f32.mrf.mxu0
        %1112 = vdwg.mxu0
        %v1113 = vadd.f32 %v907, %v987
        %v1114 = vadd.f32 %v908, %v990
        %v1115 = vadd.f32 %v909, %v995
        %v1116 = vadd.f32 %v910, %v998
        %v1117 = vadd.f32 %v911, %v1003
        %v1118 = vadd.f32 %v912, %v1006
        %v1119 = vadd.f32 %v913, %v1011
        %v1120 = vadd.f32 %v914, %v1014
        %v1121 = vadd.f32 %v915, %v1019
        %v1122 = vadd.f32 %v916, %v1022
        %v1123 = vadd.f32 %v917, %v1027
        %v1124 = vadd.f32 %v918, %v1030
        %v1125 = vadd.f32 %v919, %v1035
        %v1126 = vadd.f32 %v920, %v1038
        %v1127 = vadd.f32 %v921, %v1043
        %v1128 = vadd.f32 %v922, %v1046
        %v1129 = vadd.f32 %v923, %v1051
        %v1130 = vadd.f32 %v924, %v1054
        %v1131 = vadd.f32 %v925, %v1059
        %v1132 = vadd.f32 %v926, %v1062
        %v1133 = vadd.f32 %v927, %v1067
        %v1134 = vadd.f32 %v928, %v1070
        %v1135 = vadd.f32 %v929, %v1075
        %v1136 = vadd.f32 %v930, %v1078
        %v1137 = vadd.f32 %v931, %v1083
        %v1138 = vadd.f32 %v932, %v1086
        %v1139 = vadd.f32 %v933, %v1091
        %v1140 = vadd.f32 %v934, %v1094
        %v1141 = vadd.f32 %v935, %v1099
        %v1142 = vadd.f32 %v936, %v1102
        %v1143 = vadd.f32 %v937, %v1107
        %v1144 = vadd.f32 %v938, %v1110
        %1145 = vst [vmem:[#allocation2] sm:$0xff] %v1113
        %1146 = vst [vmem:[#allocation2 + $0x8] sm:$0xff] %v1114
        %1147 = vst [vmem:[#allocation2 + $0x10] sm:$0xff] %v1115
        %1148 = vst [vmem:[#allocation2 + $0x18] sm:$0xff] %v1116
        %1149 = vst [vmem:[#allocation2 + $0x20] sm:$0xff] %v1117
        %1150 = vst [vmem:[#allocation2 + $0x28] sm:$0xff] %v1118
        %1151 = vst [vmem:[#allocation2 + $0x30] sm:$0xff] %v1119
        %1152 = vst [vmem:[#allocation2 + $0x38] sm:$0xff] %v1120
        %1153 = vst [vmem:[#allocation2 + $0x40] sm:$0xff] %v1121
        %1154 = vst [vmem:[#allocation2 + $0x48] sm:$0xff] %v1122
        %1155 = vst [vmem:[#allocation2 + $0x50] sm:$0xff] %v1123
        %1156 = vst [vmem:[#allocation2 + $0x58] sm:$0xff] %v1124
        %1157 = vst [vmem:[#allocation2 + $0x60] sm:$0xff] %v1125
        %1158 = vst [vmem:[#allocation2 + $0x68] sm:$0xff] %v1126
        %1159 = vst [vmem:[#allocation2 + $0x70] sm:$0xff] %v1127
        %1160 = vst [vmem:[#allocation2 + $0x78] sm:$0xff] %v1128
        %1161 = vst [vmem:[#allocation2 + $0x80] sm:$0xff] %v1129
        %1162 = vst [vmem:[#allocation2 + $0x88] sm:$0xff] %v1130
        %1163 = vst [vmem:[#allocation2 + $0x90] sm:$0xff] %v1131
        %1164 = vst [vmem:[#allocation2 + $0x98] sm:$0xff] %v1132
        %1165 = vst [vmem:[#allocation2 + $0xa0] sm:$0xff] %v1133
        %1166 = vst [vmem:[#allocation2 + $0xa8] sm:$0xff] %v1134
        %1167 = vst [vmem:[#allocation2 + $0xb0] sm:$0xff] %v1135
        %1168 = vst [vmem:[#allocation2 + $0xb8] sm:$0xff] %v1136
        %1169 = vst [vmem:[#allocation2 + $0xc0] sm:$0xff] %v1137
        %1170 = vst [vmem:[#allocation2 + $0xc8] sm:$0xff] %v1138
        %1171 = vst [vmem:[#allocation2 + $0xd0] sm:$0xff] %v1139
        %1172 = vst [vmem:[#allocation2 + $0xd8] sm:$0xff] %v1140
        %1173 = vst [vmem:[#allocation2 + $0xe0] sm:$0xff] %v1141
        %1174 = vst [vmem:[#allocation2 + $0xe8] sm:$0xff] %v1142
        %1175 = vst [vmem:[#allocation2 + $0xf0] sm:$0xff] %v1143
        %1176 = vst [vmem:[#allocation2 + $0xf8] sm:$0xff] %v1144
        %v1177 = vld [vmem:[%s168] sm:$0xf]
        %v1178 = vld [vmem:[%s168 + $0x4] sm:$0xf]
        %v1179 = vld [vmem:[%s168 + $0x8] sm:$0x1]
        %v1180 = vld [vmem:[%s168 + $0xc] sm:$0xf]
        %v1181 = vld [vmem:[%s168 + $0x10] sm:$0xf]
        %v1182 = vld [vmem:[%s168 + $0x14] sm:$0x1]
        %v1183 = vld [vmem:[%s168 + $0x18] sm:$0xf]
        %v1184 = vld [vmem:[%s168 + $0x1c] sm:$0xf]
        %v1185 = vld [vmem:[%s168 + $0x20] sm:$0x1]
        %v1186 = vld [vmem:[%s168 + $0x24] sm:$0xf]
        %v1187 = vld [vmem:[%s168 + $0x28] sm:$0xf]
        %v1188 = vld [vmem:[%s168 + $0x2c] sm:$0x1]
        %v1189 = vld [vmem:[%s168 + $0x30] sm:$0xf]
        %v1190 = vld [vmem:[%s168 + $0x34] sm:$0xf]
        %v1191 = vld [vmem:[%s168 + $0x38] sm:$0x1]
        %v1192 = vld [vmem:[%s168 + $0x3c] sm:$0xf]
        %v1193 = vld [vmem:[%s168 + $0x40] sm:$0xf]
        %v1194 = vld [vmem:[%s168 + $0x44] sm:$0x1]
        %v1195 = vld [vmem:[%s168 + $0x48] sm:$0xf]
        %v1196 = vld [vmem:[%s168 + $0x4c] sm:$0xf]
        %v1197 = vld [vmem:[%s168 + $0x50] sm:$0x1]
        %v1198 = vld [vmem:[%s168 + $0x54] sm:$0xf]
        %v1199 = vld [vmem:[%s168 + $0x58] sm:$0xf]
        %v1200 = vld [vmem:[%s168 + $0x5c] sm:$0x1]
        %v1201 = vld [vmem:[%s168 + $0x60] sm:$0xf]
        %v1202 = vld [vmem:[%s168 + $0x64] sm:$0xf]
        %v1203 = vld [vmem:[%s168 + $0x68] sm:$0x1]
        %v1204 = vld [vmem:[%s168 + $0x6c] sm:$0xf]
        %v1205 = vld [vmem:[%s168 + $0x70] sm:$0xf]
        %v1206 = vld [vmem:[%s168 + $0x74] sm:$0x1]
        %v1207 = vld [vmem:[%s168 + $0x78] sm:$0xf]
        %v1208 = vld [vmem:[%s168 + $0x7c] sm:$0xf]
        %v1209 = vld [vmem:[%s168 + $0x80] sm:$0x1]
        %v1210 = vld [vmem:[%s168 + $0x84] sm:$0xf]
        %v1211 = vld [vmem:[%s168 + $0x88] sm:$0xf]
        %v1212 = vld [vmem:[%s168 + $0x8c] sm:$0x1]
        %v1213 = vld [vmem:[%s168 + $0x90] sm:$0xf]
        %v1214 = vld [vmem:[%s168 + $0x94] sm:$0xf]
        %v1215 = vld [vmem:[%s168 + $0x98] sm:$0x1]
        %v1216 = vld [vmem:[%s168 + $0x9c] sm:$0xf]
        %v1217 = vld [vmem:[%s168 + $0xa0] sm:$0xf]
        %v1218 = vld [vmem:[%s168 + $0xa4] sm:$0x1]
        %v1219 = vld [vmem:[%s168 + $0xa8] sm:$0xf]
        %v1220 = vld [vmem:[%s168 + $0xac] sm:$0xf]
        %v1221 = vld [vmem:[%s168 + $0xb0] sm:$0x1]
        %v1222 = vld [vmem:[%s168 + $0xb4] sm:$0xf]
        %v1223 = vld [vmem:[%s168 + $0xb8] sm:$0xf]
        %v1224 = vld [vmem:[%s168 + $0xbc] sm:$0x1]
        %v1225 = vld [vmem:[%s168 + $0xc0] sm:$0xf]
        %v1226 = vld [vmem:[%s168 + $0xc4] sm:$0xf]
        %v1227 = vld [vmem:[%s168 + $0xc8] sm:$0x1]
        %v1228 = vld [vmem:[%s168 + $0xcc] sm:$0xf]
        %v1229 = vld [vmem:[%s168 + $0xd0] sm:$0xf]
        %v1230 = vld [vmem:[%s168 + $0xd4] sm:$0x1]
        %vm1231 = vsmask.f32 3328
        %vm1232 = vsmask.f32 7440
        %vm1233 = vmor %vm1231, %vm1232
        %v1235 = vshrl.u32 %v1177, 16
        %v1237 = vrot.slane %v1235, 4
        %v1238 = vshll.u32 %v1177, 16
        %v1240 = vrot.slane %v1238, 5
        %v1241 = vor.u32 %v1237, %v1240
        %v1242 = vrot.slane %v1241, 4
        %v1244 = vshll.u32 %v1178, 16
        %v1246 = vrot.slane %v1244, 5
        %v1247 = vsel %vm1233, %v1242, %v1246
        %v1248 = vshrl.u32 %v1178, 16
        %v1250 = vrot.slane %v1248, 4
        %v1251 = vor.u32 %v1250, %v1246
        %v1252 = vrot.slane %v1251, 4
        %v1254 = vshll.u32 %v1179, 16
        %v1256 = vrot.slane %v1254, 5
        %v1257 = vsel %vm1233, %v1252, %v1256
        %v1259 = vshrl.u32 %v1180, 16
        %v1261 = vrot.slane %v1259, 4
        %v1262 = vshll.u32 %v1180, 16
        %v1264 = vrot.slane %v1262, 5
        %v1265 = vor.u32 %v1261, %v1264
        %v1266 = vrot.slane %v1265, 4
        %v1268 = vshll.u32 %v1181, 16
        %v1270 = vrot.slane %v1268, 5
        %v1271 = vsel %vm1233, %v1266, %v1270
        %v1272 = vshrl.u32 %v1181, 16
        %v1274 = vrot.slane %v1272, 4
        %v1275 = vor.u32 %v1274, %v1270
        %v1276 = vrot.slane %v1275, 4
        %v1278 = vshll.u32 %v1182, 16
        %v1280 = vrot.slane %v1278, 5
        %v1281 = vsel %vm1233, %v1276, %v1280
        %v1283 = vshrl.u32 %v1183, 16
        %v1285 = vrot.slane %v1283, 4
        %v1286 = vshll.u32 %v1183, 16
        %v1288 = vrot.slane %v1286, 5
        %v1289 = vor.u32 %v1285, %v1288
        %v1290 = vrot.slane %v1289, 4
        %v1292 = vshll.u32 %v1184, 16
        %v1294 = vrot.slane %v1292, 5
        %v1295 = vsel %vm1233, %v1290, %v1294
        %v1296 = vshrl.u32 %v1184, 16
        %v1298 = vrot.slane %v1296, 4
        %v1299 = vor.u32 %v1298, %v1294
        %v1300 = vrot.slane %v1299, 4
        %v1302 = vshll.u32 %v1185, 16
        %v1304 = vrot.slane %v1302, 5
        %v1305 = vsel %vm1233, %v1300, %v1304
        %v1307 = vshrl.u32 %v1186, 16
        %v1309 = vrot.slane %v1307, 4
        %v1310 = vshll.u32 %v1186, 16
        %v1312 = vrot.slane %v1310, 5
        %v1313 = vor.u32 %v1309, %v1312
        %v1314 = vrot.slane %v1313, 4
        %v1316 = vshll.u32 %v1187, 16
        %v1318 = vrot.slane %v1316, 5
        %v1319 = vsel %vm1233, %v1314, %v1318
        %v1320 = vshrl.u32 %v1187, 16
        %v1322 = vrot.slane %v1320, 4
        %v1323 = vor.u32 %v1322, %v1318
        %v1324 = vrot.slane %v1323, 4
        %v1326 = vshll.u32 %v1188, 16
        %v1328 = vrot.slane %v1326, 5
        %v1329 = vsel %vm1233, %v1324, %v1328
        %v1331 = vshrl.u32 %v1189, 16
        %v1333 = vrot.slane %v1331, 4
        %v1334 = vshll.u32 %v1189, 16
        %v1336 = vrot.slane %v1334, 5
        %v1337 = vor.u32 %v1333, %v1336
        %v1338 = vrot.slane %v1337, 4
        %v1340 = vshll.u32 %v1190, 16
        %v1342 = vrot.slane %v1340, 5
        %v1343 = vsel %vm1233, %v1338, %v1342
        %v1344 = vshrl.u32 %v1190, 16
        %v1346 = vrot.slane %v1344, 4
        %v1347 = vor.u32 %v1346, %v1342
        %v1348 = vrot.slane %v1347, 4
        %v1350 = vshll.u32 %v1191, 16
        %v1352 = vrot.slane %v1350, 5
        %v1353 = vsel %vm1233, %v1348, %v1352
        %v1355 = vshrl.u32 %v1192, 16
        %v1357 = vrot.slane %v1355, 4
        %v1358 = vshll.u32 %v1192, 16
        %v1360 = vrot.slane %v1358, 5
        %v1361 = vor.u32 %v1357, %v1360
        %v1362 = vrot.slane %v1361, 4
        %v1364 = vshll.u32 %v1193, 16
        %v1366 = vrot.slane %v1364, 5
        %v1367 = vsel %vm1233, %v1362, %v1366
        %v1368 = vshrl.u32 %v1193, 16
        %v1370 = vrot.slane %v1368, 4
        %v1371 = vor.u32 %v1370, %v1366
        %v1372 = vrot.slane %v1371, 4
        %v1374 = vshll.u32 %v1194, 16
        %v1376 = vrot.slane %v1374, 5
        %v1377 = vsel %vm1233, %v1372, %v1376
        %v1379 = vshrl.u32 %v1195, 16
        %v1381 = vrot.slane %v1379, 4
        %v1382 = vshll.u32 %v1195, 16
        %v1384 = vrot.slane %v1382, 5
        %v1385 = vor.u32 %v1381, %v1384
        %v1386 = vrot.slane %v1385, 4
        %v1388 = vshll.u32 %v1196, 16
        %v1390 = vrot.slane %v1388, 5
        %v1391 = vsel %vm1233, %v1386, %v1390
        %v1392 = vshrl.u32 %v1196, 16
        %v1394 = vrot.slane %v1392, 4
        %v1395 = vor.u32 %v1394, %v1390
        %v1396 = vrot.slane %v1395, 4
        %v1398 = vshll.u32 %v1197, 16
        %v1400 = vrot.slane %v1398, 5
        %v1401 = vsel %vm1233, %v1396, %v1400
        %v1403 = vshrl.u32 %v1198, 16
        %v1405 = vrot.slane %v1403, 4
        %v1406 = vshll.u32 %v1198, 16
        %v1408 = vrot.slane %v1406, 5
        %v1409 = vor.u32 %v1405, %v1408
        %v1410 = vrot.slane %v1409, 4
        %v1412 = vshll.u32 %v1199, 16
        %v1414 = vrot.slane %v1412, 5
        %v1415 = vsel %vm1233, %v1410, %v1414
        %v1416 = vshrl.u32 %v1199, 16
        %v1418 = vrot.slane %v1416, 4
        %v1419 = vor.u32 %v1418, %v1414
        %v1420 = vrot.slane %v1419, 4
        %v1422 = vshll.u32 %v1200, 16
        %v1424 = vrot.slane %v1422, 5
        %v1425 = vsel %vm1233, %v1420, %v1424
        %v1427 = vshrl.u32 %v1201, 16
        %v1429 = vrot.slane %v1427, 4
        %v1430 = vshll.u32 %v1201, 16
        %v1432 = vrot.slane %v1430, 5
        %v1433 = vor.u32 %v1429, %v1432
        %v1434 = vrot.slane %v1433, 4
        %v1436 = vshll.u32 %v1202, 16
        %v1438 = vrot.slane %v1436, 5
        %v1439 = vsel %vm1233, %v1434, %v1438
        %v1440 = vshrl.u32 %v1202, 16
        %v1442 = vrot.slane %v1440, 4
        %v1443 = vor.u32 %v1442, %v1438
        %v1444 = vrot.slane %v1443, 4
        %v1446 = vshll.u32 %v1203, 16
        %v1448 = vrot.slane %v1446, 5
        %v1449 = vsel %vm1233, %v1444, %v1448
        %v1451 = vshrl.u32 %v1204, 16
        %v1453 = vrot.slane %v1451, 4
        %v1454 = vshll.u32 %v1204, 16
        %v1456 = vrot.slane %v1454, 5
        %v1457 = vor.u32 %v1453, %v1456
        %v1458 = vrot.slane %v1457, 4
        %v1460 = vshll.u32 %v1205, 16
        %v1462 = vrot.slane %v1460, 5
        %v1463 = vsel %vm1233, %v1458, %v1462
        %v1464 = vshrl.u32 %v1205, 16
        %v1466 = vrot.slane %v1464, 4
        %v1467 = vor.u32 %v1466, %v1462
        %v1468 = vrot.slane %v1467, 4
        %v1470 = vshll.u32 %v1206, 16
        %v1472 = vrot.slane %v1470, 5
        %v1473 = vsel %vm1233, %v1468, %v1472
        %v1475 = vshrl.u32 %v1207, 16
        %v1477 = vrot.slane %v1475, 4
        %v1478 = vshll.u32 %v1207, 16
        %v1480 = vrot.slane %v1478, 5
        %v1481 = vor.u32 %v1477, %v1480
        %v1482 = vrot.slane %v1481, 4
        %v1484 = vshll.u32 %v1208, 16
        %v1486 = vrot.slane %v1484, 5
        %v1487 = vsel %vm1233, %v1482, %v1486
        %v1488 = vshrl.u32 %v1208, 16
        %v1490 = vrot.slane %v1488, 4
        %v1491 = vor.u32 %v1490, %v1486
        %v1492 = vrot.slane %v1491, 4
        %v1494 = vshll.u32 %v1209, 16
        %v1496 = vrot.slane %v1494, 5
        %v1497 = vsel %vm1233, %v1492, %v1496
        %v1499 = vshrl.u32 %v1210, 16
        %v1501 = vrot.slane %v1499, 4
        %v1502 = vshll.u32 %v1210, 16
        %v1504 = vrot.slane %v1502, 5
        %v1505 = vor.u32 %v1501, %v1504
        %v1506 = vrot.slane %v1505, 4
        %v1508 = vshll.u32 %v1211, 16
        %v1510 = vrot.slane %v1508, 5
        %v1511 = vsel %vm1233, %v1506, %v1510
        %v1512 = vshrl.u32 %v1211, 16
        %v1514 = vrot.slane %v1512, 4
        %v1515 = vor.u32 %v1514, %v1510
        %v1516 = vrot.slane %v1515, 4
        %v1518 = vshll.u32 %v1212, 16
        %v1520 = vrot.slane %v1518, 5
        %v1521 = vsel %vm1233, %v1516, %v1520
        %v1523 = vshrl.u32 %v1213, 16
        %v1525 = vrot.slane %v1523, 4
        %v1526 = vshll.u32 %v1213, 16
        %v1528 = vrot.slane %v1526, 5
        %v1529 = vor.u32 %v1525, %v1528
        %v1530 = vrot.slane %v1529, 4
        %v1532 = vshll.u32 %v1214, 16
        %v1534 = vrot.slane %v1532, 5
        %v1535 = vsel %vm1233, %v1530, %v1534
        %v1536 = vshrl.u32 %v1214, 16
        %v1538 = vrot.slane %v1536, 4
        %v1539 = vor.u32 %v1538, %v1534
        %v1540 = vrot.slane %v1539, 4
        %v1542 = vshll.u32 %v1215, 16
        %v1544 = vrot.slane %v1542, 5
        %v1545 = vsel %vm1233, %v1540, %v1544
        %v1547 = vshrl.u32 %v1216, 16
        %v1549 = vrot.slane %v1547, 4
        %v1550 = vshll.u32 %v1216, 16
        %v1552 = vrot.slane %v1550, 5
        %v1553 = vor.u32 %v1549, %v1552
        %v1554 = vrot.slane %v1553, 4
        %v1556 = vshll.u32 %v1217, 16
        %v1558 = vrot.slane %v1556, 5
        %v1559 = vsel %vm1233, %v1554, %v1558
        %v1560 = vshrl.u32 %v1217, 16
        %v1562 = vrot.slane %v1560, 4
        %v1563 = vor.u32 %v1562, %v1558
        %v1564 = vrot.slane %v1563, 4
        %v1566 = vshll.u32 %v1218, 16
        %v1568 = vrot.slane %v1566, 5
        %v1569 = vsel %vm1233, %v1564, %v1568
        %v1571 = vshrl.u32 %v1219, 16
        %v1573 = vrot.slane %v1571, 4
        %v1574 = vshll.u32 %v1219, 16
        %v1576 = vrot.slane %v1574, 5
        %v1577 = vor.u32 %v1573, %v1576
        %v1578 = vrot.slane %v1577, 4
        %v1580 = vshll.u32 %v1220, 16
        %v1582 = vrot.slane %v1580, 5
        %v1583 = vsel %vm1233, %v1578, %v1582
        %v1584 = vshrl.u32 %v1220, 16
        %v1586 = vrot.slane %v1584, 4
        %v1587 = vor.u32 %v1586, %v1582
        %v1588 = vrot.slane %v1587, 4
        %v1590 = vshll.u32 %v1221, 16
        %v1592 = vrot.slane %v1590, 5
        %v1593 = vsel %vm1233, %v1588, %v1592
        %v1595 = vshrl.u32 %v1222, 16
        %v1597 = vrot.slane %v1595, 4
        %v1598 = vshll.u32 %v1222, 16
        %v1600 = vrot.slane %v1598, 5
        %v1601 = vor.u32 %v1597, %v1600
        %v1602 = vrot.slane %v1601, 4
        %v1604 = vshll.u32 %v1223, 16
        %v1606 = vrot.slane %v1604, 5
        %v1607 = vsel %vm1233, %v1602, %v1606
        %v1608 = vshrl.u32 %v1223, 16
        %v1610 = vrot.slane %v1608, 4
        %v1611 = vor.u32 %v1610, %v1606
        %v1612 = vrot.slane %v1611, 4
        %v1614 = vshll.u32 %v1224, 16
        %v1616 = vrot.slane %v1614, 5
        %v1617 = vsel %vm1233, %v1612, %v1616
        %v1618 = vld [vmem:[#allocation2] sm:$0xff]
        %v1619 = vld [vmem:[#allocation2 + $0x8] sm:$0xff]
        %v1620 = vld [vmem:[#allocation2 + $0x10] sm:$0xff]
        %v1621 = vld [vmem:[#allocation2 + $0x18] sm:$0xff]
        %v1622 = vld [vmem:[#allocation2 + $0x20] sm:$0xff]
        %v1623 = vld [vmem:[#allocation2 + $0x28] sm:$0xff]
        %v1624 = vld [vmem:[#allocation2 + $0x30] sm:$0xff]
        %v1625 = vld [vmem:[#allocation2 + $0x38] sm:$0xff]
        %v1626 = vld [vmem:[#allocation2 + $0x40] sm:$0xff]
        %v1627 = vld [vmem:[#allocation2 + $0x48] sm:$0xff]
        %v1628 = vld [vmem:[#allocation2 + $0x50] sm:$0xff]
        %v1629 = vld [vmem:[#allocation2 + $0x58] sm:$0xff]
        %v1630 = vld [vmem:[#allocation2 + $0x60] sm:$0xff]
        %v1631 = vld [vmem:[#allocation2 + $0x68] sm:$0xff]
        %v1632 = vld [vmem:[#allocation2 + $0x70] sm:$0xff]
        %v1633 = vld [vmem:[#allocation2 + $0x78] sm:$0xff]
        %v1634 = vld [vmem:[#allocation2 + $0x80] sm:$0xff]
        %v1635 = vld [vmem:[#allocation2 + $0x88] sm:$0xff]
        %v1636 = vld [vmem:[#allocation2 + $0x90] sm:$0xff]
        %v1637 = vld [vmem:[#allocation2 + $0x98] sm:$0xff]
        %v1638 = vld [vmem:[#allocation2 + $0xa0] sm:$0xff]
        %v1639 = vld [vmem:[#allocation2 + $0xa8] sm:$0xff]
        %v1640 = vld [vmem:[#allocation2 + $0xb0] sm:$0xff]
        %v1641 = vld [vmem:[#allocation2 + $0xb8] sm:$0xff]
        %v1642 = vld [vmem:[#allocation2 + $0xc0] sm:$0xff]
        %v1643 = vld [vmem:[#allocation2 + $0xc8] sm:$0xff]
        %v1644 = vld [vmem:[#allocation2 + $0xd0] sm:$0xff]
        %v1645 = vld [vmem:[#allocation2 + $0xd8] sm:$0xff]
        %v1646 = vld [vmem:[#allocation2 + $0xe0] sm:$0xff]
        %v1647 = vld [vmem:[#allocation2 + $0xe8] sm:$0xff]
        %v1648 = vld [vmem:[#allocation2 + $0xf0] sm:$0xff]
        %v1649 = vld [vmem:[#allocation2 + $0xf8] sm:$0xff]
        %s1650 = scalar_lea.vmem %s1, 4
        %v1651 = vld [vmem:[%s1650] sm:$0xf]
        %v1652 = vunpack.c.l.b16 %v1247
        %v1653 = vunpack.c.l.b16 %v1257
        %v1654 = vunpack.c.l.b16 %v1271
        %v1655 = vunpack.c.l.b16 %v1281
        %v1656 = vunpack.c.l.b16 %v1295
        %v1657 = vunpack.c.l.b16 %v1305
        %v1658 = vunpack.c.l.b16 %v1319
        %v1659 = vunpack.c.l.b16 %v1329
        %v1660 = vunpack.c.l.b16 %v1343
        %v1661 = vunpack.c.l.b16 %v1353
        %v1662 = vunpack.c.l.b16 %v1367
        %v1663 = vunpack.c.l.b16 %v1377
        %v1664 = vunpack.c.l.b16 %v1391
        %v1665 = vunpack.c.l.b16 %v1401
        %v1666 = vunpack.c.l.b16 %v1415
        %v1667 = vunpack.c.l.b16 %v1425
        %v1668 = vunpack.c.l.b16 %v1439
        %v1669 = vunpack.c.l.b16 %v1449
        %v1670 = vunpack.c.l.b16 %v1463
        %v1671 = vunpack.c.l.b16 %v1473
        %v1672 = vunpack.c.l.b16 %v1487
        %v1673 = vunpack.c.l.b16 %v1497
        %v1674 = vunpack.c.l.b16 %v1511
        %v1675 = vunpack.c.l.b16 %v1521
        %v1676 = vunpack.c.l.b16 %v1535
        %v1677 = vunpack.c.l.b16 %v1545
        %v1678 = vunpack.c.l.b16 %v1559
        %v1679 = vunpack.c.l.b16 %v1569
        %v1680 = vunpack.c.l.b16 %v1583
        %v1681 = vunpack.c.l.b16 %v1593
        %v1682 = vunpack.c.l.b16 %v1607
        %v1683 = vunpack.c.l.b16 %v1617
        %v1684 = vpack.c.b16 %v1653, %v1652
        %v1685 = vpack.c.b16 %v1655, %v1654
        %v1686 = vpack.c.b16 %v1657, %v1656
        %v1687 = vpack.c.b16 %v1659, %v1658
        %v1688 = vpack.c.b16 %v1661, %v1660
        %v1689 = vpack.c.b16 %v1663, %v1662
        %v1690 = vpack.c.b16 %v1665, %v1664
        %v1691 = vpack.c.b16 %v1667, %v1666
        %v1692 = vpack.c.b16 %v1669, %v1668
        %v1693 = vpack.c.b16 %v1671, %v1670
        %v1694 = vpack.c.b16 %v1673, %v1672
        %v1695 = vpack.c.b16 %v1675, %v1674
        %v1696 = vpack.c.b16 %v1677, %v1676
        %v1697 = vpack.c.b16 %v1679, %v1678
        %v1698 = vpack.c.b16 %v1681, %v1680
        %v1699 = vpack.c.b16 %v1683, %v1682
        %v1701 = vsel %vm359, %v1684, 0
        %v1704 = vsel %vm359, %v1685, 0
        %v1707 = vsel %vm359, %v1686, 0
        %v1710 = vsel %vm359, %v1687, 0
        %v1713 = vsel %vm359, %v1688, 0
        %v1716 = vsel %vm359, %v1689, 0
        %v1719 = vsel %vm359, %v1690, 0
        %v1722 = vsel %vm359, %v1691, 0
        %v1725 = vsel %vm359, %v1692, 0
        %v1728 = vsel %vm359, %v1693, 0
        %v1731 = vsel %vm359, %v1694, 0
        %v1734 = vsel %vm359, %v1695, 0
        %v1737 = vsel %vm359, %v1696, 0
        %v1740 = vsel %vm359, %v1697, 0
        %v1743 = vsel %vm359, %v1698, 0
        %v1746 = vsel %vm359, %v1699, 0
        %v1749 = vsel %vm408, %v1651, 0
        %1751 = vmatprep.subr.bf16.mxu0 0
        %1752 = vmatpush1.bf16.msra.mxu0 0
        %1753 = vmatprep.subr.bf16.mxu0 0
        %1754 = vmatpush1.bf16.msra.mxu0 0
        %1755 = vmatprep.subr.bf16.mxu0 0
        %1756 = vmatpush1.bf16.msra.mxu0 0
        %1757 = vmatprep.subr.bf16.mxu0 0
        %1758 = vmatpush1.bf16.msra.mxu0 0
        %1759 = vmatprep.subr.bf16.mxu0 0
        %1760 = vmatpush1.bf16.msra.mxu0 0
        %1761 = vmatprep.subr.bf16.mxu0 0
        %1762 = vmatpush1.bf16.msra.mxu0 0
        %1763 = vmatprep.subr.bf16.mxu0 0
        %1764 = vmatpush1.bf16.msra.mxu0 0
        %1765 = vmatprep.subr.bf16.mxu0 0
        %1766 = vmatpush1.bf16.msra.mxu0 %v1749
        %1767 = vmatprep.subr.bf16.mxu0 0
        %1768 = vmatpush2.bf16.msra.mxu0 0
        %1769 = vmatprep.subr.bf16.mxu0 0
        %1770 = vmatpush2.bf16.msra.mxu0 0
        %1771 = vmatprep.subr.bf16.mxu0 0
        %1772 = vmatpush2.bf16.msra.mxu0 0
        %1773 = vmatprep.subr.bf16.mxu0 0
        %1774 = vmatpush2.bf16.msra.mxu0 0
        %1775 = vmatprep.subr.bf16.mxu0 0
        %1776 = vmatpush2.bf16.msra.mxu0 0
        %1777 = vmatprep.subr.bf16.mxu0 0
        %1778 = vmatpush2.bf16.msra.mxu0 0
        %1779 = vmatprep.subr.bf16.mxu0 0
        %1780 = vmatpush2.bf16.msra.mxu0 0
        %1781 = vmatprep.subr.bf16.mxu0 0
        %1782 = vmatpush2.bf16.msra.mxu0 0
        %1783 = vmatprep.mubr.bf16.mxu0 0
        %1784 = vmatmul.mubr.bf16.gmra.mxu0 %v1701
        %v1785 = vpop.f32.mrf.mxu0
        %v1786 = vadd.f32 0.0, %v1785
        %v1787 = vpop.f32.mrf.mxu0
        %v1788 = vpop.f32.mrf.mxu0
        %v1789 = vadd.f32 0.0, %v1788
        %v1790 = vpop.f32.mrf.mxu0
        %1791 = vmatprep.mubr.bf16.mxu0 0
        %1792 = vmatmul.mubr.bf16.gmra.mxu0 %v1704
        %v1793 = vpop.f32.mrf.mxu0
        %v1794 = vadd.f32 0.0, %v1793
        %v1795 = vpop.f32.mrf.mxu0
        %v1796 = vpop.f32.mrf.mxu0
        %v1797 = vadd.f32 0.0, %v1796
        %v1798 = vpop.f32.mrf.mxu0
        %1799 = vmatprep.mubr.bf16.mxu0 0
        %1800 = vmatmul.mubr.bf16.gmra.mxu0 %v1707
        %v1801 = vpop.f32.mrf.mxu0
        %v1802 = vadd.f32 0.0, %v1801
        %v1803 = vpop.f32.mrf.mxu0
        %v1804 = vpop.f32.mrf.mxu0
        %v1805 = vadd.f32 0.0, %v1804
        %v1806 = vpop.f32.mrf.mxu0
        %1807 = vmatprep.mubr.bf16.mxu0 0
        %1808 = vmatmul.mubr.bf16.gmra.mxu0 %v1710
        %v1809 = vpop.f32.mrf.mxu0
        %v1810 = vadd.f32 0.0, %v1809
        %v1811 = vpop.f32.mrf.mxu0
        %v1812 = vpop.f32.mrf.mxu0
        %v1813 = vadd.f32 0.0, %v1812
        %v1814 = vpop.f32.mrf.mxu0
        %1815 = vmatprep.mubr.bf16.mxu0 0
        %1816 = vmatmul.mubr.bf16.gmra.mxu0 %v1713
        %v1817 = vpop.f32.mrf.mxu0
        %v1818 = vadd.f32 0.0, %v1817
        %v1819 = vpop.f32.mrf.mxu0
        %v1820 = vpop.f32.mrf.mxu0
        %v1821 = vadd.f32 0.0, %v1820
        %v1822 = vpop.f32.mrf.mxu0
        %1823 = vmatprep.mubr.bf16.mxu0 0
        %1824 = vmatmul.mubr.bf16.gmra.mxu0 %v1716
        %v1825 = vpop.f32.mrf.mxu0
        %v1826 = vadd.f32 0.0, %v1825
        %v1827 = vpop.f32.mrf.mxu0
        %v1828 = vpop.f32.mrf.mxu0
        %v1829 = vadd.f32 0.0, %v1828
        %v1830 = vpop.f32.mrf.mxu0
        %1831 = vmatprep.mubr.bf16.mxu0 0
        %1832 = vmatmul.mubr.bf16.gmra.mxu0 %v1719
        %v1833 = vpop.f32.mrf.mxu0
        %v1834 = vadd.f32 0.0, %v1833
        %v1835 = vpop.f32.mrf.mxu0
        %v1836 = vpop.f32.mrf.mxu0
        %v1837 = vadd.f32 0.0, %v1836
        %v1838 = vpop.f32.mrf.mxu0
        %1839 = vmatprep.mubr.bf16.mxu0 0
        %1840 = vmatmul.mubr.bf16.gmra.mxu0 %v1722
        %v1841 = vpop.f32.mrf.mxu0
        %v1842 = vadd.f32 0.0, %v1841
        %v1843 = vpop.f32.mrf.mxu0
        %v1844 = vpop.f32.mrf.mxu0
        %v1845 = vadd.f32 0.0, %v1844
        %v1846 = vpop.f32.mrf.mxu0
        %1847 = vmatprep.mubr.bf16.mxu0 0
        %1848 = vmatmul.mubr.bf16.gmra.mxu0 %v1725
        %v1849 = vpop.f32.mrf.mxu0
        %v1850 = vadd.f32 0.0, %v1849
        %v1851 = vpop.f32.mrf.mxu0
        %v1852 = vpop.f32.mrf.mxu0
        %v1853 = vadd.f32 0.0, %v1852
        %v1854 = vpop.f32.mrf.mxu0
        %1855 = vmatprep.mubr.bf16.mxu0 0
        %1856 = vmatmul.mubr.bf16.gmra.mxu0 %v1728
        %v1857 = vpop.f32.mrf.mxu0
        %v1858 = vadd.f32 0.0, %v1857
        %v1859 = vpop.f32.mrf.mxu0
        %v1860 = vpop.f32.mrf.mxu0
        %v1861 = vadd.f32 0.0, %v1860
        %v1862 = vpop.f32.mrf.mxu0
        %1863 = vmatprep.mubr.bf16.mxu0 0
        %1864 = vmatmul.mubr.bf16.gmra.mxu0 %v1731
        %v1865 = vpop.f32.mrf.mxu0
        %v1866 = vadd.f32 0.0, %v1865
        %v1867 = vpop.f32.mrf.mxu0
        %v1868 = vpop.f32.mrf.mxu0
        %v1869 = vadd.f32 0.0, %v1868
        %v1870 = vpop.f32.mrf.mxu0
        %1871 = vmatprep.mubr.bf16.mxu0 0
        %1872 = vmatmul.mubr.bf16.gmra.mxu0 %v1734
        %v1873 = vpop.f32.mrf.mxu0
        %v1874 = vadd.f32 0.0, %v1873
        %v1875 = vpop.f32.mrf.mxu0
        %v1876 = vpop.f32.mrf.mxu0
        %v1877 = vadd.f32 0.0, %v1876
        %v1878 = vpop.f32.mrf.mxu0
        %1879 = vmatprep.mubr.bf16.mxu0 0
        %1880 = vmatmul.mubr.bf16.gmra.mxu0 %v1737
        %v1881 = vpop.f32.mrf.mxu0
        %v1882 = vadd.f32 0.0, %v1881
        %v1883 = vpop.f32.mrf.mxu0
        %v1884 = vpop.f32.mrf.mxu0
        %v1885 = vadd.f32 0.0, %v1884
        %v1886 = vpop.f32.mrf.mxu0
        %1887 = vmatprep.mubr.bf16.mxu0 0
        %1888 = vmatmul.mubr.bf16.gmra.mxu0 %v1740
        %v1889 = vpop.f32.mrf.mxu0
        %v1890 = vadd.f32 0.0, %v1889
        %v1891 = vpop.f32.mrf.mxu0
        %v1892 = vpop.f32.mrf.mxu0
        %v1893 = vadd.f32 0.0, %v1892
        %v1894 = vpop.f32.mrf.mxu0
        %1895 = vmatprep.mubr.bf16.mxu0 0
        %1896 = vmatmul.mubr.bf16.gmra.mxu0 %v1743
        %v1897 = vpop.f32.mrf.mxu0
        %v1898 = vadd.f32 0.0, %v1897
        %v1899 = vpop.f32.mrf.mxu0
        %v1900 = vpop.f32.mrf.mxu0
        %v1901 = vadd.f32 0.0, %v1900
        %v1902 = vpop.f32.mrf.mxu0
        %1903 = vmatprep.mubr.bf16.mxu0 0
        %1904 = vmatmul.mubr.bf16.gmra.mxu0 %v1746
        %v1905 = vpop.f32.mrf.mxu0
        %v1906 = vadd.f32 0.0, %v1905
        %v1907 = vpop.f32.mrf.mxu0
        %v1908 = vpop.f32.mrf.mxu0
        %v1909 = vadd.f32 0.0, %v1908
        %v1910 = vpop.f32.mrf.mxu0
        %1911 = vdwg.mxu0
        %v1912 = vadd.f32 %v1618, %v1786
        %v1913 = vadd.f32 %v1619, %v1789
        %v1914 = vadd.f32 %v1620, %v1794
        %v1915 = vadd.f32 %v1621, %v1797
        %v1916 = vadd.f32 %v1622, %v1802
        %v1917 = vadd.f32 %v1623, %v1805
        %v1918 = vadd.f32 %v1624, %v1810
        %v1919 = vadd.f32 %v1625, %v1813
        %v1920 = vadd.f32 %v1626, %v1818
        %v1921 = vadd.f32 %v1627, %v1821
        %v1922 = vadd.f32 %v1628, %v1826
        %v1923 = vadd.f32 %v1629, %v1829
        %v1924 = vadd.f32 %v1630, %v1834
        %v1925 = vadd.f32 %v1631, %v1837
        %v1926 = vadd.f32 %v1632, %v1842
        %v1927 = vadd.f32 %v1633, %v1845
        %v1928 = vadd.f32 %v1634, %v1850
        %v1929 = vadd.f32 %v1635, %v1853
        %v1930 = vadd.f32 %v1636, %v1858
        %v1931 = vadd.f32 %v1637, %v1861
        %v1932 = vadd.f32 %v1638, %v1866
        %v1933 = vadd.f32 %v1639, %v1869
        %v1934 = vadd.f32 %v1640, %v1874
        %v1935 = vadd.f32 %v1641, %v1877
        %v1936 = vadd.f32 %v1642, %v1882
        %v1937 = vadd.f32 %v1643, %v1885
        %v1938 = vadd.f32 %v1644, %v1890
        %v1939 = vadd.f32 %v1645, %v1893
        %v1940 = vadd.f32 %v1646, %v1898
        %v1941 = vadd.f32 %v1647, %v1901
        %v1942 = vadd.f32 %v1648, %v1906
        %v1943 = vadd.f32 %v1649, %v1909
        %1944 = vst [vmem:[#allocation2] sm:$0xff] %v1912
        %1945 = vst [vmem:[#allocation2 + $0x8] sm:$0xff] %v1913
        %1946 = vst [vmem:[#allocation2 + $0x10] sm:$0xff] %v1914
        %1947 = vst [vmem:[#allocation2 + $0x18] sm:$0xff] %v1915
        %1948 = vst [vmem:[#allocation2 + $0x20] sm:$0xff] %v1916
        %1949 = vst [vmem:[#allocation2 + $0x28] sm:$0xff] %v1917
        %1950 = vst [vmem:[#allocation2 + $0x30] sm:$0xff] %v1918
        %1951 = vst [vmem:[#allocation2 + $0x38] sm:$0xff] %v1919
        %1952 = vst [vmem:[#allocation2 + $0x40] sm:$0xff] %v1920
        %1953 = vst [vmem:[#allocation2 + $0x48] sm:$0xff] %v1921
        %1954 = vst [vmem:[#allocation2 + $0x50] sm:$0xff] %v1922
        %1955 = vst [vmem:[#allocation2 + $0x58] sm:$0xff] %v1923
        %1956 = vst [vmem:[#allocation2 + $0x60] sm:$0xff] %v1924
        %1957 = vst [vmem:[#allocation2 + $0x68] sm:$0xff] %v1925
        %1958 = vst [vmem:[#allocation2 + $0x70] sm:$0xff] %v1926
        %1959 = vst [vmem:[#allocation2 + $0x78] sm:$0xff] %v1927
        %1960 = vst [vmem:[#allocation2 + $0x80] sm:$0xff] %v1928
        %1961 = vst [vmem:[#allocation2 + $0x88] sm:$0xff] %v1929
        %1962 = vst [vmem:[#allocation2 + $0x90] sm:$0xff] %v1930
        %1963 = vst [vmem:[#allocation2 + $0x98] sm:$0xff] %v1931
        %1964 = vst [vmem:[#allocation2 + $0xa0] sm:$0xff] %v1932
        %1965 = vst [vmem:[#allocation2 + $0xa8] sm:$0xff] %v1933
        %1966 = vst [vmem:[#allocation2 + $0xb0] sm:$0xff] %v1934
        %1967 = vst [vmem:[#allocation2 + $0xb8] sm:$0xff] %v1935
        %1968 = vst [vmem:[#allocation2 + $0xc0] sm:$0xff] %v1936
        %1969 = vst [vmem:[#allocation2 + $0xc8] sm:$0xff] %v1937
        %1970 = vst [vmem:[#allocation2 + $0xd0] sm:$0xff] %v1938
        %1971 = vst [vmem:[#allocation2 + $0xd8] sm:$0xff] %v1939
        %1972 = vst [vmem:[#allocation2 + $0xe0] sm:$0xff] %v1940
        %1973 = vst [vmem:[#allocation2 + $0xe8] sm:$0xff] %v1941
        %1974 = vst [vmem:[#allocation2 + $0xf0] sm:$0xff] %v1942
        %1975 = vst [vmem:[#allocation2 + $0xf8] sm:$0xff] %v1943
        %v1977 = vshrl.u32 %v1225, 16
        %v1979 = vrot.slane %v1977, 4
        %v1980 = vshll.u32 %v1225, 16
        %v1982 = vrot.slane %v1980, 5
        %v1983 = vor.u32 %v1979, %v1982
        %v1984 = vrot.slane %v1983, 4
        %v1986 = vshll.u32 %v1226, 16
        %v1988 = vrot.slane %v1986, 5
        %v1989 = vsel %vm1233, %v1984, %v1988
        %v1990 = vshrl.u32 %v1226, 16
        %v1992 = vrot.slane %v1990, 4
        %v1993 = vor.u32 %v1992, %v1988
        %v1994 = vrot.slane %v1993, 4
        %v1996 = vshll.u32 %v1227, 16
        %v1998 = vrot.slane %v1996, 5
        %v1999 = vsel %vm1233, %v1994, %v1998
        %v2032 = vld [vmem:[#allocation2] sm:$0xff]
        %v2033 = vld [vmem:[#allocation2 + $0x8] sm:$0xff]
        %v2034 = vld [vmem:[#allocation2 + $0x10] sm:$0xff]
        %v2035 = vld [vmem:[#allocation2 + $0x18] sm:$0xff]
        %v2036 = vld [vmem:[#allocation2 + $0x20] sm:$0xff]
        %v2037 = vld [vmem:[#allocation2 + $0x28] sm:$0xff]
        %v2038 = vld [vmem:[#allocation2 + $0x30] sm:$0xff]
        %v2039 = vld [vmem:[#allocation2 + $0x38] sm:$0xff]
        %v2040 = vld [vmem:[#allocation2 + $0x40] sm:$0xff]
        %v2041 = vld [vmem:[#allocation2 + $0x48] sm:$0xff]
        %v2042 = vld [vmem:[#allocation2 + $0x50] sm:$0xff]
        %v2043 = vld [vmem:[#allocation2 + $0x58] sm:$0xff]
        %v2044 = vld [vmem:[#allocation2 + $0x60] sm:$0xff]
        %v2045 = vld [vmem:[#allocation2 + $0x68] sm:$0xff]
        %v2046 = vld [vmem:[#allocation2 + $0x70] sm:$0xff]
        %v2047 = vld [vmem:[#allocation2 + $0x78] sm:$0xff]
        %v2048 = vld [vmem:[#allocation2 + $0x80] sm:$0xff]
        %v2049 = vld [vmem:[#allocation2 + $0x88] sm:$0xff]
        %v2050 = vld [vmem:[#allocation2 + $0x90] sm:$0xff]
        %v2051 = vld [vmem:[#allocation2 + $0x98] sm:$0xff]
        %v2052 = vld [vmem:[#allocation2 + $0xa0] sm:$0xff]
        %v2053 = vld [vmem:[#allocation2 + $0xa8] sm:$0xff]
        %v2054 = vld [vmem:[#allocation2 + $0xb0] sm:$0xff]
        %v2055 = vld [vmem:[#allocation2 + $0xb8] sm:$0xff]
        %v2056 = vld [vmem:[#allocation2 + $0xc0] sm:$0xff]
        %v2057 = vld [vmem:[#allocation2 + $0xc8] sm:$0xff]
        %v2058 = vld [vmem:[#allocation2 + $0xd0] sm:$0xff]
        %v2059 = vld [vmem:[#allocation2 + $0xd8] sm:$0xff]
        %v2060 = vld [vmem:[#allocation2 + $0xe0] sm:$0xff]
        %v2061 = vld [vmem:[#allocation2 + $0xe8] sm:$0xff]
        %v2062 = vld [vmem:[#allocation2 + $0xf0] sm:$0xff]
        %v2063 = vld [vmem:[#allocation2 + $0xf8] sm:$0xff]
        %s2064 = scalar_lea.vmem %s1, 16
        %v2065 = vld [vmem:[%s2064] sm:$0xf]
        %v2066 = vunpack.c.l.b16 %v1989
        %v2067 = vunpack.c.l.b16 %v1999
        %v2068 = vpack.c.b16 %v2067, %v2066
        %v2070 = vsel %vm359, %v2068, 0
        %v2073 = vsel %vm408, %v2065, 0
        %2075 = vmatprep.subr.bf16.mxu0 0
        %2076 = vmatpush1.bf16.msra.mxu0 0
        %2077 = vmatprep.subr.bf16.mxu0 0
        %2078 = vmatpush1.bf16.msra.mxu0 0
        %2079 = vmatprep.subr.bf16.mxu0 0
        %2080 = vmatpush1.bf16.msra.mxu0 0
        %2081 = vmatprep.subr.bf16.mxu0 0
        %2082 = vmatpush1.bf16.msra.mxu0 0
        %2083 = vmatprep.subr.bf16.mxu0 0
        %2084 = vmatpush1.bf16.msra.mxu0 0
        %2085 = vmatprep.subr.bf16.mxu0 0
        %2086 = vmatpush1.bf16.msra.mxu0 0
        %2087 = vmatprep.subr.bf16.mxu0 0
        %2088 = vmatpush1.bf16.msra.mxu0 0
        %2089 = vmatprep.subr.bf16.mxu0 0
        %2090 = vmatpush1.bf16.msra.mxu0 %v2073
        %2091 = vmatprep.subr.bf16.mxu0 0
        %2092 = vmatpush2.bf16.msra.mxu0 0
        %2093 = vmatprep.subr.bf16.mxu0 0
        %2094 = vmatpush2.bf16.msra.mxu0 0
        %2095 = vmatprep.subr.bf16.mxu0 0
        %2096 = vmatpush2.bf16.msra.mxu0 0
        %2097 = vmatprep.subr.bf16.mxu0 0
        %2098 = vmatpush2.bf16.msra.mxu0 0
        %2099 = vmatprep.subr.bf16.mxu0 0
        %2100 = vmatpush2.bf16.msra.mxu0 0
        %2101 = vmatprep.subr.bf16.mxu0 0
        %2102 = vmatpush2.bf16.msra.mxu0 0
        %2103 = vmatprep.subr.bf16.mxu0 0
        %2104 = vmatpush2.bf16.msra.mxu0 0
        %2105 = vmatprep.subr.bf16.mxu0 0
        %2106 = vmatpush2.bf16.msra.mxu0 0
        %2107 = vmatprep.mubr.bf16.mxu0 0
        %2108 = vmatmul.mubr.bf16.gmra.mxu0 %v1704
        %v2109 = vpop.f32.mrf.mxu0
        %v2110 = vadd.f32 0.0, %v2109
        %v2111 = vpop.f32.mrf.mxu0
        %v2112 = vpop.f32.mrf.mxu0
        %v2113 = vadd.f32 0.0, %v2112
        %v2114 = vpop.f32.mrf.mxu0
        %2115 = vmatprep.mubr.bf16.mxu0 0
        %2116 = vmatmul.mubr.bf16.gmra.mxu0 %v1707
        %v2117 = vpop.f32.mrf.mxu0
        %v2118 = vadd.f32 0.0, %v2117
        %v2119 = vpop.f32.mrf.mxu0
        %v2120 = vpop.f32.mrf.mxu0
        %v2121 = vadd.f32 0.0, %v2120
        %v2122 = vpop.f32.mrf.mxu0
        %2123 = vmatprep.mubr.bf16.mxu0 0
        %2124 = vmatmul.mubr.bf16.gmra.mxu0 %v1710
        %v2125 = vpop.f32.mrf.mxu0
        %v2126 = vadd.f32 0.0, %v2125
        %v2127 = vpop.f32.mrf.mxu0
        %v2128 = vpop.f32.mrf.mxu0
        %v2129 = vadd.f32 0.0, %v2128
        %v2130 = vpop.f32.mrf.mxu0
        %2131 = vmatprep.mubr.bf16.mxu0 0
        %2132 = vmatmul.mubr.bf16.gmra.mxu0 %v1713
        %v2133 = vpop.f32.mrf.mxu0
        %v2134 = vadd.f32 0.0, %v2133
        %v2135 = vpop.f32.mrf.mxu0
        %v2136 = vpop.f32.mrf.mxu0
        %v2137 = vadd.f32 0.0, %v2136
        %v2138 = vpop.f32.mrf.mxu0
        %2139 = vmatprep.mubr.bf16.mxu0 0
        %2140 = vmatmul.mubr.bf16.gmra.mxu0 %v1716
        %v2141 = vpop.f32.mrf.mxu0
        %v2142 = vadd.f32 0.0, %v2141
        %v2143 = vpop.f32.mrf.mxu0
        %v2144 = vpop.f32.mrf.mxu0
        %v2145 = vadd.f32 0.0, %v2144
        %v2146 = vpop.f32.mrf.mxu0
        %2147 = vmatprep.mubr.bf16.mxu0 0
        %2148 = vmatmul.mubr.bf16.gmra.mxu0 %v1719
        %v2149 = vpop.f32.mrf.mxu0
        %v2150 = vadd.f32 0.0, %v2149
        %v2151 = vpop.f32.mrf.mxu0
        %v2152 = vpop.f32.mrf.mxu0
        %v2153 = vadd.f32 0.0, %v2152
        %v2154 = vpop.f32.mrf.mxu0
        %2155 = vmatprep.mubr.bf16.mxu0 0
        %2156 = vmatmul.mubr.bf16.gmra.mxu0 %v1722
        %v2157 = vpop.f32.mrf.mxu0
        %v2158 = vadd.f32 0.0, %v2157
        %v2159 = vpop.f32.mrf.mxu0
        %v2160 = vpop.f32.mrf.mxu0
        %v2161 = vadd.f32 0.0, %v2160
        %v2162 = vpop.f32.mrf.mxu0
        %2163 = vmatprep.mubr.bf16.mxu0 0
        %2164 = vmatmul.mubr.bf16.gmra.mxu0 %v1725
        %v2165 = vpop.f32.mrf.mxu0
        %v2166 = vadd.f32 0.0, %v2165
        %v2167 = vpop.f32.mrf.mxu0
        %v2168 = vpop.f32.mrf.mxu0
        %v2169 = vadd.f32 0.0, %v2168
        %v2170 = vpop.f32.mrf.mxu0
        %2171 = vmatprep.mubr.bf16.mxu0 0
        %2172 = vmatmul.mubr.bf16.gmra.mxu0 %v1728
        %v2173 = vpop.f32.mrf.mxu0
        %v2174 = vadd.f32 0.0, %v2173
        %v2175 = vpop.f32.mrf.mxu0
        %v2176 = vpop.f32.mrf.mxu0
        %v2177 = vadd.f32 0.0, %v2176
        %v2178 = vpop.f32.mrf.mxu0
        %2179 = vmatprep.mubr.bf16.mxu0 0
        %2180 = vmatmul.mubr.bf16.gmra.mxu0 %v1731
        %v2181 = vpop.f32.mrf.mxu0
        %v2182 = vadd.f32 0.0, %v2181
        %v2183 = vpop.f32.mrf.mxu0
        %v2184 = vpop.f32.mrf.mxu0
        %v2185 = vadd.f32 0.0, %v2184
        %v2186 = vpop.f32.mrf.mxu0
        %2187 = vmatprep.mubr.bf16.mxu0 0
        %2188 = vmatmul.mubr.bf16.gmra.mxu0 %v1734
        %v2189 = vpop.f32.mrf.mxu0
        %v2190 = vadd.f32 0.0, %v2189
        %v2191 = vpop.f32.mrf.mxu0
        %v2192 = vpop.f32.mrf.mxu0
        %v2193 = vadd.f32 0.0, %v2192
        %v2194 = vpop.f32.mrf.mxu0
        %2195 = vmatprep.mubr.bf16.mxu0 0
        %2196 = vmatmul.mubr.bf16.gmra.mxu0 %v1737
        %v2197 = vpop.f32.mrf.mxu0
        %v2198 = vadd.f32 0.0, %v2197
        %v2199 = vpop.f32.mrf.mxu0
        %v2200 = vpop.f32.mrf.mxu0
        %v2201 = vadd.f32 0.0, %v2200
        %v2202 = vpop.f32.mrf.mxu0
        %2203 = vmatprep.mubr.bf16.mxu0 0
        %2204 = vmatmul.mubr.bf16.gmra.mxu0 %v1740
        %v2205 = vpop.f32.mrf.mxu0
        %v2206 = vadd.f32 0.0, %v2205
        %v2207 = vpop.f32.mrf.mxu0
        %v2208 = vpop.f32.mrf.mxu0
        %v2209 = vadd.f32 0.0, %v2208
        %v2210 = vpop.f32.mrf.mxu0
        %2211 = vmatprep.mubr.bf16.mxu0 0
        %2212 = vmatmul.mubr.bf16.gmra.mxu0 %v1743
        %v2213 = vpop.f32.mrf.mxu0
        %v2214 = vadd.f32 0.0, %v2213
        %v2215 = vpop.f32.mrf.mxu0
        %v2216 = vpop.f32.mrf.mxu0
        %v2217 = vadd.f32 0.0, %v2216
        %v2218 = vpop.f32.mrf.mxu0
        %2219 = vmatprep.mubr.bf16.mxu0 0
        %2220 = vmatmul.mubr.bf16.gmra.mxu0 %v1746
        %v2221 = vpop.f32.mrf.mxu0
        %v2222 = vadd.f32 0.0, %v2221
        %v2223 = vpop.f32.mrf.mxu0
        %v2224 = vpop.f32.mrf.mxu0
        %v2225 = vadd.f32 0.0, %v2224
        %v2226 = vpop.f32.mrf.mxu0
        %2227 = vmatprep.mubr.bf16.mxu0 0
        %2228 = vmatmul.mubr.bf16.gmra.mxu0 %v2070
        %v2229 = vpop.f32.mrf.mxu0
        %v2230 = vadd.f32 0.0, %v2229
        %v2231 = vpop.f32.mrf.mxu0
        %v2232 = vpop.f32.mrf.mxu0
        %v2233 = vadd.f32 0.0, %v2232
        %v2234 = vpop.f32.mrf.mxu0
        %2235 = vdwg.mxu0
        %v2236 = vadd.f32 %v2032, %v2110
        %v2237 = vadd.f32 %v2033, %v2113
        %v2238 = vadd.f32 %v2034, %v2118
        %v2239 = vadd.f32 %v2035, %v2121
        %v2240 = vadd.f32 %v2036, %v2126
        %v2241 = vadd.f32 %v2037, %v2129
        %v2242 = vadd.f32 %v2038, %v2134
        %v2243 = vadd.f32 %v2039, %v2137
        %v2244 = vadd.f32 %v2040, %v2142
        %v2245 = vadd.f32 %v2041, %v2145
        %v2246 = vadd.f32 %v2042, %v2150
        %v2247 = vadd.f32 %v2043, %v2153
        %v2248 = vadd.f32 %v2044, %v2158
        %v2249 = vadd.f32 %v2045, %v2161
        %v2250 = vadd.f32 %v2046, %v2166
        %v2251 = vadd.f32 %v2047, %v2169
        %v2252 = vadd.f32 %v2048, %v2174
        %v2253 = vadd.f32 %v2049, %v2177
        %v2254 = vadd.f32 %v2050, %v2182
        %v2255 = vadd.f32 %v2051, %v2185
        %v2256 = vadd.f32 %v2052, %v2190
        %v2257 = vadd.f32 %v2053, %v2193
        %v2258 = vadd.f32 %v2054, %v2198
        %v2259 = vadd.f32 %v2055, %v2201
        %v2260 = vadd.f32 %v2056, %v2206
        %v2261 = vadd.f32 %v2057, %v2209
        %v2262 = vadd.f32 %v2058, %v2214
        %v2263 = vadd.f32 %v2059, %v2217
        %v2264 = vadd.f32 %v2060, %v2222
        %v2265 = vadd.f32 %v2061, %v2225
        %v2266 = vadd.f32 %v2062, %v2230
        %v2267 = vadd.f32 %v2063, %v2233
        %2268 = vst [vmem:[#allocation2] sm:$0xff] %v2236
        %2269 = vst [vmem:[#allocation2 + $0x8] sm:$0xff] %v2237
        %2270 = vst [vmem:[#allocation2 + $0x10] sm:$0xff] %v2238
        %2271 = vst [vmem:[#allocation2 + $0x18] sm:$0xff] %v2239
        %2272 = vst [vmem:[#allocation2 + $0x20] sm:$0xff] %v2240
        %2273 = vst [vmem:[#allocation2 + $0x28] sm:$0xff] %v2241
        %2274 = vst [vmem:[#allocation2 + $0x30] sm:$0xff] %v2242
        %2275 = vst [vmem:[#allocation2 + $0x38] sm:$0xff] %v2243
        %2276 = vst [vmem:[#allocation2 + $0x40] sm:$0xff] %v2244
        %2277 = vst [vmem:[#allocation2 + $0x48] sm:$0xff] %v2245
        %2278 = vst [vmem:[#allocation2 + $0x50] sm:$0xff] %v2246
        %2279 = vst [vmem:[#allocation2 + $0x58] sm:$0xff] %v2247
        %2280 = vst [vmem:[#allocation2 + $0x60] sm:$0xff] %v2248
        %2281 = vst [vmem:[#allocation2 + $0x68] sm:$0xff] %v2249
        %2282 = vst [vmem:[#allocation2 + $0x70] sm:$0xff] %v2250
        %2283 = vst [vmem:[#allocation2 + $0x78] sm:$0xff] %v2251
        %2284 = vst [vmem:[#allocation2 + $0x80] sm:$0xff] %v2252
        %2285 = vst [vmem:[#allocation2 + $0x88] sm:$0xff] %v2253
        %2286 = vst [vmem:[#allocation2 + $0x90] sm:$0xff] %v2254
        %2287 = vst [vmem:[#allocation2 + $0x98] sm:$0xff] %v2255
        %2288 = vst [vmem:[#allocation2 + $0xa0] sm:$0xff] %v2256
        %2289 = vst [vmem:[#allocation2 + $0xa8] sm:$0xff] %v2257
        %2290 = vst [vmem:[#allocation2 + $0xb0] sm:$0xff] %v2258
        %2291 = vst [vmem:[#allocation2 + $0xb8] sm:$0xff] %v2259
        %2292 = vst [vmem:[#allocation2 + $0xc0] sm:$0xff] %v2260
        %2293 = vst [vmem:[#allocation2 + $0xc8] sm:$0xff] %v2261
        %2294 = vst [vmem:[#allocation2 + $0xd0] sm:$0xff] %v2262
        %2295 = vst [vmem:[#allocation2 + $0xd8] sm:$0xff] %v2263
        %2296 = vst [vmem:[#allocation2 + $0xe0] sm:$0xff] %v2264
        %2297 = vst [vmem:[#allocation2 + $0xe8] sm:$0xff] %v2265
        %2298 = vst [vmem:[#allocation2 + $0xf0] sm:$0xff] %v2266
        %2299 = vst [vmem:[#allocation2 + $0xf8] sm:$0xff] %v2267
        %v2301 = vshrl.u32 %v1228, 16
        %v2303 = vrot.slane %v2301, 4
        %v2304 = vshll.u32 %v1228, 16
        %v2306 = vrot.slane %v2304, 5
        %v2307 = vor.u32 %v2303, %v2306
        %v2308 = vrot.slane %v2307, 4
        %v2310 = vshll.u32 %v1229, 16
        %v2312 = vrot.slane %v2310, 5
        %v2313 = vsel %vm1233, %v2308, %v2312
        %v2314 = vshrl.u32 %v1229, 16
        %v2316 = vrot.slane %v2314, 4
        %v2317 = vor.u32 %v2316, %v2312
        %v2318 = vrot.slane %v2317, 4
        %v2320 = vshll.u32 %v1230, 16
        %v2322 = vrot.slane %v2320, 5
        %v2323 = vsel %vm1233, %v2318, %v2322
        %v2324 = vld [vmem:[#allocation2] sm:$0xff]
        %v2325 = vld [vmem:[#allocation2 + $0x8] sm:$0xff]
        %v2326 = vld [vmem:[#allocation2 + $0x10] sm:$0xff]
        %v2327 = vld [vmem:[#allocation2 + $0x18] sm:$0xff]
        %v2328 = vld [vmem:[#allocation2 + $0x20] sm:$0xff]
        %v2329 = vld [vmem:[#allocation2 + $0x28] sm:$0xff]
        %v2330 = vld [vmem:[#allocation2 + $0x30] sm:$0xff]
        %v2331 = vld [vmem:[#allocation2 + $0x38] sm:$0xff]
        %v2332 = vld [vmem:[#allocation2 + $0x40] sm:$0xff]
        %v2333 = vld [vmem:[#allocation2 + $0x48] sm:$0xff]
        %v2334 = vld [vmem:[#allocation2 + $0x50] sm:$0xff]
        %v2335 = vld [vmem:[#allocation2 + $0x58] sm:$0xff]
        %v2336 = vld [vmem:[#allocation2 + $0x60] sm:$0xff]
        %v2337 = vld [vmem:[#allocation2 + $0x68] sm:$0xff]
        %v2338 = vld [vmem:[#allocation2 + $0x70] sm:$0xff]
        %v2339 = vld [vmem:[#allocation2 + $0x78] sm:$0xff]
        %v2340 = vld [vmem:[#allocation2 + $0x80] sm:$0xff]
        %v2341 = vld [vmem:[#allocation2 + $0x88] sm:$0xff]
        %v2342 = vld [vmem:[#allocation2 + $0x90] sm:$0xff]
        %v2343 = vld [vmem:[#allocation2 + $0x98] sm:$0xff]
        %v2344 = vld [vmem:[#allocation2 + $0xa0] sm:$0xff]
        %v2345 = vld [vmem:[#allocation2 + $0xa8] sm:$0xff]
        %v2346 = vld [vmem:[#allocation2 + $0xb0] sm:$0xff]
        %v2347 = vld [vmem:[#allocation2 + $0xb8] sm:$0xff]
        %v2348 = vld [vmem:[#allocation2 + $0xc0] sm:$0xff]
        %v2349 = vld [vmem:[#allocation2 + $0xc8] sm:$0xff]
        %v2350 = vld [vmem:[#allocation2 + $0xd0] sm:$0xff]
        %v2351 = vld [vmem:[#allocation2 + $0xd8] sm:$0xff]
        %v2352 = vld [vmem:[#allocation2 + $0xe0] sm:$0xff]
        %v2353 = vld [vmem:[#allocation2 + $0xe8] sm:$0xff]
        %v2354 = vld [vmem:[#allocation2 + $0xf0] sm:$0xff]
        %v2355 = vld [vmem:[#allocation2 + $0xf8] sm:$0xff]
        %s2356 = scalar_lea.vmem %s1, 28
        %v2357 = vld [vmem:[%s2356] sm:$0xf]
        %v2358 = vunpack.c.l.b16 %v2313
        %v2359 = vunpack.c.l.b16 %v2323
        %v2360 = vpack.c.b16 %v2359, %v2358
        %v2362 = vsel %vm359, %v2360, 0
        %v2365 = vsel %vm408, %v2357, 0
        %2367 = vmatprep.subr.bf16.mxu0 0
        %2368 = vmatpush1.bf16.msra.mxu0 0
        %2369 = vmatprep.subr.bf16.mxu0 0
        %2370 = vmatpush1.bf16.msra.mxu0 0
        %2371 = vmatprep.subr.bf16.mxu0 0
        %2372 = vmatpush1.bf16.msra.mxu0 0
        %2373 = vmatprep.subr.bf16.mxu0 0
        %2374 = vmatpush1.bf16.msra.mxu0 0
        %2375 = vmatprep.subr.bf16.mxu0 0
        %2376 = vmatpush1.bf16.msra.mxu0 0
        %2377 = vmatprep.subr.bf16.mxu0 0
        %2378 = vmatpush1.bf16.msra.mxu0 0
        %2379 = vmatprep.subr.bf16.mxu0 0
        %2380 = vmatpush1.bf16.msra.mxu0 0
        %2381 = vmatprep.subr.bf16.mxu0 0
        %2382 = vmatpush1.bf16.msra.mxu0 %v2365
        %2383 = vmatprep.subr.bf16.mxu0 0
        %2384 = vmatpush2.bf16.msra.mxu0 0
        %2385 = vmatprep.subr.bf16.mxu0 0
        %2386 = vmatpush2.bf16.msra.mxu0 0
        %2387 = vmatprep.subr.bf16.mxu0 0
        %2388 = vmatpush2.bf16.msra.mxu0 0
        %2389 = vmatprep.subr.bf16.mxu0 0
        %2390 = vmatpush2.bf16.msra.mxu0 0
        %2391 = vmatprep.subr.bf16.mxu0 0
        %2392 = vmatpush2.bf16.msra.mxu0 0
        %2393 = vmatprep.subr.bf16.mxu0 0
        %2394 = vmatpush2.bf16.msra.mxu0 0
        %2395 = vmatprep.subr.bf16.mxu0 0
        %2396 = vmatpush2.bf16.msra.mxu0 0
        %2397 = vmatprep.subr.bf16.mxu0 0
        %2398 = vmatpush2.bf16.msra.mxu0 0
        %2399 = vmatprep.mubr.bf16.mxu0 0
        %2400 = vmatmul.mubr.bf16.gmra.mxu0 %v1707
        %v2401 = vpop.f32.mrf.mxu0
        %v2402 = vadd.f32 0.0, %v2401
        %v2403 = vpop.f32.mrf.mxu0
        %v2404 = vpop.f32.mrf.mxu0
        %v2405 = vadd.f32 0.0, %v2404
        %v2406 = vpop.f32.mrf.mxu0
        %2407 = vmatprep.mubr.bf16.mxu0 0
        %2408 = vmatmul.mubr.bf16.gmra.mxu0 %v1710
        %v2409 = vpop.f32.mrf.mxu0
        %v2410 = vadd.f32 0.0, %v2409
        %v2411 = vpop.f32.mrf.mxu0
        %v2412 = vpop.f32.mrf.mxu0
        %v2413 = vadd.f32 0.0, %v2412
        %v2414 = vpop.f32.mrf.mxu0
        %2415 = vmatprep.mubr.bf16.mxu0 0
        %2416 = vmatmul.mubr.bf16.gmra.mxu0 %v1713
        %v2417 = vpop.f32.mrf.mxu0
        %v2418 = vadd.f32 0.0, %v2417
        %v2419 = vpop.f32.mrf.mxu0
        %v2420 = vpop.f32.mrf.mxu0
        %v2421 = vadd.f32 0.0, %v2420
        %v2422 = vpop.f32.mrf.mxu0
        %2423 = vmatprep.mubr.bf16.mxu0 0
        %2424 = vmatmul.mubr.bf16.gmra.mxu0 %v1716
        %v2425 = vpop.f32.mrf.mxu0
        %v2426 = vadd.f32 0.0, %v2425
        %v2427 = vpop.f32.mrf.mxu0
        %v2428 = vpop.f32.mrf.mxu0
        %v2429 = vadd.f32 0.0, %v2428
        %v2430 = vpop.f32.mrf.mxu0
        %2431 = vmatprep.mubr.bf16.mxu0 0
        %2432 = vmatmul.mubr.bf16.gmra.mxu0 %v1719
        %v2433 = vpop.f32.mrf.mxu0
        %v2434 = vadd.f32 0.0, %v2433
        %v2435 = vpop.f32.mrf.mxu0
        %v2436 = vpop.f32.mrf.mxu0
        %v2437 = vadd.f32 0.0, %v2436
        %v2438 = vpop.f32.mrf.mxu0
        %2439 = vmatprep.mubr.bf16.mxu0 0
        %2440 = vmatmul.mubr.bf16.gmra.mxu0 %v1722
        %v2441 = vpop.f32.mrf.mxu0
        %v2442 = vadd.f32 0.0, %v2441
        %v2443 = vpop.f32.mrf.mxu0
        %v2444 = vpop.f32.mrf.mxu0
        %v2445 = vadd.f32 0.0, %v2444
        %v2446 = vpop.f32.mrf.mxu0
        %2447 = vmatprep.mubr.bf16.mxu0 0
        %2448 = vmatmul.mubr.bf16.gmra.mxu0 %v1725
        %v2449 = vpop.f32.mrf.mxu0
        %v2450 = vadd.f32 0.0, %v2449
        %v2451 = vpop.f32.mrf.mxu0
        %v2452 = vpop.f32.mrf.mxu0
        %v2453 = vadd.f32 0.0, %v2452
        %v2454 = vpop.f32.mrf.mxu0
        %2455 = vmatprep.mubr.bf16.mxu0 0
        %2456 = vmatmul.mubr.bf16.gmra.mxu0 %v1728
        %v2457 = vpop.f32.mrf.mxu0
        %v2458 = vadd.f32 0.0, %v2457
        %v2459 = vpop.f32.mrf.mxu0
        %v2460 = vpop.f32.mrf.mxu0
        %v2461 = vadd.f32 0.0, %v2460
        %v2462 = vpop.f32.mrf.mxu0
        %2463 = vmatprep.mubr.bf16.mxu0 0
        %2464 = vmatmul.mubr.bf16.gmra.mxu0 %v1731
        %v2465 = vpop.f32.mrf.mxu0
        %v2466 = vadd.f32 0.0, %v2465
        %v2467 = vpop.f32.mrf.mxu0
        %v2468 = vpop.f32.mrf.mxu0
        %v2469 = vadd.f32 0.0, %v2468
        %v2470 = vpop.f32.mrf.mxu0
        %2471 = vmatprep.mubr.bf16.mxu0 0
        %2472 = vmatmul.mubr.bf16.gmra.mxu0 %v1734
        %v2473 = vpop.f32.mrf.mxu0
        %v2474 = vadd.f32 0.0, %v2473
        %v2475 = vpop.f32.mrf.mxu0
        %v2476 = vpop.f32.mrf.mxu0
        %v2477 = vadd.f32 0.0, %v2476
        %v2478 = vpop.f32.mrf.mxu0
        %2479 = vmatprep.mubr.bf16.mxu0 0
        %2480 = vmatmul.mubr.bf16.gmra.mxu0 %v1737
        %v2481 = vpop.f32.mrf.mxu0
        %v2482 = vadd.f32 0.0, %v2481
        %v2483 = vpop.f32.mrf.mxu0
        %v2484 = vpop.f32.mrf.mxu0
        %v2485 = vadd.f32 0.0, %v2484
        %v2486 = vpop.f32.mrf.mxu0
        %2487 = vmatprep.mubr.bf16.mxu0 0
        %2488 = vmatmul.mubr.bf16.gmra.mxu0 %v1740
        %v2489 = vpop.f32.mrf.mxu0
        %v2490 = vadd.f32 0.0, %v2489
        %v2491 = vpop.f32.mrf.mxu0
        %v2492 = vpop.f32.mrf.mxu0
        %v2493 = vadd.f32 0.0, %v2492
        %v2494 = vpop.f32.mrf.mxu0
        %2495 = vmatprep.mubr.bf16.mxu0 0
        %2496 = vmatmul.mubr.bf16.gmra.mxu0 %v1743
        %v2497 = vpop.f32.mrf.mxu0
        %v2498 = vadd.f32 0.0, %v2497
        %v2499 = vpop.f32.mrf.mxu0
        %v2500 = vpop.f32.mrf.mxu0
        %v2501 = vadd.f32 0.0, %v2500
        %v2502 = vpop.f32.mrf.mxu0
        %2503 = vmatprep.mubr.bf16.mxu0 0
        %2504 = vmatmul.mubr.bf16.gmra.mxu0 %v1746
        %v2505 = vpop.f32.mrf.mxu0
        %v2506 = vadd.f32 0.0, %v2505
        %v2507 = vpop.f32.mrf.mxu0
        %v2508 = vpop.f32.mrf.mxu0
        %v2509 = vadd.f32 0.0, %v2508
        %v2510 = vpop.f32.mrf.mxu0
        %2511 = vmatprep.mubr.bf16.mxu0 0
        %2512 = vmatmul.mubr.bf16.gmra.mxu0 %v2070
        %v2513 = vpop.f32.mrf.mxu0
        %v2514 = vadd.f32 0.0, %v2513
        %v2515 = vpop.f32.mrf.mxu0
        %v2516 = vpop.f32.mrf.mxu0
        %v2517 = vadd.f32 0.0, %v2516
        %v2518 = vpop.f32.mrf.mxu0
        %2519 = vmatprep.mubr.bf16.mxu0 0
        %2520 = vmatmul.mubr.bf16.gmra.mxu0 %v2362
        %v2521 = vpop.f32.mrf.mxu0
        %v2522 = vadd.f32 0.0, %v2521
        %v2523 = vpop.f32.mrf.mxu0
        %v2524 = vpop.f32.mrf.mxu0
        %v2525 = vadd.f32 0.0, %v2524
        %v2526 = vpop.f32.mrf.mxu0
        %2527 = vdwg.mxu0
        %v2528 = vadd.f32 %v2324, %v2402
        %v2529 = vadd.f32 %v2325, %v2405
        %v2530 = vadd.f32 %v2326, %v2410
        %v2531 = vadd.f32 %v2327, %v2413
        %v2532 = vadd.f32 %v2328, %v2418
        %v2533 = vadd.f32 %v2329, %v2421
        %v2534 = vadd.f32 %v2330, %v2426
        %v2535 = vadd.f32 %v2331, %v2429
        %v2536 = vadd.f32 %v2332, %v2434
        %v2537 = vadd.f32 %v2333, %v2437
        %v2538 = vadd.f32 %v2334, %v2442
        %v2539 = vadd.f32 %v2335, %v2445
        %v2540 = vadd.f32 %v2336, %v2450
        %v2541 = vadd.f32 %v2337, %v2453
        %v2542 = vadd.f32 %v2338, %v2458
        %v2543 = vadd.f32 %v2339, %v2461
        %v2544 = vadd.f32 %v2340, %v2466
        %v2545 = vadd.f32 %v2341, %v2469
        %v2546 = vadd.f32 %v2342, %v2474
        %v2547 = vadd.f32 %v2343, %v2477
        %v2548 = vadd.f32 %v2344, %v2482
        %v2549 = vadd.f32 %v2345, %v2485
        %v2550 = vadd.f32 %v2346, %v2490
        %v2551 = vadd.f32 %v2347, %v2493
        %v2552 = vadd.f32 %v2348, %v2498
        %v2553 = vadd.f32 %v2349, %v2501
        %v2554 = vadd.f32 %v2350, %v2506
        %v2555 = vadd.f32 %v2351, %v2509
        %v2556 = vadd.f32 %v2352, %v2514
        %v2557 = vadd.f32 %v2353, %v2517
        %v2558 = vadd.f32 %v2354, %v2522
        %v2559 = vadd.f32 %v2355, %v2525
        %2560 = vst [vmem:[#allocation2] sm:$0xff] %v2528
        %2561 = vst [vmem:[#allocation2 + $0x8] sm:$0xff] %v2529
        %2562 = vst [vmem:[#allocation2 + $0x10] sm:$0xff] %v2530
        %2563 = vst [vmem:[#allocation2 + $0x18] sm:$0xff] %v2531
        %2564 = vst [vmem:[#allocation2 + $0x20] sm:$0xff] %v2532
        %2565 = vst [vmem:[#allocation2 + $0x28] sm:$0xff] %v2533
        %2566 = vst [vmem:[#allocation2 + $0x30] sm:$0xff] %v2534
        %2567 = vst [vmem:[#allocation2 + $0x38] sm:$0xff] %v2535
        %2568 = vst [vmem:[#allocation2 + $0x40] sm:$0xff] %v2536
        %2569 = vst [vmem:[#allocation2 + $0x48] sm:$0xff] %v2537
        %2570 = vst [vmem:[#allocation2 + $0x50] sm:$0xff] %v2538
        %2571 = vst [vmem:[#allocation2 + $0x58] sm:$0xff] %v2539
        %2572 = vst [vmem:[#allocation2 + $0x60] sm:$0xff] %v2540
        %2573 = vst [vmem:[#allocation2 + $0x68] sm:$0xff] %v2541
        %2574 = vst [vmem:[#allocation2 + $0x70] sm:$0xff] %v2542
        %2575 = vst [vmem:[#allocation2 + $0x78] sm:$0xff] %v2543
        %2576 = vst [vmem:[#allocation2 + $0x80] sm:$0xff] %v2544
        %2577 = vst [vmem:[#allocation2 + $0x88] sm:$0xff] %v2545
        %2578 = vst [vmem:[#allocation2 + $0x90] sm:$0xff] %v2546
        %2579 = vst [vmem:[#allocation2 + $0x98] sm:$0xff] %v2547
        %2580 = vst [vmem:[#allocation2 + $0xa0] sm:$0xff] %v2548
        %2581 = vst [vmem:[#allocation2 + $0xa8] sm:$0xff] %v2549
        %2582 = vst [vmem:[#allocation2 + $0xb0] sm:$0xff] %v2550
        %2583 = vst [vmem:[#allocation2 + $0xb8] sm:$0xff] %v2551
        %2584 = vst [vmem:[#allocation2 + $0xc0] sm:$0xff] %v2552
        %2585 = vst [vmem:[#allocation2 + $0xc8] sm:$0xff] %v2553
        %2586 = vst [vmem:[#allocation2 + $0xd0] sm:$0xff] %v2554
        %2587 = vst [vmem:[#allocation2 + $0xd8] sm:$0xff] %v2555
        %2588 = vst [vmem:[#allocation2 + $0xe0] sm:$0xff] %v2556
        %2589 = vst [vmem:[#allocation2 + $0xe8] sm:$0xff] %v2557
        %2590 = vst [vmem:[#allocation2 + $0xf0] sm:$0xff] %v2558
        %2591 = vst [vmem:[#allocation2 + $0xf8] sm:$0xff] %v2559
        %v2592 = vunpack.c.l.bf16 %v1271
        %v2593 = vunpack.c.l.bf16 %v1281
        %v2594 = vunpack.c.l.bf16 %v1295
        %v2595 = vunpack.c.l.bf16 %v1305
        %v2596 = vunpack.c.l.bf16 %v1319
        %v2597 = vunpack.c.l.bf16 %v1329
        %v2598 = vunpack.c.l.bf16 %v1343
        %v2599 = vunpack.c.l.bf16 %v1353
        %v2600 = vunpack.c.l.bf16 %v1367
        %v2601 = vunpack.c.l.bf16 %v1377
        %v2602 = vunpack.c.l.bf16 %v1391
        %v2603 = vunpack.c.l.bf16 %v1401
        %v2604 = vunpack.c.l.bf16 %v1415
        %v2605 = vunpack.c.l.bf16 %v1425
        %v2606 = vunpack.c.l.bf16 %v1439
        %v2607 = vunpack.c.l.bf16 %v1449
        %v2608 = vunpack.c.l.bf16 %v1463
        %v2609 = vunpack.c.l.bf16 %v1473
        %v2610 = vunpack.c.l.bf16 %v1487
        %v2611 = vunpack.c.l.bf16 %v1497
        %v2612 = vunpack.c.l.bf16 %v1511
        %v2613 = vunpack.c.l.bf16 %v1521
        %v2614 = vunpack.c.l.bf16 %v1535
        %v2615 = vunpack.c.l.bf16 %v1545
        %v2616 = vunpack.c.l.bf16 %v1559
        %v2617 = vunpack.c.l.bf16 %v1569
        %v2618 = vunpack.c.l.bf16 %v1583
        %v2619 = vunpack.c.l.bf16 %v1593
        %v2620 = vunpack.c.l.bf16 %v1607
        %v2621 = vunpack.c.l.bf16 %v1617
        %v2622 = vunpack.c.l.bf16 %v1989
        %v2623 = vunpack.c.l.bf16 %v1999
        %v2624 = vld [vmem:[%s168] sm:$0xe]
        %v2625 = vld [vmem:[%s168 + $0x4] sm:$0xf]
        %v2626 = vld [vmem:[%s168 + $0x8] sm:$0x1]
        %v2627 = vld [vmem:[%s168 + $0xc] sm:$0xe]
        %v2628 = vld [vmem:[%s168 + $0x10] sm:$0xf]
        %v2629 = vld [vmem:[%s168 + $0x14] sm:$0x1]
        %v2630 = vld [vmem:[%s168 + $0x18] sm:$0xe]
        %v2631 = vld [vmem:[%s168 + $0x1c] sm:$0xf]
        %v2632 = vld [vmem:[%s168 + $0x20] sm:$0x1]
        %v2633 = vld [vmem:[%s168 + $0x24] sm:$0xe]
        %v2634 = vld [vmem:[%s168 + $0x28] sm:$0xf]
        %v2635 = vld [vmem:[%s168 + $0x2c] sm:$0x1]
        %v2636 = vld [vmem:[%s168 + $0x30] sm:$0xe]
        %v2637 = vld [vmem:[%s168 + $0x34] sm:$0xf]
        %v2638 = vld [vmem:[%s168 + $0x38] sm:$0x1]
        %v2639 = vld [vmem:[%s168 + $0x3c] sm:$0xe]
        %v2640 = vld [vmem:[%s168 + $0x40] sm:$0xf]
        %v2641 = vld [vmem:[%s168 + $0x44] sm:$0x1]
        %v2642 = vld [vmem:[%s168 + $0x48] sm:$0xe]
        %v2643 = vld [vmem:[%s168 + $0x4c] sm:$0xf]
        %v2644 = vld [vmem:[%s168 + $0x50] sm:$0x1]
        %v2645 = vld [vmem:[%s168 + $0x54] sm:$0xe]
        %v2646 = vld [vmem:[%s168 + $0x58] sm:$0xf]
        %v2647 = vld [vmem:[%s168 + $0x5c] sm:$0x1]
        %v2648 = vld [vmem:[%s168 + $0x60] sm:$0xe]
        %v2649 = vld [vmem:[%s168 + $0x64] sm:$0xf]
        %v2650 = vld [vmem:[%s168 + $0x68] sm:$0x1]
        %v2651 = vld [vmem:[%s168 + $0x6c] sm:$0xe]
        %v2652 = vld [vmem:[%s168 + $0x70] sm:$0xf]
        %v2653 = vld [vmem:[%s168 + $0x74] sm:$0x1]
        %v2654 = vld [vmem:[%s168 + $0x78] sm:$0xe]
        %v2655 = vld [vmem:[%s168 + $0x7c] sm:$0xf]
        %v2656 = vld [vmem:[%s168 + $0x80] sm:$0x1]
        %v2657 = vld [vmem:[%s168 + $0x84] sm:$0xe]
        %v2658 = vld [vmem:[%s168 + $0x88] sm:$0xf]
        %v2659 = vld [vmem:[%s168 + $0x8c] sm:$0x1]
        %v2660 = vld [vmem:[%s168 + $0x90] sm:$0xe]
        %v2661 = vld [vmem:[%s168 + $0x94] sm:$0xf]
        %v2662 = vld [vmem:[%s168 + $0x98] sm:$0x1]
        %v2663 = vld [vmem:[%s168 + $0x9c] sm:$0xe]
        %v2664 = vld [vmem:[%s168 + $0xa0] sm:$0xf]
        %v2665 = vld [vmem:[%s168 + $0xa4] sm:$0x1]
        %v2666 = vld [vmem:[%s168 + $0xa8] sm:$0xe]
        %v2667 = vld [vmem:[%s168 + $0xac] sm:$0xf]
        %v2668 = vld [vmem:[%s168 + $0xb0] sm:$0x1]
        %v2669 = vld [vmem:[%s168 + $0xb4] sm:$0xe]
        %v2670 = vld [vmem:[%s168 + $0xb8] sm:$0xf]
        %v2671 = vld [vmem:[%s168 + $0xbc] sm:$0x1]
        %v2672 = vld [vmem:[%s168 + $0xc0] sm:$0xe]
        %v2673 = vld [vmem:[%s168 + $0xc4] sm:$0xf]
        %v2674 = vld [vmem:[%s168 + $0xc8] sm:$0x1]
        %v2675 = vld [vmem:[%s168 + $0xcc] sm:$0xe]
        %v2676 = vld [vmem:[%s168 + $0xd0] sm:$0xf]
        %v2677 = vld [vmem:[%s168 + $0xd4] sm:$0x1]
        %vm2726 = vcmask 1042432
        %vm2727 = vcmask 1046532
        %vm2728 = vmor %vm2726, %vm2727
        %v2729 = vrot.slane %v2624, 5
        %v2730 = vrot.slane %v2729, 4
        %v2731 = vrot.slane %v2625, 5
        %v2732 = vsel %vm2728, %v2730, %v2731
        %v2733 = vrot.slane %v2731, 4
        %v2734 = vrot.slane %v2626, 5
        %v2735 = vsel %vm2728, %v2733, %v2734
        %v2736 = vrot.slane %v2627, 5
        %v2737 = vrot.slane %v2736, 4
        %v2738 = vrot.slane %v2628, 5
        %v2739 = vsel %vm2728, %v2737, %v2738
        %v2740 = vrot.slane %v2738, 4
        %v2741 = vrot.slane %v2629, 5
        %v2742 = vsel %vm2728, %v2740, %v2741
        %v2743 = vrot.slane %v2630, 5
        %v2744 = vrot.slane %v2743, 4
        %v2745 = vrot.slane %v2631, 5
        %v2746 = vsel %vm2728, %v2744, %v2745
        %v2747 = vrot.slane %v2745, 4
        %v2748 = vrot.slane %v2632, 5
        %v2749 = vsel %vm2728, %v2747, %v2748
        %v2750 = vrot.slane %v2633, 5
        %v2751 = vrot.slane %v2750, 4
        %v2752 = vrot.slane %v2634, 5
        %v2753 = vsel %vm2728, %v2751, %v2752
        %v2754 = vrot.slane %v2752, 4
        %v2755 = vrot.slane %v2635, 5
        %v2756 = vsel %vm2728, %v2754, %v2755
        %v2757 = vrot.slane %v2636, 5
        %v2758 = vrot.slane %v2757, 4
        %v2759 = vrot.slane %v2637, 5
        %v2760 = vsel %vm2728, %v2758, %v2759
        %v2761 = vrot.slane %v2759, 4
        %v2762 = vrot.slane %v2638, 5
        %v2763 = vsel %vm2728, %v2761, %v2762
        %v2764 = vrot.slane %v2639, 5
        %v2765 = vrot.slane %v2764, 4
        %v2766 = vrot.slane %v2640, 5
        %v2767 = vsel %vm2728, %v2765, %v2766
        %v2768 = vrot.slane %v2766, 4
        %v2769 = vrot.slane %v2641, 5
        %v2770 = vsel %vm2728, %v2768, %v2769
        %v2771 = vrot.slane %v2642, 5
        %v2772 = vrot.slane %v2771, 4
        %v2773 = vrot.slane %v2643, 5
        %v2774 = vsel %vm2728, %v2772, %v2773
        %v2775 = vrot.slane %v2773, 4
        %v2776 = vrot.slane %v2644, 5
        %v2777 = vsel %vm2728, %v2775, %v2776
        %v2778 = vrot.slane %v2645, 5
        %v2779 = vrot.slane %v2778, 4
        %v2780 = vrot.slane %v2646, 5
        %v2781 = vsel %vm2728, %v2779, %v2780
        %v2782 = vrot.slane %v2780, 4
        %v2783 = vrot.slane %v2647, 5
        %v2784 = vsel %vm2728, %v2782, %v2783
        %v2785 = vrot.slane %v2648, 5
        %v2786 = vrot.slane %v2785, 4
        %v2787 = vrot.slane %v2649, 5
        %v2788 = vsel %vm2728, %v2786, %v2787
        %v2789 = vrot.slane %v2787, 4
        %v2790 = vrot.slane %v2650, 5
        %v2791 = vsel %vm2728, %v2789, %v2790
        %v2792 = vrot.slane %v2651, 5
        %v2793 = vrot.slane %v2792, 4
        %v2794 = vrot.slane %v2652, 5
        %v2795 = vsel %vm2728, %v2793, %v2794
        %v2796 = vrot.slane %v2794, 4
        %v2797 = vrot.slane %v2653, 5
        %v2798 = vsel %vm2728, %v2796, %v2797
        %v2799 = vrot.slane %v2654, 5
        %v2800 = vrot.slane %v2799, 4
        %v2801 = vrot.slane %v2655, 5
        %v2802 = vsel %vm2728, %v2800, %v2801
        %v2803 = vrot.slane %v2801, 4
        %v2804 = vrot.slane %v2656, 5
        %v2805 = vsel %vm2728, %v2803, %v2804
        %v2806 = vrot.slane %v2657, 5
        %v2807 = vrot.slane %v2806, 4
        %v2808 = vrot.slane %v2658, 5
        %v2809 = vsel %vm2728, %v2807, %v2808
        %v2810 = vrot.slane %v2808, 4
        %v2811 = vrot.slane %v2659, 5
        %v2812 = vsel %vm2728, %v2810, %v2811
        %v2813 = vrot.slane %v2660, 5
        %v2814 = vrot.slane %v2813, 4
        %v2815 = vrot.slane %v2661, 5
        %v2816 = vsel %vm2728, %v2814, %v2815
        %v2817 = vrot.slane %v2815, 4
        %v2818 = vrot.slane %v2662, 5
        %v2819 = vsel %vm2728, %v2817, %v2818
        %v2820 = vrot.slane %v2663, 5
        %v2821 = vrot.slane %v2820, 4
        %v2822 = vrot.slane %v2664, 5
        %v2823 = vsel %vm2728, %v2821, %v2822
        %v2824 = vrot.slane %v2822, 4
        %v2825 = vrot.slane %v2665, 5
        %v2826 = vsel %vm2728, %v2824, %v2825
        %v2827 = vrot.slane %v2666, 5
        %v2828 = vrot.slane %v2827, 4
        %v2829 = vrot.slane %v2667, 5
        %v2830 = vsel %vm2728, %v2828, %v2829
        %v2831 = vrot.slane %v2829, 4
        %v2832 = vrot.slane %v2668, 5
        %v2833 = vsel %vm2728, %v2831, %v2832
        %v2834 = vrot.slane %v2669, 5
        %v2835 = vrot.slane %v2834, 4
        %v2836 = vrot.slane %v2670, 5
        %v2837 = vsel %vm2728, %v2835, %v2836
        %v2838 = vrot.slane %v2836, 4
        %v2839 = vrot.slane %v2671, 5
        %v2840 = vsel %vm2728, %v2838, %v2839
        %v2841 = vld [vmem:[#allocation2] sm:$0xff]
        %v2842 = vld [vmem:[#allocation2 + $0x8] sm:$0xff]
        %v2843 = vld [vmem:[#allocation2 + $0x10] sm:$0xff]
        %v2844 = vld [vmem:[#allocation2 + $0x18] sm:$0xff]
        %v2845 = vld [vmem:[#allocation2 + $0x20] sm:$0xff]
        %v2846 = vld [vmem:[#allocation2 + $0x28] sm:$0xff]
        %v2847 = vld [vmem:[#allocation2 + $0x30] sm:$0xff]
        %v2848 = vld [vmem:[#allocation2 + $0x38] sm:$0xff]
        %v2849 = vld [vmem:[#allocation2 + $0x40] sm:$0xff]
        %v2850 = vld [vmem:[#allocation2 + $0x48] sm:$0xff]
        %v2851 = vld [vmem:[#allocation2 + $0x50] sm:$0xff]
        %v2852 = vld [vmem:[#allocation2 + $0x58] sm:$0xff]
        %v2853 = vld [vmem:[#allocation2 + $0x60] sm:$0xff]
        %v2854 = vld [vmem:[#allocation2 + $0x68] sm:$0xff]
        %v2855 = vld [vmem:[#allocation2 + $0x70] sm:$0xff]
        %v2856 = vld [vmem:[#allocation2 + $0x78] sm:$0xff]
        %v2857 = vld [vmem:[#allocation2 + $0x80] sm:$0xff]
        %v2858 = vld [vmem:[#allocation2 + $0x88] sm:$0xff]
        %v2859 = vld [vmem:[#allocation2 + $0x90] sm:$0xff]
        %v2860 = vld [vmem:[#allocation2 + $0x98] sm:$0xff]
        %v2861 = vld [vmem:[#allocation2 + $0xa0] sm:$0xff]
        %v2862 = vld [vmem:[#allocation2 + $0xa8] sm:$0xff]
        %v2863 = vld [vmem:[#allocation2 + $0xb0] sm:$0xff]
        %v2864 = vld [vmem:[#allocation2 + $0xb8] sm:$0xff]
        %v2865 = vld [vmem:[#allocation2 + $0xc0] sm:$0xff]
        %v2866 = vld [vmem:[#allocation2 + $0xc8] sm:$0xff]
        %v2867 = vld [vmem:[#allocation2 + $0xd0] sm:$0xff]
        %v2868 = vld [vmem:[#allocation2 + $0xd8] sm:$0xff]
        %v2869 = vld [vmem:[#allocation2 + $0xe0] sm:$0xff]
        %v2870 = vld [vmem:[#allocation2 + $0xe8] sm:$0xff]
        %v2871 = vld [vmem:[#allocation2 + $0xf0] sm:$0xff]
        %v2872 = vld [vmem:[#allocation2 + $0xf8] sm:$0xff]
        %s2873 = scalar_lea.vmem %s1, 8
        %v2874 = vld [vmem:[%s2873] sm:$0xf]
        %v2875 = vunpack.c.l.b16 %v2732
        %v2876 = vunpack.c.l.b16 %v2735
        %v2877 = vunpack.c.l.b16 %v2739
        %v2878 = vunpack.c.l.b16 %v2742
        %v2879 = vunpack.c.l.b16 %v2746
        %v2880 = vunpack.c.l.b16 %v2749
        %v2881 = vunpack.c.l.b16 %v2753
        %v2882 = vunpack.c.l.b16 %v2756
        %v2883 = vunpack.c.l.b16 %v2760
        %v2884 = vunpack.c.l.b16 %v2763
        %v2885 = vunpack.c.l.b16 %v2767
        %v2886 = vunpack.c.l.b16 %v2770
        %v2887 = vunpack.c.l.b16 %v2774
        %v2888 = vunpack.c.l.b16 %v2777
        %v2889 = vunpack.c.l.b16 %v2781
        %v2890 = vunpack.c.l.b16 %v2784
        %v2891 = vunpack.c.l.b16 %v2788
        %v2892 = vunpack.c.l.b16 %v2791
        %v2893 = vunpack.c.l.b16 %v2795
        %v2894 = vunpack.c.l.b16 %v2798
        %v2895 = vunpack.c.l.b16 %v2802
        %v2896 = vunpack.c.l.b16 %v2805
        %v2897 = vunpack.c.l.b16 %v2809
        %v2898 = vunpack.c.l.b16 %v2812
        %v2899 = vunpack.c.l.b16 %v2816
        %v2900 = vunpack.c.l.b16 %v2819
        %v2901 = vunpack.c.l.b16 %v2823
        %v2902 = vunpack.c.l.b16 %v2826
        %v2903 = vunpack.c.l.b16 %v2830
        %v2904 = vunpack.c.l.b16 %v2833
        %v2905 = vunpack.c.l.b16 %v2837
        %v2906 = vunpack.c.l.b16 %v2840
        %v2907 = vpack.c.b16 %v2876, %v2875
        %v2908 = vpack.c.b16 %v2878, %v2877
        %v2909 = vpack.c.b16 %v2880, %v2879
        %v2910 = vpack.c.b16 %v2882, %v2881
        %v2911 = vpack.c.b16 %v2884, %v2883
        %v2912 = vpack.c.b16 %v2886, %v2885
        %v2913 = vpack.c.b16 %v2888, %v2887
        %v2914 = vpack.c.b16 %v2890, %v2889
        %v2915 = vpack.c.b16 %v2892, %v2891
        %v2916 = vpack.c.b16 %v2894, %v2893
        %v2917 = vpack.c.b16 %v2896, %v2895
        %v2918 = vpack.c.b16 %v2898, %v2897
        %v2919 = vpack.c.b16 %v2900, %v2899
        %v2920 = vpack.c.b16 %v2902, %v2901
        %v2921 = vpack.c.b16 %v2904, %v2903
        %v2922 = vpack.c.b16 %v2906, %v2905
        %v2924 = vsel %vm359, %v2907, 0
        %v2927 = vsel %vm359, %v2908, 0
        %v2930 = vsel %vm359, %v2909, 0
        %v2933 = vsel %vm359, %v2910, 0
        %v2936 = vsel %vm359, %v2911, 0
        %v2939 = vsel %vm359, %v2912, 0
        %v2942 = vsel %vm359, %v2913, 0
        %v2945 = vsel %vm359, %v2914, 0
        %v2948 = vsel %vm359, %v2915, 0
        %v2951 = vsel %vm359, %v2916, 0
        %v2954 = vsel %vm359, %v2917, 0
        %v2957 = vsel %vm359, %v2918, 0
        %v2960 = vsel %vm359, %v2919, 0
        %v2963 = vsel %vm359, %v2920, 0
        %v2966 = vsel %vm359, %v2921, 0
        %v2969 = vsel %vm359, %v2922, 0
        %v2972 = vsel %vm408, %v2874, 0
        %2974 = vmatprep.subr.bf16.mxu0 0
        %2975 = vmatpush1.bf16.msra.mxu0 0
        %2976 = vmatprep.subr.bf16.mxu0 0
        %2977 = vmatpush1.bf16.msra.mxu0 0
        %2978 = vmatprep.subr.bf16.mxu0 0
        %2979 = vmatpush1.bf16.msra.mxu0 0
        %2980 = vmatprep.subr.bf16.mxu0 0
        %2981 = vmatpush1.bf16.msra.mxu0 0
        %2982 = vmatprep.subr.bf16.mxu0 0
        %2983 = vmatpush1.bf16.msra.mxu0 0
        %2984 = vmatprep.subr.bf16.mxu0 0
        %2985 = vmatpush1.bf16.msra.mxu0 0
        %2986 = vmatprep.subr.bf16.mxu0 0
        %2987 = vmatpush1.bf16.msra.mxu0 0
        %2988 = vmatprep.subr.bf16.mxu0 0
        %2989 = vmatpush1.bf16.msra.mxu0 %v2972
        %2990 = vmatprep.subr.bf16.mxu0 0
        %2991 = vmatpush2.bf16.msra.mxu0 0
        %2992 = vmatprep.subr.bf16.mxu0 0
        %2993 = vmatpush2.bf16.msra.mxu0 0
        %2994 = vmatprep.subr.bf16.mxu0 0
        %2995 = vmatpush2.bf16.msra.mxu0 0
        %2996 = vmatprep.subr.bf16.mxu0 0
        %2997 = vmatpush2.bf16.msra.mxu0 0
        %2998 = vmatprep.subr.bf16.mxu0 0
        %2999 = vmatpush2.bf16.msra.mxu0 0
        %3000 = vmatprep.subr.bf16.mxu0 0
        %3001 = vmatpush2.bf16.msra.mxu0 0
        %3002 = vmatprep.subr.bf16.mxu0 0
        %3003 = vmatpush2.bf16.msra.mxu0 0
        %3004 = vmatprep.subr.bf16.mxu0 0
        %3005 = vmatpush2.bf16.msra.mxu0 0
        %3006 = vmatprep.mubr.bf16.mxu0 0
        %3007 = vmatmul.mubr.bf16.gmra.mxu0 %v2924
        %v3008 = vpop.f32.mrf.mxu0
        %v3009 = vadd.f32 0.0, %v3008
        %v3010 = vpop.f32.mrf.mxu0
        %v3011 = vpop.f32.mrf.mxu0
        %v3012 = vadd.f32 0.0, %v3011
        %v3013 = vpop.f32.mrf.mxu0
        %3014 = vmatprep.mubr.bf16.mxu0 0
        %3015 = vmatmul.mubr.bf16.gmra.mxu0 %v2927
        %v3016 = vpop.f32.mrf.mxu0
        %v3017 = vadd.f32 0.0, %v3016
        %v3018 = vpop.f32.mrf.mxu0
        %v3019 = vpop.f32.mrf.mxu0
        %v3020 = vadd.f32 0.0, %v3019
        %v3021 = vpop.f32.mrf.mxu0
        %3022 = vmatprep.mubr.bf16.mxu0 0
        %3023 = vmatmul.mubr.bf16.gmra.mxu0 %v2930
        %v3024 = vpop.f32.mrf.mxu0
        %v3025 = vadd.f32 0.0, %v3024
        %v3026 = vpop.f32.mrf.mxu0
        %v3027 = vpop.f32.mrf.mxu0
        %v3028 = vadd.f32 0.0, %v3027
        %v3029 = vpop.f32.mrf.mxu0
        %3030 = vmatprep.mubr.bf16.mxu0 0
        %3031 = vmatmul.mubr.bf16.gmra.mxu0 %v2933
        %v3032 = vpop.f32.mrf.mxu0
        %v3033 = vadd.f32 0.0, %v3032
        %v3034 = vpop.f32.mrf.mxu0
        %v3035 = vpop.f32.mrf.mxu0
        %v3036 = vadd.f32 0.0, %v3035
        %v3037 = vpop.f32.mrf.mxu0
        %3038 = vmatprep.mubr.bf16.mxu0 0
        %3039 = vmatmul.mubr.bf16.gmra.mxu0 %v2936
        %v3040 = vpop.f32.mrf.mxu0
        %v3041 = vadd.f32 0.0, %v3040
        %v3042 = vpop.f32.mrf.mxu0
        %v3043 = vpop.f32.mrf.mxu0
        %v3044 = vadd.f32 0.0, %v3043
        %v3045 = vpop.f32.mrf.mxu0
        %3046 = vmatprep.mubr.bf16.mxu0 0
        %3047 = vmatmul.mubr.bf16.gmra.mxu0 %v2939
        %v3048 = vpop.f32.mrf.mxu0
        %v3049 = vadd.f32 0.0, %v3048
        %v3050 = vpop.f32.mrf.mxu0
        %v3051 = vpop.f32.mrf.mxu0
        %v3052 = vadd.f32 0.0, %v3051
        %v3053 = vpop.f32.mrf.mxu0
        %3054 = vmatprep.mubr.bf16.mxu0 0
        %3055 = vmatmul.mubr.bf16.gmra.mxu0 %v2942
        %v3056 = vpop.f32.mrf.mxu0
        %v3057 = vadd.f32 0.0, %v3056
        %v3058 = vpop.f32.mrf.mxu0
        %v3059 = vpop.f32.mrf.mxu0
        %v3060 = vadd.f32 0.0, %v3059
        %v3061 = vpop.f32.mrf.mxu0
        %3062 = vmatprep.mubr.bf16.mxu0 0
        %3063 = vmatmul.mubr.bf16.gmra.mxu0 %v2945
        %v3064 = vpop.f32.mrf.mxu0
        %v3065 = vadd.f32 0.0, %v3064
        %v3066 = vpop.f32.mrf.mxu0
        %v3067 = vpop.f32.mrf.mxu0
        %v3068 = vadd.f32 0.0, %v3067
        %v3069 = vpop.f32.mrf.mxu0
        %3070 = vmatprep.mubr.bf16.mxu0 0
        %3071 = vmatmul.mubr.bf16.gmra.mxu0 %v2948
        %v3072 = vpop.f32.mrf.mxu0
        %v3073 = vadd.f32 0.0, %v3072
        %v3074 = vpop.f32.mrf.mxu0
        %v3075 = vpop.f32.mrf.mxu0
        %v3076 = vadd.f32 0.0, %v3075
        %v3077 = vpop.f32.mrf.mxu0
        %3078 = vmatprep.mubr.bf16.mxu0 0
        %3079 = vmatmul.mubr.bf16.gmra.mxu0 %v2951
        %v3080 = vpop.f32.mrf.mxu0
        %v3081 = vadd.f32 0.0, %v3080
        %v3082 = vpop.f32.mrf.mxu0
        %v3083 = vpop.f32.mrf.mxu0
        %v3084 = vadd.f32 0.0, %v3083
        %v3085 = vpop.f32.mrf.mxu0
        %3086 = vmatprep.mubr.bf16.mxu0 0
        %3087 = vmatmul.mubr.bf16.gmra.mxu0 %v2954
        %v3088 = vpop.f32.mrf.mxu0
        %v3089 = vadd.f32 0.0, %v3088
        %v3090 = vpop.f32.mrf.mxu0
        %v3091 = vpop.f32.mrf.mxu0
        %v3092 = vadd.f32 0.0, %v3091
        %v3093 = vpop.f32.mrf.mxu0
        %3094 = vmatprep.mubr.bf16.mxu0 0
        %3095 = vmatmul.mubr.bf16.gmra.mxu0 %v2957
        %v3096 = vpop.f32.mrf.mxu0
        %v3097 = vadd.f32 0.0, %v3096
        %v3098 = vpop.f32.mrf.mxu0
        %v3099 = vpop.f32.mrf.mxu0
        %v3100 = vadd.f32 0.0, %v3099
        %v3101 = vpop.f32.mrf.mxu0
        %3102 = vmatprep.mubr.bf16.mxu0 0
        %3103 = vmatmul.mubr.bf16.gmra.mxu0 %v2960
        %v3104 = vpop.f32.mrf.mxu0
        %v3105 = vadd.f32 0.0, %v3104
        %v3106 = vpop.f32.mrf.mxu0
        %v3107 = vpop.f32.mrf.mxu0
        %v3108 = vadd.f32 0.0, %v3107
        %v3109 = vpop.f32.mrf.mxu0
        %3110 = vmatprep.mubr.bf16.mxu0 0
        %3111 = vmatmul.mubr.bf16.gmra.mxu0 %v2963
        %v3112 = vpop.f32.mrf.mxu0
        %v3113 = vadd.f32 0.0, %v3112
        %v3114 = vpop.f32.mrf.mxu0
        %v3115 = vpop.f32.mrf.mxu0
        %v3116 = vadd.f32 0.0, %v3115
        %v3117 = vpop.f32.mrf.mxu0
        %3118 = vmatprep.mubr.bf16.mxu0 0
        %3119 = vmatmul.mubr.bf16.gmra.mxu0 %v2966
        %v3120 = vpop.f32.mrf.mxu0
        %v3121 = vadd.f32 0.0, %v3120
        %v3122 = vpop.f32.mrf.mxu0
        %v3123 = vpop.f32.mrf.mxu0
        %v3124 = vadd.f32 0.0, %v3123
        %v3125 = vpop.f32.mrf.mxu0
        %3126 = vmatprep.mubr.bf16.mxu0 0
        %3127 = vmatmul.mubr.bf16.gmra.mxu0 %v2969
        %v3128 = vpop.f32.mrf.mxu0
        %v3129 = vadd.f32 0.0, %v3128
        %v3130 = vpop.f32.mrf.mxu0
        %v3131 = vpop.f32.mrf.mxu0
        %v3132 = vadd.f32 0.0, %v3131
        %v3133 = vpop.f32.mrf.mxu0
        %3134 = vdwg.mxu0
        %v3135 = vadd.f32 %v2841, %v3009
        %v3136 = vadd.f32 %v2842, %v3012
        %v3137 = vadd.f32 %v2843, %v3017
        %v3138 = vadd.f32 %v2844, %v3020
        %v3139 = vadd.f32 %v2845, %v3025
        %v3140 = vadd.f32 %v2846, %v3028
        %v3141 = vadd.f32 %v2847, %v3033
        %v3142 = vadd.f32 %v2848, %v3036
        %v3143 = vadd.f32 %v2849, %v3041
        %v3144 = vadd.f32 %v2850, %v3044
        %v3145 = vadd.f32 %v2851, %v3049
        %v3146 = vadd.f32 %v2852, %v3052
        %v3147 = vadd.f32 %v2853, %v3057
        %v3148 = vadd.f32 %v2854, %v3060
        %v3149 = vadd.f32 %v2855, %v3065
        %v3150 = vadd.f32 %v2856, %v3068
        %v3151 = vadd.f32 %v2857, %v3073
        %v3152 = vadd.f32 %v2858, %v3076
        %v3153 = vadd.f32 %v2859, %v3081
        %v3154 = vadd.f32 %v2860, %v3084
        %v3155 = vadd.f32 %v2861, %v3089
        %v3156 = vadd.f32 %v2862, %v3092
        %v3157 = vadd.f32 %v2863, %v3097
        %v3158 = vadd.f32 %v2864, %v3100
        %v3159 = vadd.f32 %v2865, %v3105
        %v3160 = vadd.f32 %v2866, %v3108
        %v3161 = vadd.f32 %v2867, %v3113
        %v3162 = vadd.f32 %v2868, %v3116
        %v3163 = vadd.f32 %v2869, %v3121
        %v3164 = vadd.f32 %v2870, %v3124
        %v3165 = vadd.f32 %v2871, %v3129
        %v3166 = vadd.f32 %v2872, %v3132
        %3167 = vst [vmem:[#allocation2] sm:$0xff] %v3135
        %3168 = vst [vmem:[#allocation2 + $0x8] sm:$0xff] %v3136
        %3169 = vst [vmem:[#allocation2 + $0x10] sm:$0xff] %v3137
        %3170 = vst [vmem:[#allocation2 + $0x18] sm:$0xff] %v3138
        %3171 = vst [vmem:[#allocation2 + $0x20] sm:$0xff] %v3139
        %3172 = vst [vmem:[#allocation2 + $0x28] sm:$0xff] %v3140
        %3173 = vst [vmem:[#allocation2 + $0x30] sm:$0xff] %v3141
        %3174 = vst [vmem:[#allocation2 + $0x38] sm:$0xff] %v3142
        %3175 = vst [vmem:[#allocation2 + $0x40] sm:$0xff] %v3143
        %3176 = vst [vmem:[#allocation2 + $0x48] sm:$0xff] %v3144
        %3177 = vst [vmem:[#allocation2 + $0x50] sm:$0xff] %v3145
        %3178 = vst [vmem:[#allocation2 + $0x58] sm:$0xff] %v3146
        %3179 = vst [vmem:[#allocation2 + $0x60] sm:$0xff] %v3147
        %3180 = vst [vmem:[#allocation2 + $0x68] sm:$0xff] %v3148
        %3181 = vst [vmem:[#allocation2 + $0x70] sm:$0xff] %v3149
        %3182 = vst [vmem:[#allocation2 + $0x78] sm:$0xff] %v3150
        %3183 = vst [vmem:[#allocation2 + $0x80] sm:$0xff] %v3151
        %3184 = vst [vmem:[#allocation2 + $0x88] sm:$0xff] %v3152
        %3185 = vst [vmem:[#allocation2 + $0x90] sm:$0xff] %v3153
        %3186 = vst [vmem:[#allocation2 + $0x98] sm:$0xff] %v3154
        %3187 = vst [vmem:[#allocation2 + $0xa0] sm:$0xff] %v3155
        %3188 = vst [vmem:[#allocation2 + $0xa8] sm:$0xff] %v3156
        %3189 = vst [vmem:[#allocation2 + $0xb0] sm:$0xff] %v3157
        %3190 = vst [vmem:[#allocation2 + $0xb8] sm:$0xff] %v3158
        %3191 = vst [vmem:[#allocation2 + $0xc0] sm:$0xff] %v3159
        %3192 = vst [vmem:[#allocation2 + $0xc8] sm:$0xff] %v3160
        %3193 = vst [vmem:[#allocation2 + $0xd0] sm:$0xff] %v3161
        %3194 = vst [vmem:[#allocation2 + $0xd8] sm:$0xff] %v3162
        %3195 = vst [vmem:[#allocation2 + $0xe0] sm:$0xff] %v3163
        %3196 = vst [vmem:[#allocation2 + $0xe8] sm:$0xff] %v3164
        %3197 = vst [vmem:[#allocation2 + $0xf0] sm:$0xff] %v3165
        %3198 = vst [vmem:[#allocation2 + $0xf8] sm:$0xff] %v3166
        %v3202 = vrot.slane %v2672, 5
        %v3203 = vrot.slane %v3202, 4
        %v3204 = vrot.slane %v2673, 5
        %v3205 = vsel %vm2728, %v3203, %v3204
        %v3206 = vrot.slane %v3204, 4
        %v3207 = vrot.slane %v2674, 5
        %v3208 = vsel %vm2728, %v3206, %v3207
        %v3209 = vld [vmem:[#allocation2] sm:$0xff]
        %v3210 = vld [vmem:[#allocation2 + $0x8] sm:$0xff]
        %v3211 = vld [vmem:[#allocation2 + $0x10] sm:$0xff]
        %v3212 = vld [vmem:[#allocation2 + $0x18] sm:$0xff]
        %v3213 = vld [vmem:[#allocation2 + $0x20] sm:$0xff]
        %v3214 = vld [vmem:[#allocation2 + $0x28] sm:$0xff]
        %v3215 = vld [vmem:[#allocation2 + $0x30] sm:$0xff]
        %v3216 = vld [vmem:[#allocation2 + $0x38] sm:$0xff]
        %v3217 = vld [vmem:[#allocation2 + $0x40] sm:$0xff]
        %v3218 = vld [vmem:[#allocation2 + $0x48] sm:$0xff]
        %v3219 = vld [vmem:[#allocation2 + $0x50] sm:$0xff]
        %v3220 = vld [vmem:[#allocation2 + $0x58] sm:$0xff]
        %v3221 = vld [vmem:[#allocation2 + $0x60] sm:$0xff]
        %v3222 = vld [vmem:[#allocation2 + $0x68] sm:$0xff]
        %v3223 = vld [vmem:[#allocation2 + $0x70] sm:$0xff]
        %v3224 = vld [vmem:[#allocation2 + $0x78] sm:$0xff]
        %v3225 = vld [vmem:[#allocation2 + $0x80] sm:$0xff]
        %v3226 = vld [vmem:[#allocation2 + $0x88] sm:$0xff]
        %v3227 = vld [vmem:[#allocation2 + $0x90] sm:$0xff]
        %v3228 = vld [vmem:[#allocation2 + $0x98] sm:$0xff]
        %v3229 = vld [vmem:[#allocation2 + $0xa0] sm:$0xff]
        %v3230 = vld [vmem:[#allocation2 + $0xa8] sm:$0xff]
        %v3231 = vld [vmem:[#allocation2 + $0xb0] sm:$0xff]
        %v3232 = vld [vmem:[#allocation2 + $0xb8] sm:$0xff]
        %v3233 = vld [vmem:[#allocation2 + $0xc0] sm:$0xff]
        %v3234 = vld [vmem:[#allocation2 + $0xc8] sm:$0xff]
        %v3235 = vld [vmem:[#allocation2 + $0xd0] sm:$0xff]
        %v3236 = vld [vmem:[#allocation2 + $0xd8] sm:$0xff]
        %v3237 = vld [vmem:[#allocation2 + $0xe0] sm:$0xff]
        %v3238 = vld [vmem:[#allocation2 + $0xe8] sm:$0xff]
        %v3239 = vld [vmem:[#allocation2 + $0xf0] sm:$0xff]
        %v3240 = vld [vmem:[#allocation2 + $0xf8] sm:$0xff]
        %s3241 = scalar_lea.vmem %s1, 20
        %v3242 = vld [vmem:[%s3241] sm:$0xf]
        %v3243 = vunpack.c.l.b16 %v3205
        %v3244 = vunpack.c.l.b16 %v3208
        %v3245 = vpack.c.b16 %v3244, %v3243
        %v3247 = vsel %vm359, %v3245, 0
        %v3250 = vsel %vm408, %v3242, 0
        %3252 = vmatprep.subr.bf16.mxu0 0
        %3253 = vmatpush1.bf16.msra.mxu0 0
        %3254 = vmatprep.subr.bf16.mxu0 0
        %3255 = vmatpush1.bf16.msra.mxu0 0
        %3256 = vmatprep.subr.bf16.mxu0 0
        %3257 = vmatpush1.bf16.msra.mxu0 0
        %3258 = vmatprep.subr.bf16.mxu0 0
        %3259 = vmatpush1.bf16.msra.mxu0 0
        %3260 = vmatprep.subr.bf16.mxu0 0
        %3261 = vmatpush1.bf16.msra.mxu0 0
        %3262 = vmatprep.subr.bf16.mxu0 0
        %3263 = vmatpush1.bf16.msra.mxu0 0
        %3264 = vmatprep.subr.bf16.mxu0 0
        %3265 = vmatpush1.bf16.msra.mxu0 0
        %3266 = vmatprep.subr.bf16.mxu0 0
        %3267 = vmatpush1.bf16.msra.mxu0 %v3250
        %3268 = vmatprep.subr.bf16.mxu0 0
        %3269 = vmatpush2.bf16.msra.mxu0 0
        %3270 = vmatprep.subr.bf16.mxu0 0
        %3271 = vmatpush2.bf16.msra.mxu0 0
        %3272 = vmatprep.subr.bf16.mxu0 0
        %3273 = vmatpush2.bf16.msra.mxu0 0
        %3274 = vmatprep.subr.bf16.mxu0 0
        %3275 = vmatpush2.bf16.msra.mxu0 0
        %3276 = vmatprep.subr.bf16.mxu0 0
        %3277 = vmatpush2.bf16.msra.mxu0 0
        %3278 = vmatprep.subr.bf16.mxu0 0
        %3279 = vmatpush2.bf16.msra.mxu0 0
        %3280 = vmatprep.subr.bf16.mxu0 0
        %3281 = vmatpush2.bf16.msra.mxu0 0
        %3282 = vmatprep.subr.bf16.mxu0 0
        %3283 = vmatpush2.bf16.msra.mxu0 0
        %3284 = vmatprep.mubr.bf16.mxu0 0
        %3285 = vmatmul.mubr.bf16.gmra.mxu0 %v2927
        %v3286 = vpop.f32.mrf.mxu0
        %v3287 = vadd.f32 0.0, %v3286
        %v3288 = vpop.f32.mrf.mxu0
        %v3289 = vpop.f32.mrf.mxu0
        %v3290 = vadd.f32 0.0, %v3289
        %v3291 = vpop.f32.mrf.mxu0
        %3292 = vmatprep.mubr.bf16.mxu0 0
        %3293 = vmatmul.mubr.bf16.gmra.mxu0 %v2930
        %v3294 = vpop.f32.mrf.mxu0
        %v3295 = vadd.f32 0.0, %v3294
        %v3296 = vpop.f32.mrf.mxu0
        %v3297 = vpop.f32.mrf.mxu0
        %v3298 = vadd.f32 0.0, %v3297
        %v3299 = vpop.f32.mrf.mxu0
        %3300 = vmatprep.mubr.bf16.mxu0 0
        %3301 = vmatmul.mubr.bf16.gmra.mxu0 %v2933
        %v3302 = vpop.f32.mrf.mxu0
        %v3303 = vadd.f32 0.0, %v3302
        %v3304 = vpop.f32.mrf.mxu0
        %v3305 = vpop.f32.mrf.mxu0
        %v3306 = vadd.f32 0.0, %v3305
        %v3307 = vpop.f32.mrf.mxu0
        %3308 = vmatprep.mubr.bf16.mxu0 0
        %3309 = vmatmul.mubr.bf16.gmra.mxu0 %v2936
        %v3310 = vpop.f32.mrf.mxu0
        %v3311 = vadd.f32 0.0, %v3310
        %v3312 = vpop.f32.mrf.mxu0
        %v3313 = vpop.f32.mrf.mxu0
        %v3314 = vadd.f32 0.0, %v3313
        %v3315 = vpop.f32.mrf.mxu0
        %3316 = vmatprep.mubr.bf16.mxu0 0
        %3317 = vmatmul.mubr.bf16.gmra.mxu0 %v2939
        %v3318 = vpop.f32.mrf.mxu0
        %v3319 = vadd.f32 0.0, %v3318
        %v3320 = vpop.f32.mrf.mxu0
        %v3321 = vpop.f32.mrf.mxu0
        %v3322 = vadd.f32 0.0, %v3321
        %v3323 = vpop.f32.mrf.mxu0
        %3324 = vmatprep.mubr.bf16.mxu0 0
        %3325 = vmatmul.mubr.bf16.gmra.mxu0 %v2942
        %v3326 = vpop.f32.mrf.mxu0
        %v3327 = vadd.f32 0.0, %v3326
        %v3328 = vpop.f32.mrf.mxu0
        %v3329 = vpop.f32.mrf.mxu0
        %v3330 = vadd.f32 0.0, %v3329
        %v3331 = vpop.f32.mrf.mxu0
        %3332 = vmatprep.mubr.bf16.mxu0 0
        %3333 = vmatmul.mubr.bf16.gmra.mxu0 %v2945
        %v3334 = vpop.f32.mrf.mxu0
        %v3335 = vadd.f32 0.0, %v3334
        %v3336 = vpop.f32.mrf.mxu0
        %v3337 = vpop.f32.mrf.mxu0
        %v3338 = vadd.f32 0.0, %v3337
        %v3339 = vpop.f32.mrf.mxu0
        %3340 = vmatprep.mubr.bf16.mxu0 0
        %3341 = vmatmul.mubr.bf16.gmra.mxu0 %v2948
        %v3342 = vpop.f32.mrf.mxu0
        %v3343 = vadd.f32 0.0, %v3342
        %v3344 = vpop.f32.mrf.mxu0
        %v3345 = vpop.f32.mrf.mxu0
        %v3346 = vadd.f32 0.0, %v3345
        %v3347 = vpop.f32.mrf.mxu0
        %3348 = vmatprep.mubr.bf16.mxu0 0
        %3349 = vmatmul.mubr.bf16.gmra.mxu0 %v2951
        %v3350 = vpop.f32.mrf.mxu0
        %v3351 = vadd.f32 0.0, %v3350
        %v3352 = vpop.f32.mrf.mxu0
        %v3353 = vpop.f32.mrf.mxu0
        %v3354 = vadd.f32 0.0, %v3353
        %v3355 = vpop.f32.mrf.mxu0
        %3356 = vmatprep.mubr.bf16.mxu0 0
        %3357 = vmatmul.mubr.bf16.gmra.mxu0 %v2954
        %v3358 = vpop.f32.mrf.mxu0
        %v3359 = vadd.f32 0.0, %v3358
        %v3360 = vpop.f32.mrf.mxu0
        %v3361 = vpop.f32.mrf.mxu0
        %v3362 = vadd.f32 0.0, %v3361
        %v3363 = vpop.f32.mrf.mxu0
        %3364 = vmatprep.mubr.bf16.mxu0 0
        %3365 = vmatmul.mubr.bf16.gmra.mxu0 %v2957
        %v3366 = vpop.f32.mrf.mxu0
        %v3367 = vadd.f32 0.0, %v3366
        %v3368 = vpop.f32.mrf.mxu0
        %v3369 = vpop.f32.mrf.mxu0
        %v3370 = vadd.f32 0.0, %v3369
        %v3371 = vpop.f32.mrf.mxu0
        %3372 = vmatprep.mubr.bf16.mxu0 0
        %3373 = vmatmul.mubr.bf16.gmra.mxu0 %v2960
        %v3374 = vpop.f32.mrf.mxu0
        %v3375 = vadd.f32 0.0, %v3374
        %v3376 = vpop.f32.mrf.mxu0
        %v3377 = vpop.f32.mrf.mxu0
        %v3378 = vadd.f32 0.0, %v3377
        %v3379 = vpop.f32.mrf.mxu0
        %3380 = vmatprep.mubr.bf16.mxu0 0
        %3381 = vmatmul.mubr.bf16.gmra.mxu0 %v2963
        %v3382 = vpop.f32.mrf.mxu0
        %v3383 = vadd.f32 0.0, %v3382
        %v3384 = vpop.f32.mrf.mxu0
        %v3385 = vpop.f32.mrf.mxu0
        %v3386 = vadd.f32 0.0, %v3385
        %v3387 = vpop.f32.mrf.mxu0
        %3388 = vmatprep.mubr.bf16.mxu0 0
        %3389 = vmatmul.mubr.bf16.gmra.mxu0 %v2966
        %v3390 = vpop.f32.mrf.mxu0
        %v3391 = vadd.f32 0.0, %v3390
        %v3392 = vpop.f32.mrf.mxu0
        %v3393 = vpop.f32.mrf.mxu0
        %v3394 = vadd.f32 0.0, %v3393
        %v3395 = vpop.f32.mrf.mxu0
        %3396 = vmatprep.mubr.bf16.mxu0 0
        %3397 = vmatmul.mubr.bf16.gmra.mxu0 %v2969
        %v3398 = vpop.f32.mrf.mxu0
        %v3399 = vadd.f32 0.0, %v3398
        %v3400 = vpop.f32.mrf.mxu0
        %v3401 = vpop.f32.mrf.mxu0
        %v3402 = vadd.f32 0.0, %v3401
        %v3403 = vpop.f32.mrf.mxu0
        %3404 = vmatprep.mubr.bf16.mxu0 0
        %3405 = vmatmul.mubr.bf16.gmra.mxu0 %v3247
        %v3406 = vpop.f32.mrf.mxu0
        %v3407 = vadd.f32 0.0, %v3406
        %v3408 = vpop.f32.mrf.mxu0
        %v3409 = vpop.f32.mrf.mxu0
        %v3410 = vadd.f32 0.0, %v3409
        %v3411 = vpop.f32.mrf.mxu0
        %3412 = vdwg.mxu0
        %v3413 = vadd.f32 %v3209, %v3287
        %v3414 = vadd.f32 %v3210, %v3290
        %v3415 = vadd.f32 %v3211, %v3295
        %v3416 = vadd.f32 %v3212, %v3298
        %v3417 = vadd.f32 %v3213, %v3303
        %v3418 = vadd.f32 %v3214, %v3306
        %v3419 = vadd.f32 %v3215, %v3311
        %v3420 = vadd.f32 %v3216, %v3314
        %v3421 = vadd.f32 %v3217, %v3319
        %v3422 = vadd.f32 %v3218, %v3322
        %v3423 = vadd.f32 %v3219, %v3327
        %v3424 = vadd.f32 %v3220, %v3330
        %v3425 = vadd.f32 %v3221, %v3335
        %v3426 = vadd.f32 %v3222, %v3338
        %v3427 = vadd.f32 %v3223, %v3343
        %v3428 = vadd.f32 %v3224, %v3346
        %v3429 = vadd.f32 %v3225, %v3351
        %v3430 = vadd.f32 %v3226, %v3354
        %v3431 = vadd.f32 %v3227, %v3359
        %v3432 = vadd.f32 %v3228, %v3362
        %v3433 = vadd.f32 %v3229, %v3367
        %v3434 = vadd.f32 %v3230, %v3370
        %v3435 = vadd.f32 %v3231, %v3375
        %v3436 = vadd.f32 %v3232, %v3378
        %v3437 = vadd.f32 %v3233, %v3383
        %v3438 = vadd.f32 %v3234, %v3386
        %v3439 = vadd.f32 %v3235, %v3391
        %v3440 = vadd.f32 %v3236, %v3394
        %v3441 = vadd.f32 %v3237, %v3399
        %v3442 = vadd.f32 %v3238, %v3402
        %v3443 = vadd.f32 %v3239, %v3407
        %v3444 = vadd.f32 %v3240, %v3410
        %3445 = vst [vmem:[#allocation2] sm:$0xff] %v3413
        %3446 = vst [vmem:[#allocation2 + $0x8] sm:$0xff] %v3414
        %3447 = vst [vmem:[#allocation2 + $0x10] sm:$0xff] %v3415
        %3448 = vst [vmem:[#allocation2 + $0x18] sm:$0xff] %v3416
        %3449 = vst [vmem:[#allocation2 + $0x20] sm:$0xff] %v3417
        %3450 = vst [vmem:[#allocation2 + $0x28] sm:$0xff] %v3418
        %3451 = vst [vmem:[#allocation2 + $0x30] sm:$0xff] %v3419
        %3452 = vst [vmem:[#allocation2 + $0x38] sm:$0xff] %v3420
        %3453 = vst [vmem:[#allocation2 + $0x40] sm:$0xff] %v3421
        %3454 = vst [vmem:[#allocation2 + $0x48] sm:$0xff] %v3422
        %3455 = vst [vmem:[#allocation2 + $0x50] sm:$0xff] %v3423
        %3456 = vst [vmem:[#allocation2 + $0x58] sm:$0xff] %v3424
        %3457 = vst [vmem:[#allocation2 + $0x60] sm:$0xff] %v3425
        %3458 = vst [vmem:[#allocation2 + $0x68] sm:$0xff] %v3426
        %3459 = vst [vmem:[#allocation2 + $0x70] sm:$0xff] %v3427
        %3460 = vst [vmem:[#allocation2 + $0x78] sm:$0xff] %v3428
        %3461 = vst [vmem:[#allocation2 + $0x80] sm:$0xff] %v3429
        %3462 = vst [vmem:[#allocation2 + $0x88] sm:$0xff] %v3430
        %3463 = vst [vmem:[#allocation2 + $0x90] sm:$0xff] %v3431
        %3464 = vst [vmem:[#allocation2 + $0x98] sm:$0xff] %v3432
        %3465 = vst [vmem:[#allocation2 + $0xa0] sm:$0xff] %v3433
        %3466 = vst [vmem:[#allocation2 + $0xa8] sm:$0xff] %v3434
        %3467 = vst [vmem:[#allocation2 + $0xb0] sm:$0xff] %v3435
        %3468 = vst [vmem:[#allocation2 + $0xb8] sm:$0xff] %v3436
        %3469 = vst [vmem:[#allocation2 + $0xc0] sm:$0xff] %v3437
        %3470 = vst [vmem:[#allocation2 + $0xc8] sm:$0xff] %v3438
        %3471 = vst [vmem:[#allocation2 + $0xd0] sm:$0xff] %v3439
        %3472 = vst [vmem:[#allocation2 + $0xd8] sm:$0xff] %v3440
        %3473 = vst [vmem:[#allocation2 + $0xe0] sm:$0xff] %v3441
        %3474 = vst [vmem:[#allocation2 + $0xe8] sm:$0xff] %v3442
        %3475 = vst [vmem:[#allocation2 + $0xf0] sm:$0xff] %v3443
        %3476 = vst [vmem:[#allocation2 + $0xf8] sm:$0xff] %v3444
        %v3480 = vrot.slane %v2675, 5
        %v3481 = vrot.slane %v3480, 4
        %v3482 = vrot.slane %v2676, 5
        %v3483 = vsel %vm2728, %v3481, %v3482
        %v3484 = vrot.slane %v3482, 4
        %v3485 = vrot.slane %v2677, 5
        %v3486 = vsel %vm2728, %v3484, %v3485
        %v3487 = vld [vmem:[#allocation2] sm:$0xff]
        %v3488 = vld [vmem:[#allocation2 + $0x8] sm:$0xff]
        %v3489 = vld [vmem:[#allocation2 + $0x10] sm:$0xff]
        %v3490 = vld [vmem:[#allocation2 + $0x18] sm:$0xff]
        %v3491 = vld [vmem:[#allocation2 + $0x20] sm:$0xff]
        %v3492 = vld [vmem:[#allocation2 + $0x28] sm:$0xff]
        %v3493 = vld [vmem:[#allocation2 + $0x30] sm:$0xff]
        %v3494 = vld [vmem:[#allocation2 + $0x38] sm:$0xff]
        %v3495 = vld [vmem:[#allocation2 + $0x40] sm:$0xff]
        %v3496 = vld [vmem:[#allocation2 + $0x48] sm:$0xff]
        %v3497 = vld [vmem:[#allocation2 + $0x50] sm:$0xff]
        %v3498 = vld [vmem:[#allocation2 + $0x58] sm:$0xff]
        %v3499 = vld [vmem:[#allocation2 + $0x60] sm:$0xff]
        %v3500 = vld [vmem:[#allocation2 + $0x68] sm:$0xff]
        %v3501 = vld [vmem:[#allocation2 + $0x70] sm:$0xff]
        %v3502 = vld [vmem:[#allocation2 + $0x78] sm:$0xff]
        %v3503 = vld [vmem:[#allocation2 + $0x80] sm:$0xff]
        %v3504 = vld [vmem:[#allocation2 + $0x88] sm:$0xff]
        %v3505 = vld [vmem:[#allocation2 + $0x90] sm:$0xff]
        %v3506 = vld [vmem:[#allocation2 + $0x98] sm:$0xff]
        %v3507 = vld [vmem:[#allocation2 + $0xa0] sm:$0xff]
        %v3508 = vld [vmem:[#allocation2 + $0xa8] sm:$0xff]
        %v3509 = vld [vmem:[#allocation2 + $0xb0] sm:$0xff]
        %v3510 = vld [vmem:[#allocation2 + $0xb8] sm:$0xff]
        %v3511 = vld [vmem:[#allocation2 + $0xc0] sm:$0xff]
        %v3512 = vld [vmem:[#allocation2 + $0xc8] sm:$0xff]
        %v3513 = vld [vmem:[#allocation2 + $0xd0] sm:$0xff]
        %v3514 = vld [vmem:[#allocation2 + $0xd8] sm:$0xff]
        %v3515 = vld [vmem:[#allocation2 + $0xe0] sm:$0xff]
        %v3516 = vld [vmem:[#allocation2 + $0xe8] sm:$0xff]
        %v3517 = vld [vmem:[#allocation2 + $0xf0] sm:$0xff]
        %v3518 = vld [vmem:[#allocation2 + $0xf8] sm:$0xff]
        %s3519 = scalar_lea.vmem %s1, 32
        %v3520 = vld [vmem:[%s3519] sm:$0xf]
        %v3521 = vunpack.c.l.b16 %v3483
        %v3522 = vunpack.c.l.b16 %v3486
        %v3523 = vpack.c.b16 %v3522, %v3521
        %v3525 = vsel %vm359, %v3523, 0
        %v3528 = vsel %vm408, %v3520, 0
        %3530 = vmatprep.subr.bf16.mxu0 0
        %3531 = vmatpush1.bf16.msra.mxu0 0
        %3532 = vmatprep.subr.bf16.mxu0 0
        %3533 = vmatpush1.bf16.msra.mxu0 0
        %3534 = vmatprep.subr.bf16.mxu0 0
        %3535 = vmatpush1.bf16.msra.mxu0 0
        %3536 = vmatprep.subr.bf16.mxu0 0
        %3537 = vmatpush1.bf16.msra.mxu0 0
        %3538 = vmatprep.subr.bf16.mxu0 0
        %3539 = vmatpush1.bf16.msra.mxu0 0
        %3540 = vmatprep.subr.bf16.mxu0 0
        %3541 = vmatpush1.bf16.msra.mxu0 0
        %3542 = vmatprep.subr.bf16.mxu0 0
        %3543 = vmatpush1.bf16.msra.mxu0 0
        %3544 = vmatprep.subr.bf16.mxu0 0
        %3545 = vmatpush1.bf16.msra.mxu0 %v3528
        %3546 = vmatprep.subr.bf16.mxu0 0
        %3547 = vmatpush2.bf16.msra.mxu0 0
        %3548 = vmatprep.subr.bf16.mxu0 0
        %3549 = vmatpush2.bf16.msra.mxu0 0
        %3550 = vmatprep.subr.bf16.mxu0 0
        %3551 = vmatpush2.bf16.msra.mxu0 0
        %3552 = vmatprep.subr.bf16.mxu0 0
        %3553 = vmatpush2.bf16.msra.mxu0 0
        %3554 = vmatprep.subr.bf16.mxu0 0
        %3555 = vmatpush2.bf16.msra.mxu0 0
        %3556 = vmatprep.subr.bf16.mxu0 0
        %3557 = vmatpush2.bf16.msra.mxu0 0
        %3558 = vmatprep.subr.bf16.mxu0 0
        %3559 = vmatpush2.bf16.msra.mxu0 0
        %3560 = vmatprep.subr.bf16.mxu0 0
        %3561 = vmatpush2.bf16.msra.mxu0 0
        %3562 = vmatprep.mubr.bf16.mxu0 0
        %3563 = vmatmul.mubr.bf16.gmra.mxu0 %v2930
        %v3564 = vpop.f32.mrf.mxu0
        %v3565 = vadd.f32 0.0, %v3564
        %v3566 = vpop.f32.mrf.mxu0
        %v3567 = vpop.f32.mrf.mxu0
        %v3568 = vadd.f32 0.0, %v3567
        %v3569 = vpop.f32.mrf.mxu0
        %3570 = vmatprep.mubr.bf16.mxu0 0
        %3571 = vmatmul.mubr.bf16.gmra.mxu0 %v2933
        %v3572 = vpop.f32.mrf.mxu0
        %v3573 = vadd.f32 0.0, %v3572
        %v3574 = vpop.f32.mrf.mxu0
        %v3575 = vpop.f32.mrf.mxu0
        %v3576 = vadd.f32 0.0, %v3575
        %v3577 = vpop.f32.mrf.mxu0
        %3578 = vmatprep.mubr.bf16.mxu0 0
        %3579 = vmatmul.mubr.bf16.gmra.mxu0 %v2936
        %v3580 = vpop.f32.mrf.mxu0
        %v3581 = vadd.f32 0.0, %v3580
        %v3582 = vpop.f32.mrf.mxu0
        %v3583 = vpop.f32.mrf.mxu0
        %v3584 = vadd.f32 0.0, %v3583
        %v3585 = vpop.f32.mrf.mxu0
        %3586 = vmatprep.mubr.bf16.mxu0 0
        %3587 = vmatmul.mubr.bf16.gmra.mxu0 %v2939
        %v3588 = vpop.f32.mrf.mxu0
        %v3589 = vadd.f32 0.0, %v3588
        %v3590 = vpop.f32.mrf.mxu0
        %v3591 = vpop.f32.mrf.mxu0
        %v3592 = vadd.f32 0.0, %v3591
        %v3593 = vpop.f32.mrf.mxu0
        %3594 = vmatprep.mubr.bf16.mxu0 0
        %3595 = vmatmul.mubr.bf16.gmra.mxu0 %v2942
        %v3596 = vpop.f32.mrf.mxu0
        %v3597 = vadd.f32 0.0, %v3596
        %v3598 = vpop.f32.mrf.mxu0
        %v3599 = vpop.f32.mrf.mxu0
        %v3600 = vadd.f32 0.0, %v3599
        %v3601 = vpop.f32.mrf.mxu0
        %3602 = vmatprep.mubr.bf16.mxu0 0
        %3603 = vmatmul.mubr.bf16.gmra.mxu0 %v2945
        %v3604 = vpop.f32.mrf.mxu0
        %v3605 = vadd.f32 0.0, %v3604
        %v3606 = vpop.f32.mrf.mxu0
        %v3607 = vpop.f32.mrf.mxu0
        %v3608 = vadd.f32 0.0, %v3607
        %v3609 = vpop.f32.mrf.mxu0
        %3610 = vmatprep.mubr.bf16.mxu0 0
        %3611 = vmatmul.mubr.bf16.gmra.mxu0 %v2948
        %v3612 = vpop.f32.mrf.mxu0
        %v3613 = vadd.f32 0.0, %v3612
        %v3614 = vpop.f32.mrf.mxu0
        %v3615 = vpop.f32.mrf.mxu0
        %v3616 = vadd.f32 0.0, %v3615
        %v3617 = vpop.f32.mrf.mxu0
        %3618 = vmatprep.mubr.bf16.mxu0 0
        %3619 = vmatmul.mubr.bf16.gmra.mxu0 %v2951
        %v3620 = vpop.f32.mrf.mxu0
        %v3621 = vadd.f32 0.0, %v3620
        %v3622 = vpop.f32.mrf.mxu0
        %v3623 = vpop.f32.mrf.mxu0
        %v3624 = vadd.f32 0.0, %v3623
        %v3625 = vpop.f32.mrf.mxu0
        %3626 = vmatprep.mubr.bf16.mxu0 0
        %3627 = vmatmul.mubr.bf16.gmra.mxu0 %v2954
        %v3628 = vpop.f32.mrf.mxu0
        %v3629 = vadd.f32 0.0, %v3628
        %v3630 = vpop.f32.mrf.mxu0
        %v3631 = vpop.f32.mrf.mxu0
        %v3632 = vadd.f32 0.0, %v3631
        %v3633 = vpop.f32.mrf.mxu0
        %3634 = vmatprep.mubr.bf16.mxu0 0
        %3635 = vmatmul.mubr.bf16.gmra.mxu0 %v2957
        %v3636 = vpop.f32.mrf.mxu0
        %v3637 = vadd.f32 0.0, %v3636
        %v3638 = vpop.f32.mrf.mxu0
        %v3639 = vpop.f32.mrf.mxu0
        %v3640 = vadd.f32 0.0, %v3639
        %v3641 = vpop.f32.mrf.mxu0
        %3642 = vmatprep.mubr.bf16.mxu0 0
        %3643 = vmatmul.mubr.bf16.gmra.mxu0 %v2960
        %v3644 = vpop.f32.mrf.mxu0
        %v3645 = vadd.f32 0.0, %v3644
        %v3646 = vpop.f32.mrf.mxu0
        %v3647 = vpop.f32.mrf.mxu0
        %v3648 = vadd.f32 0.0, %v3647
        %v3649 = vpop.f32.mrf.mxu0
        %3650 = vmatprep.mubr.bf16.mxu0 0
        %3651 = vmatmul.mubr.bf16.gmra.mxu0 %v2963
        %v3652 = vpop.f32.mrf.mxu0
        %v3653 = vadd.f32 0.0, %v3652
        %v3654 = vpop.f32.mrf.mxu0
        %v3655 = vpop.f32.mrf.mxu0
        %v3656 = vadd.f32 0.0, %v3655
        %v3657 = vpop.f32.mrf.mxu0
        %3658 = vmatprep.mubr.bf16.mxu0 0
        %3659 = vmatmul.mubr.bf16.gmra.mxu0 %v2966
        %v3660 = vpop.f32.mrf.mxu0
        %v3661 = vadd.f32 0.0, %v3660
        %v3662 = vpop.f32.mrf.mxu0
        %v3663 = vpop.f32.mrf.mxu0
        %v3664 = vadd.f32 0.0, %v3663
        %v3665 = vpop.f32.mrf.mxu0
        %3666 = vmatprep.mubr.bf16.mxu0 0
        %3667 = vmatmul.mubr.bf16.gmra.mxu0 %v2969
        %v3668 = vpop.f32.mrf.mxu0
        %v3669 = vadd.f32 0.0, %v3668
        %v3670 = vpop.f32.mrf.mxu0
        %v3671 = vpop.f32.mrf.mxu0
        %v3672 = vadd.f32 0.0, %v3671
        %v3673 = vpop.f32.mrf.mxu0
        %3674 = vmatprep.mubr.bf16.mxu0 0
        %3675 = vmatmul.mubr.bf16.gmra.mxu0 %v3247
        %v3676 = vpop.f32.mrf.mxu0
        %v3677 = vadd.f32 0.0, %v3676
        %v3678 = vpop.f32.mrf.mxu0
        %v3679 = vpop.f32.mrf.mxu0
        %v3680 = vadd.f32 0.0, %v3679
        %v3681 = vpop.f32.mrf.mxu0
        %3682 = vmatprep.mubr.bf16.mxu0 0
        %3683 = vmatmul.mubr.bf16.gmra.mxu0 %v3525
        %v3684 = vpop.f32.mrf.mxu0
        %v3685 = vadd.f32 0.0, %v3684
        %v3686 = vpop.f32.mrf.mxu0
        %v3687 = vpop.f32.mrf.mxu0
        %v3688 = vadd.f32 0.0, %v3687
        %v3689 = vpop.f32.mrf.mxu0
        %3690 = vdwg.mxu0
        %v3691 = vadd.f32 %v3487, %v3565
        %v3692 = vadd.f32 %v3488, %v3568
        %v3693 = vadd.f32 %v3489, %v3573
        %v3694 = vadd.f32 %v3490, %v3576
        %v3695 = vadd.f32 %v3491, %v3581
        %v3696 = vadd.f32 %v3492, %v3584
        %v3697 = vadd.f32 %v3493, %v3589
        %v3698 = vadd.f32 %v3494, %v3592
        %v3699 = vadd.f32 %v3495, %v3597
        %v3700 = vadd.f32 %v3496, %v3600
        %v3701 = vadd.f32 %v3497, %v3605
        %v3702 = vadd.f32 %v3498, %v3608
        %v3703 = vadd.f32 %v3499, %v3613
        %v3704 = vadd.f32 %v3500, %v3616
        %v3705 = vadd.f32 %v3501, %v3621
        %v3706 = vadd.f32 %v3502, %v3624
        %v3707 = vadd.f32 %v3503, %v3629
        %v3708 = vadd.f32 %v3504, %v3632
        %v3709 = vadd.f32 %v3505, %v3637
        %v3710 = vadd.f32 %v3506, %v3640
        %v3711 = vadd.f32 %v3507, %v3645
        %v3712 = vadd.f32 %v3508, %v3648
        %v3713 = vadd.f32 %v3509, %v3653
        %v3714 = vadd.f32 %v3510, %v3656
        %v3715 = vadd.f32 %v3511, %v3661
        %v3716 = vadd.f32 %v3512, %v3664
        %v3717 = vadd.f32 %v3513, %v3669
        %v3718 = vadd.f32 %v3514, %v3672
        %v3719 = vadd.f32 %v3515, %v3677
        %v3720 = vadd.f32 %v3516, %v3680
        %v3721 = vadd.f32 %v3517, %v3685
        %v3722 = vadd.f32 %v3518, %v3688
        %3723 = vst [vmem:[#allocation2] sm:$0xff] %v3691
        %3724 = vst [vmem:[#allocation2 + $0x8] sm:$0xff] %v3692
        %3725 = vst [vmem:[#allocation2 + $0x10] sm:$0xff] %v3693
        %3726 = vst [vmem:[#allocation2 + $0x18] sm:$0xff] %v3694
        %3727 = vst [vmem:[#allocation2 + $0x20] sm:$0xff] %v3695
        %3728 = vst [vmem:[#allocation2 + $0x28] sm:$0xff] %v3696
        %3729 = vst [vmem:[#allocation2 + $0x30] sm:$0xff] %v3697
        %3730 = vst [vmem:[#allocation2 + $0x38] sm:$0xff] %v3698
        %3731 = vst [vmem:[#allocation2 + $0x40] sm:$0xff] %v3699
        %3732 = vst [vmem:[#allocation2 + $0x48] sm:$0xff] %v3700
        %3733 = vst [vmem:[#allocation2 + $0x50] sm:$0xff] %v3701
        %3734 = vst [vmem:[#allocation2 + $0x58] sm:$0xff] %v3702
        %3735 = vst [vmem:[#allocation2 + $0x60] sm:$0xff] %v3703
        %3736 = vst [vmem:[#allocation2 + $0x68] sm:$0xff] %v3704
        %3737 = vst [vmem:[#allocation2 + $0x70] sm:$0xff] %v3705
        %3738 = vst [vmem:[#allocation2 + $0x78] sm:$0xff] %v3706
        %3739 = vst [vmem:[#allocation2 + $0x80] sm:$0xff] %v3707
        %3740 = vst [vmem:[#allocation2 + $0x88] sm:$0xff] %v3708
        %3741 = vst [vmem:[#allocation2 + $0x90] sm:$0xff] %v3709
        %3742 = vst [vmem:[#allocation2 + $0x98] sm:$0xff] %v3710
        %3743 = vst [vmem:[#allocation2 + $0xa0] sm:$0xff] %v3711
        %3744 = vst [vmem:[#allocation2 + $0xa8] sm:$0xff] %v3712
        %3745 = vst [vmem:[#allocation2 + $0xb0] sm:$0xff] %v3713
        %3746 = vst [vmem:[#allocation2 + $0xb8] sm:$0xff] %v3714
        %3747 = vst [vmem:[#allocation2 + $0xc0] sm:$0xff] %v3715
        %3748 = vst [vmem:[#allocation2 + $0xc8] sm:$0xff] %v3716
        %3749 = vst [vmem:[#allocation2 + $0xd0] sm:$0xff] %v3717
        %3750 = vst [vmem:[#allocation2 + $0xd8] sm:$0xff] %v3718
        %3751 = vst [vmem:[#allocation2 + $0xe0] sm:$0xff] %v3719
        %3752 = vst [vmem:[#allocation2 + $0xe8] sm:$0xff] %v3720
        %3753 = vst [vmem:[#allocation2 + $0xf0] sm:$0xff] %v3721
        %3754 = vst [vmem:[#allocation2 + $0xf8] sm:$0xff] %v3722
        %v3755 = vld [vmem:[#allocation2] sm:$0xff]
        %v3756 = vld [vmem:[#allocation2 + $0x8] sm:$0xff]
        %v3757 = vld [vmem:[#allocation2 + $0x10] sm:$0xff]
        %v3758 = vld [vmem:[#allocation2 + $0x18] sm:$0xff]
        %v3759 = vld [vmem:[#allocation2 + $0x20] sm:$0xff]
        %v3760 = vld [vmem:[#allocation2 + $0x28] sm:$0xff]
        %v3761 = vld [vmem:[#allocation2 + $0x30] sm:$0xff]
        %v3762 = vld [vmem:[#allocation2 + $0x38] sm:$0xff]
        %v3763 = vld [vmem:[#allocation2 + $0x40] sm:$0xff]
        %v3764 = vld [vmem:[#allocation2 + $0x48] sm:$0xff]
        %v3765 = vld [vmem:[#allocation2 + $0x50] sm:$0xff]
        %v3766 = vld [vmem:[#allocation2 + $0x58] sm:$0xff]
        %v3767 = vld [vmem:[#allocation2 + $0x60] sm:$0xff]
        %v3768 = vld [vmem:[#allocation2 + $0x68] sm:$0xff]
        %v3769 = vld [vmem:[#allocation2 + $0x70] sm:$0xff]
        %v3770 = vld [vmem:[#allocation2 + $0x78] sm:$0xff]
        %v3771 = vld [vmem:[#allocation2 + $0x80] sm:$0xff]
        %v3772 = vld [vmem:[#allocation2 + $0x88] sm:$0xff]
        %v3773 = vld [vmem:[#allocation2 + $0x90] sm:$0xff]
        %v3774 = vld [vmem:[#allocation2 + $0x98] sm:$0xff]
        %v3775 = vld [vmem:[#allocation2 + $0xa0] sm:$0xff]
        %v3776 = vld [vmem:[#allocation2 + $0xa8] sm:$0xff]
        %v3777 = vld [vmem:[#allocation2 + $0xb0] sm:$0xff]
        %v3778 = vld [vmem:[#allocation2 + $0xb8] sm:$0xff]
        %v3779 = vld [vmem:[#allocation2 + $0xc0] sm:$0xff]
        %v3780 = vld [vmem:[#allocation2 + $0xc8] sm:$0xff]
        %v3781 = vld [vmem:[#allocation2 + $0xd0] sm:$0xff]
        %v3782 = vld [vmem:[#allocation2 + $0xd8] sm:$0xff]
        %v3783 = vld [vmem:[#allocation2 + $0xe0] sm:$0xff]
        %v3784 = vld [vmem:[#allocation2 + $0xe8] sm:$0xff]
        %v3785 = vld [vmem:[#allocation2 + $0xf0] sm:$0xff]
        %v3786 = vld [vmem:[#allocation2 + $0xf8] sm:$0xff]
        %v3787 = vmul.f32 %v2592, %v3755
        %v3788 = vmul.f32 %v2593, %v3756
        %v3789 = vmul.f32 %v2594, %v3757
        %v3790 = vmul.f32 %v2595, %v3758
        %v3791 = vmul.f32 %v2596, %v3759
        %v3792 = vmul.f32 %v2597, %v3760
        %v3793 = vmul.f32 %v2598, %v3761
        %v3794 = vmul.f32 %v2599, %v3762
        %v3795 = vmul.f32 %v2600, %v3763
        %v3796 = vmul.f32 %v2601, %v3764
        %v3797 = vmul.f32 %v2602, %v3765
        %v3798 = vmul.f32 %v2603, %v3766
        %v3799 = vmul.f32 %v2604, %v3767
        %v3800 = vmul.f32 %v2605, %v3768
        %v3801 = vmul.f32 %v2606, %v3769
        %v3802 = vmul.f32 %v2607, %v3770
        %v3803 = vmul.f32 %v2608, %v3771
        %v3804 = vmul.f32 %v2609, %v3772
        %v3805 = vmul.f32 %v2610, %v3773
        %v3806 = vmul.f32 %v2611, %v3774
        %v3807 = vmul.f32 %v2612, %v3775
        %v3808 = vmul.f32 %v2613, %v3776
        %v3809 = vmul.f32 %v2614, %v3777
        %v3810 = vmul.f32 %v2615, %v3778
        %v3811 = vmul.f32 %v2616, %v3779
        %v3812 = vmul.f32 %v2617, %v3780
        %v3813 = vmul.f32 %v2618, %v3781
        %v3814 = vmul.f32 %v2619, %v3782
        %v3815 = vmul.f32 %v2620, %v3783
        %v3816 = vmul.f32 %v2621, %v3784
        %v3817 = vmul.f32 %v2622, %v3785
        %v3818 = vmul.f32 %v2623, %v3786
        %3851 = vrot.lane.b32.xlu0 %v3787, 126
        %v3852 = vpop.permute.xlu0 %3851
        %3853 = vrot.lane.b32.xlu0 %v3788, 126
        %v3854 = vpop.permute.xlu0 %3853
        %3855 = vrot.lane.b32.xlu0 %v3789, 126
        %v3856 = vpop.permute.xlu0 %3855
        %3857 = vrot.lane.b32.xlu0 %v3790, 126
        %v3858 = vpop.permute.xlu0 %3857
        %3859 = vrot.lane.b32.xlu0 %v3791, 126
        %v3860 = vpop.permute.xlu0 %3859
        %3861 = vrot.lane.b32.xlu0 %v3792, 126
        %v3862 = vpop.permute.xlu0 %3861
        %3863 = vrot.lane.b32.xlu0 %v3793, 126
        %v3864 = vpop.permute.xlu0 %3863
        %3865 = vrot.lane.b32.xlu0 %v3794, 126
        %v3866 = vpop.permute.xlu0 %3865
        %3867 = vrot.lane.b32.xlu0 %v3795, 126
        %v3868 = vpop.permute.xlu0 %3867
        %3869 = vrot.lane.b32.xlu0 %v3796, 126
        %v3870 = vpop.permute.xlu0 %3869
        %3871 = vrot.lane.b32.xlu0 %v3797, 126
        %v3872 = vpop.permute.xlu0 %3871
        %3873 = vrot.lane.b32.xlu0 %v3798, 126
        %v3874 = vpop.permute.xlu0 %3873
        %3875 = vrot.lane.b32.xlu0 %v3799, 126
        %v3876 = vpop.permute.xlu0 %3875
        %3877 = vrot.lane.b32.xlu0 %v3800, 126
        %v3878 = vpop.permute.xlu0 %3877
        %3879 = vrot.lane.b32.xlu0 %v3801, 126
        %v3880 = vpop.permute.xlu0 %3879
        %3881 = vrot.lane.b32.xlu0 %v3802, 126
        %v3882 = vpop.permute.xlu0 %3881
        %3883 = vrot.lane.b32.xlu0 %v3803, 126
        %v3884 = vpop.permute.xlu0 %3883
        %3885 = vrot.lane.b32.xlu0 %v3804, 126
        %v3886 = vpop.permute.xlu0 %3885
        %3887 = vrot.lane.b32.xlu0 %v3805, 126
        %v3888 = vpop.permute.xlu0 %3887
        %3889 = vrot.lane.b32.xlu0 %v3806, 126
        %v3890 = vpop.permute.xlu0 %3889
        %3891 = vrot.lane.b32.xlu0 %v3807, 126
        %v3892 = vpop.permute.xlu0 %3891
        %3893 = vrot.lane.b32.xlu0 %v3808, 126
        %v3894 = vpop.permute.xlu0 %3893
        %3895 = vrot.lane.b32.xlu0 %v3809, 126
        %v3896 = vpop.permute.xlu0 %3895
        %3897 = vrot.lane.b32.xlu0 %v3810, 126
        %v3898 = vpop.permute.xlu0 %3897
        %3899 = vrot.lane.b32.xlu0 %v3811, 126
        %v3900 = vpop.permute.xlu0 %3899
        %3901 = vrot.lane.b32.xlu0 %v3812, 126
        %v3902 = vpop.permute.xlu0 %3901
        %3903 = vrot.lane.b32.xlu0 %v3813, 126
        %v3904 = vpop.permute.xlu0 %3903
        %3905 = vrot.lane.b32.xlu0 %v3814, 126
        %v3906 = vpop.permute.xlu0 %3905
        %3907 = vrot.lane.b32.xlu0 %v3815, 126
        %v3908 = vpop.permute.xlu0 %3907
        %3909 = vrot.lane.b32.xlu0 %v3816, 126
        %v3910 = vpop.permute.xlu0 %3909
        %3911 = vrot.lane.b32.xlu0 %v3817, 126
        %v3912 = vpop.permute.xlu0 %3911
        %3913 = vrot.lane.b32.xlu0 %v3818, 126
        %v3914 = vpop.permute.xlu0 %3913
        %v3947 = vsub.f32 %v3787, %v3852
        %v3948 = vsub.f32 %v3788, %v3854
        %v3949 = vsub.f32 %v3789, %v3856
        %v3950 = vsub.f32 %v3790, %v3858
        %v3951 = vsub.f32 %v3791, %v3860
        %v3952 = vsub.f32 %v3792, %v3862
        %v3953 = vsub.f32 %v3793, %v3864
        %v3954 = vsub.f32 %v3794, %v3866
        %v3955 = vsub.f32 %v3795, %v3868
        %v3956 = vsub.f32 %v3796, %v3870
        %v3957 = vsub.f32 %v3797, %v3872
        %v3958 = vsub.f32 %v3798, %v3874
        %v3959 = vsub.f32 %v3799, %v3876
        %v3960 = vsub.f32 %v3800, %v3878
        %v3961 = vsub.f32 %v3801, %v3880
        %v3962 = vsub.f32 %v3802, %v3882
        %v3963 = vsub.f32 %v3803, %v3884
        %v3964 = vsub.f32 %v3804, %v3886
        %v3965 = vsub.f32 %v3805, %v3888
        %v3966 = vsub.f32 %v3806, %v3890
        %v3967 = vsub.f32 %v3807, %v3892
        %v3968 = vsub.f32 %v3808, %v3894
        %v3969 = vsub.f32 %v3809, %v3896
        %v3970 = vsub.f32 %v3810, %v3898
        %v3971 = vsub.f32 %v3811, %v3900
        %v3972 = vsub.f32 %v3812, %v3902
        %v3973 = vsub.f32 %v3813, %v3904
        %v3974 = vsub.f32 %v3814, %v3906
        %v3975 = vsub.f32 %v3815, %v3908
        %v3976 = vsub.f32 %v3816, %v3910
        %v3977 = vsub.f32 %v3817, %v3912
        %v3978 = vsub.f32 %v3818, %v3914
        %3979 = vrot.lane.b32.xlu0 %v3787, 124
        %v3980 = vpop.permute.xlu0 %3979
        %3981 = vrot.lane.b32.xlu0 %v3788, 124
        %v3982 = vpop.permute.xlu0 %3981
        %3983 = vrot.lane.b32.xlu0 %v3789, 124
        %v3984 = vpop.permute.xlu0 %3983
        %3985 = vrot.lane.b32.xlu0 %v3790, 124
        %v3986 = vpop.permute.xlu0 %3985
        %3987 = vrot.lane.b32.xlu0 %v3791, 124
        %v3988 = vpop.permute.xlu0 %3987
        %3989 = vrot.lane.b32.xlu0 %v3792, 124
        %v3990 = vpop.permute.xlu0 %3989
        %3991 = vrot.lane.b32.xlu0 %v3793, 124
        %v3992 = vpop.permute.xlu0 %3991
        %3993 = vrot.lane.b32.xlu0 %v3794, 124
        %v3994 = vpop.permute.xlu0 %3993
        %3995 = vrot.lane.b32.xlu0 %v3795, 124
        %v3996 = vpop.permute.xlu0 %3995
        %3997 = vrot.lane.b32.xlu0 %v3796, 124
        %v3998 = vpop.permute.xlu0 %3997
        %3999 = vrot.lane.b32.xlu0 %v3797, 124
        %v4000 = vpop.permute.xlu0 %3999
        %4001 = vrot.lane.b32.xlu0 %v3798, 124
        %v4002 = vpop.permute.xlu0 %4001
        %4003 = vrot.lane.b32.xlu0 %v3799, 124
        %v4004 = vpop.permute.xlu0 %4003
        %4005 = vrot.lane.b32.xlu0 %v3800, 124
        %v4006 = vpop.permute.xlu0 %4005
        %4007 = vrot.lane.b32.xlu0 %v3801, 124
        %v4008 = vpop.permute.xlu0 %4007
        %4009 = vrot.lane.b32.xlu0 %v3802, 124
        %v4010 = vpop.permute.xlu0 %4009
        %4011 = vrot.lane.b32.xlu0 %v3803, 124
        %v4012 = vpop.permute.xlu0 %4011
        %4013 = vrot.lane.b32.xlu0 %v3804, 124
        %v4014 = vpop.permute.xlu0 %4013
        %4015 = vrot.lane.b32.xlu0 %v3805, 124
        %v4016 = vpop.permute.xlu0 %4015
        %4017 = vrot.lane.b32.xlu0 %v3806, 124
        %v4018 = vpop.permute.xlu0 %4017
        %4019 = vrot.lane.b32.xlu0 %v3807, 124
        %v4020 = vpop.permute.xlu0 %4019
        %4021 = vrot.lane.b32.xlu0 %v3808, 124
        %v4022 = vpop.permute.xlu0 %4021
        %4023 = vrot.lane.b32.xlu0 %v3809, 124
        %v4024 = vpop.permute.xlu0 %4023
        %4025 = vrot.lane.b32.xlu0 %v3810, 124
        %v4026 = vpop.permute.xlu0 %4025
        %4027 = vrot.lane.b32.xlu0 %v3811, 124
        %v4028 = vpop.permute.xlu0 %4027
        %4029 = vrot.lane.b32.xlu0 %v3812, 124
        %v4030 = vpop.permute.xlu0 %4029
        %4031 = vrot.lane.b32.xlu0 %v3813, 124
        %v4032 = vpop.permute.xlu0 %4031
        %4033 = vrot.lane.b32.xlu0 %v3814, 124
        %v4034 = vpop.permute.xlu0 %4033
        %4035 = vrot.lane.b32.xlu0 %v3815, 124
        %v4036 = vpop.permute.xlu0 %4035
        %4037 = vrot.lane.b32.xlu0 %v3816, 124
        %v4038 = vpop.permute.xlu0 %4037
        %4039 = vrot.lane.b32.xlu0 %v3817, 124
        %v4040 = vpop.permute.xlu0 %4039
        %4041 = vrot.lane.b32.xlu0 %v3818, 124
        %v4042 = vpop.permute.xlu0 %4041
        %v4075 = vsub.f32 %v3947, %v3980
        %v4076 = vsub.f32 %v3948, %v3982
        %v4077 = vsub.f32 %v3949, %v3984
        %v4078 = vsub.f32 %v3950, %v3986
        %v4079 = vsub.f32 %v3951, %v3988
        %v4080 = vsub.f32 %v3952, %v3990
        %v4081 = vsub.f32 %v3953, %v3992
        %v4082 = vsub.f32 %v3954, %v3994
        %v4083 = vsub.f32 %v3955, %v3996
        %v4084 = vsub.f32 %v3956, %v3998
        %v4085 = vsub.f32 %v3957, %v4000
        %v4086 = vsub.f32 %v3958, %v4002
        %v4087 = vsub.f32 %v3959, %v4004
        %v4088 = vsub.f32 %v3960, %v4006
        %v4089 = vsub.f32 %v3961, %v4008
        %v4090 = vsub.f32 %v3962, %v4010
        %v4091 = vsub.f32 %v3963, %v4012
        %v4092 = vsub.f32 %v3964, %v4014
        %v4093 = vsub.f32 %v3965, %v4016
        %v4094 = vsub.f32 %v3966, %v4018
        %v4095 = vsub.f32 %v3967, %v4020
        %v4096 = vsub.f32 %v3968, %v4022
        %v4097 = vsub.f32 %v3969, %v4024
        %v4098 = vsub.f32 %v3970, %v4026
        %v4099 = vsub.f32 %v3971, %v4028
        %v4100 = vsub.f32 %v3972, %v4030
        %v4101 = vsub.f32 %v3973, %v4032
        %v4102 = vsub.f32 %v3974, %v4034
        %v4103 = vsub.f32 %v3975, %v4036
        %v4104 = vsub.f32 %v3976, %v4038
        %v4105 = vsub.f32 %v3977, %v4040
        %v4106 = vsub.f32 %v3978, %v4042
        %4107 = vrot.lane.b32.xlu0 %v3787, 122
        %v4108 = vpop.permute.xlu0 %4107
        %4109 = vrot.lane.b32.xlu0 %v3788, 122
        %v4110 = vpop.permute.xlu0 %4109
        %4111 = vrot.lane.b32.xlu0 %v3789, 122
        %v4112 = vpop.permute.xlu0 %4111
        %4113 = vrot.lane.b32.xlu0 %v3790, 122
        %v4114 = vpop.permute.xlu0 %4113
        %4115 = vrot.lane.b32.xlu0 %v3791, 122
        %v4116 = vpop.permute.xlu0 %4115
        %4117 = vrot.lane.b32.xlu0 %v3792, 122
        %v4118 = vpop.permute.xlu0 %4117
        %4119 = vrot.lane.b32.xlu0 %v3793, 122
        %v4120 = vpop.permute.xlu0 %4119
        %4121 = vrot.lane.b32.xlu0 %v3794, 122
        %v4122 = vpop.permute.xlu0 %4121
        %4123 = vrot.lane.b32.xlu0 %v3795, 122
        %v4124 = vpop.permute.xlu0 %4123
        %4125 = vrot.lane.b32.xlu0 %v3796, 122
        %v4126 = vpop.permute.xlu0 %4125
        %4127 = vrot.lane.b32.xlu0 %v3797, 122
        %v4128 = vpop.permute.xlu0 %4127
        %4129 = vrot.lane.b32.xlu0 %v3798, 122
        %v4130 = vpop.permute.xlu0 %4129
        %4131 = vrot.lane.b32.xlu0 %v3799, 122
        %v4132 = vpop.permute.xlu0 %4131
        %4133 = vrot.lane.b32.xlu0 %v3800, 122
        %v4134 = vpop.permute.xlu0 %4133
        %4135 = vrot.lane.b32.xlu0 %v3801, 122
        %v4136 = vpop.permute.xlu0 %4135
        %4137 = vrot.lane.b32.xlu0 %v3802, 122
        %v4138 = vpop.permute.xlu0 %4137
        %4139 = vrot.lane.b32.xlu0 %v3803, 122
        %v4140 = vpop.permute.xlu0 %4139
        %4141 = vrot.lane.b32.xlu0 %v3804, 122
        %v4142 = vpop.permute.xlu0 %4141
        %4143 = vrot.lane.b32.xlu0 %v3805, 122
        %v4144 = vpop.permute.xlu0 %4143
        %4145 = vrot.lane.b32.xlu0 %v3806, 122
        %v4146 = vpop.permute.xlu0 %4145
        %4147 = vrot.lane.b32.xlu0 %v3807, 122
        %v4148 = vpop.permute.xlu0 %4147
        %4149 = vrot.lane.b32.xlu0 %v3808, 122
        %v4150 = vpop.permute.xlu0 %4149
        %4151 = vrot.lane.b32.xlu0 %v3809, 122
        %v4152 = vpop.permute.xlu0 %4151
        %4153 = vrot.lane.b32.xlu0 %v3810, 122
        %v4154 = vpop.permute.xlu0 %4153
        %4155 = vrot.lane.b32.xlu0 %v3811, 122
        %v4156 = vpop.permute.xlu0 %4155
        %4157 = vrot.lane.b32.xlu0 %v3812, 122
        %v4158 = vpop.permute.xlu0 %4157
        %4159 = vrot.lane.b32.xlu0 %v3813, 122
        %v4160 = vpop.permute.xlu0 %4159
        %4161 = vrot.lane.b32.xlu0 %v3814, 122
        %v4162 = vpop.permute.xlu0 %4161
        %4163 = vrot.lane.b32.xlu0 %v3815, 122
        %v4164 = vpop.permute.xlu0 %4163
        %4165 = vrot.lane.b32.xlu0 %v3816, 122
        %v4166 = vpop.permute.xlu0 %4165
        %4167 = vrot.lane.b32.xlu0 %v3817, 122
        %v4168 = vpop.permute.xlu0 %4167
        %4169 = vrot.lane.b32.xlu0 %v3818, 122
        %v4170 = vpop.permute.xlu0 %4169
        %v4203 = vsub.f32 %v4075, %v4108
        %v4204 = vsub.f32 %v4076, %v4110
        %v4205 = vsub.f32 %v4077, %v4112
        %v4206 = vsub.f32 %v4078, %v4114
        %v4207 = vsub.f32 %v4079, %v4116
        %v4208 = vsub.f32 %v4080, %v4118
        %v4209 = vsub.f32 %v4081, %v4120
        %v4210 = vsub.f32 %v4082, %v4122
        %v4211 = vsub.f32 %v4083, %v4124
        %v4212 = vsub.f32 %v4084, %v4126
        %v4213 = vsub.f32 %v4085, %v4128
        %v4214 = vsub.f32 %v4086, %v4130
        %v4215 = vsub.f32 %v4087, %v4132
        %v4216 = vsub.f32 %v4088, %v4134
        %v4217 = vsub.f32 %v4089, %v4136
        %v4218 = vsub.f32 %v4090, %v4138
        %v4219 = vsub.f32 %v4091, %v4140
        %v4220 = vsub.f32 %v4092, %v4142
        %v4221 = vsub.f32 %v4093, %v4144
        %v4222 = vsub.f32 %v4094, %v4146
        %v4223 = vsub.f32 %v4095, %v4148
        %v4224 = vsub.f32 %v4096, %v4150
        %v4225 = vsub.f32 %v4097, %v4152
        %v4226 = vsub.f32 %v4098, %v4154
        %v4227 = vsub.f32 %v4099, %v4156
        %v4228 = vsub.f32 %v4100, %v4158
        %v4229 = vsub.f32 %v4101, %v4160
        %v4230 = vsub.f32 %v4102, %v4162
        %v4231 = vsub.f32 %v4103, %v4164
        %v4232 = vsub.f32 %v4104, %v4166
        %v4233 = vsub.f32 %v4105, %v4168
        %v4234 = vsub.f32 %v4106, %v4170
        %4267 = vrot.lane.b32.xlu0 %v3755, 126
        %v4268 = vpop.permute.xlu0 %4267
        %4269 = vrot.lane.b32.xlu0 %v3756, 126
        %v4270 = vpop.permute.xlu0 %4269
        %4271 = vrot.lane.b32.xlu0 %v3757, 126
        %v4272 = vpop.permute.xlu0 %4271
        %4273 = vrot.lane.b32.xlu0 %v3758, 126
        %v4274 = vpop.permute.xlu0 %4273
        %4275 = vrot.lane.b32.xlu0 %v3759, 126
        %v4276 = vpop.permute.xlu0 %4275
        %4277 = vrot.lane.b32.xlu0 %v3760, 126
        %v4278 = vpop.permute.xlu0 %4277
        %4279 = vrot.lane.b32.xlu0 %v3761, 126
        %v4280 = vpop.permute.xlu0 %4279
        %4281 = vrot.lane.b32.xlu0 %v3762, 126
        %v4282 = vpop.permute.xlu0 %4281
        %4283 = vrot.lane.b32.xlu0 %v3763, 126
        %v4284 = vpop.permute.xlu0 %4283
        %4285 = vrot.lane.b32.xlu0 %v3764, 126
        %v4286 = vpop.permute.xlu0 %4285
        %4287 = vrot.lane.b32.xlu0 %v3765, 126
        %v4288 = vpop.permute.xlu0 %4287
        %4289 = vrot.lane.b32.xlu0 %v3766, 126
        %v4290 = vpop.permute.xlu0 %4289
        %4291 = vrot.lane.b32.xlu0 %v3767, 126
        %v4292 = vpop.permute.xlu0 %4291
        %4293 = vrot.lane.b32.xlu0 %v3768, 126
        %v4294 = vpop.permute.xlu0 %4293
        %4295 = vrot.lane.b32.xlu0 %v3769, 126
        %v4296 = vpop.permute.xlu0 %4295
        %4297 = vrot.lane.b32.xlu0 %v3770, 126
        %v4298 = vpop.permute.xlu0 %4297
        %4299 = vrot.lane.b32.xlu0 %v3771, 126
        %v4300 = vpop.permute.xlu0 %4299
        %4301 = vrot.lane.b32.xlu0 %v3772, 126
        %v4302 = vpop.permute.xlu0 %4301
        %4303 = vrot.lane.b32.xlu0 %v3773, 126
        %v4304 = vpop.permute.xlu0 %4303
        %4305 = vrot.lane.b32.xlu0 %v3774, 126
        %v4306 = vpop.permute.xlu0 %4305
        %4307 = vrot.lane.b32.xlu0 %v3775, 126
        %v4308 = vpop.permute.xlu0 %4307
        %4309 = vrot.lane.b32.xlu0 %v3776, 126
        %v4310 = vpop.permute.xlu0 %4309
        %4311 = vrot.lane.b32.xlu0 %v3777, 126
        %v4312 = vpop.permute.xlu0 %4311
        %4313 = vrot.lane.b32.xlu0 %v3778, 126
        %v4314 = vpop.permute.xlu0 %4313
        %4315 = vrot.lane.b32.xlu0 %v3779, 126
        %v4316 = vpop.permute.xlu0 %4315
        %4317 = vrot.lane.b32.xlu0 %v3780, 126
        %v4318 = vpop.permute.xlu0 %4317
        %4319 = vrot.lane.b32.xlu0 %v3781, 126
        %v4320 = vpop.permute.xlu0 %4319
        %4321 = vrot.lane.b32.xlu0 %v3782, 126
        %v4322 = vpop.permute.xlu0 %4321
        %4323 = vrot.lane.b32.xlu0 %v3783, 126
        %v4324 = vpop.permute.xlu0 %4323
        %4325 = vrot.lane.b32.xlu0 %v3784, 126
        %v4326 = vpop.permute.xlu0 %4325
        %4327 = vrot.lane.b32.xlu0 %v3785, 126
        %v4328 = vpop.permute.xlu0 %4327
        %4329 = vrot.lane.b32.xlu0 %v3786, 126
        %v4330 = vpop.permute.xlu0 %4329
        %v4363 = vmul.f32 %v2592, %v4268
        %v4364 = vmul.f32 %v2593, %v4270
        %v4365 = vmul.f32 %v2594, %v4272
        %v4366 = vmul.f32 %v2595, %v4274
        %v4367 = vmul.f32 %v2596, %v4276
        %v4368 = vmul.f32 %v2597, %v4278
        %v4369 = vmul.f32 %v2598, %v4280
        %v4370 = vmul.f32 %v2599, %v4282
        %v4371 = vmul.f32 %v2600, %v4284
        %v4372 = vmul.f32 %v2601, %v4286
        %v4373 = vmul.f32 %v2602, %v4288
        %v4374 = vmul.f32 %v2603, %v4290
        %v4375 = vmul.f32 %v2604, %v4292
        %v4376 = vmul.f32 %v2605, %v4294
        %v4377 = vmul.f32 %v2606, %v4296
        %v4378 = vmul.f32 %v2607, %v4298
        %v4379 = vmul.f32 %v2608, %v4300
        %v4380 = vmul.f32 %v2609, %v4302
        %v4381 = vmul.f32 %v2610, %v4304
        %v4382 = vmul.f32 %v2611, %v4306
        %v4383 = vmul.f32 %v2612, %v4308
        %v4384 = vmul.f32 %v2613, %v4310
        %v4385 = vmul.f32 %v2614, %v4312
        %v4386 = vmul.f32 %v2615, %v4314
        %v4387 = vmul.f32 %v2616, %v4316
        %v4388 = vmul.f32 %v2617, %v4318
        %v4389 = vmul.f32 %v2618, %v4320
        %v4390 = vmul.f32 %v2619, %v4322
        %v4391 = vmul.f32 %v2620, %v4324
        %v4392 = vmul.f32 %v2621, %v4326
        %v4393 = vmul.f32 %v2622, %v4328
        %v4394 = vmul.f32 %v2623, %v4330
        %4395 = vrot.lane.b32.xlu0 %v3755, 2
        %v4396 = vpop.permute.xlu0 %4395
        %4397 = vrot.lane.b32.xlu0 %v3756, 2
        %v4398 = vpop.permute.xlu0 %4397
        %4399 = vrot.lane.b32.xlu0 %v3757, 2
        %v4400 = vpop.permute.xlu0 %4399
        %4401 = vrot.lane.b32.xlu0 %v3758, 2
        %v4402 = vpop.permute.xlu0 %4401
        %4403 = vrot.lane.b32.xlu0 %v3759, 2
        %v4404 = vpop.permute.xlu0 %4403
        %4405 = vrot.lane.b32.xlu0 %v3760, 2
        %v4406 = vpop.permute.xlu0 %4405
        %4407 = vrot.lane.b32.xlu0 %v3761, 2
        %v4408 = vpop.permute.xlu0 %4407
        %4409 = vrot.lane.b32.xlu0 %v3762, 2
        %v4410 = vpop.permute.xlu0 %4409
        %4411 = vrot.lane.b32.xlu0 %v3763, 2
        %v4412 = vpop.permute.xlu0 %4411
        %4413 = vrot.lane.b32.xlu0 %v3764, 2
        %v4414 = vpop.permute.xlu0 %4413
        %4415 = vrot.lane.b32.xlu0 %v3765, 2
        %v4416 = vpop.permute.xlu0 %4415
        %4417 = vrot.lane.b32.xlu0 %v3766, 2
        %v4418 = vpop.permute.xlu0 %4417
        %4419 = vrot.lane.b32.xlu0 %v3767, 2
        %v4420 = vpop.permute.xlu0 %4419
        %4421 = vrot.lane.b32.xlu0 %v3768, 2
        %v4422 = vpop.permute.xlu0 %4421
        %4423 = vrot.lane.b32.xlu0 %v3769, 2
        %v4424 = vpop.permute.xlu0 %4423
        %4425 = vrot.lane.b32.xlu0 %v3770, 2
        %v4426 = vpop.permute.xlu0 %4425
        %4427 = vrot.lane.b32.xlu0 %v3771, 2
        %v4428 = vpop.permute.xlu0 %4427
        %4429 = vrot.lane.b32.xlu0 %v3772, 2
        %v4430 = vpop.permute.xlu0 %4429
        %4431 = vrot.lane.b32.xlu0 %v3773, 2
        %v4432 = vpop.permute.xlu0 %4431
        %4433 = vrot.lane.b32.xlu0 %v3774, 2
        %v4434 = vpop.permute.xlu0 %4433
        %4435 = vrot.lane.b32.xlu0 %v3775, 2
        %v4436 = vpop.permute.xlu0 %4435
        %4437 = vrot.lane.b32.xlu0 %v3776, 2
        %v4438 = vpop.permute.xlu0 %4437
        %4439 = vrot.lane.b32.xlu0 %v3777, 2
        %v4440 = vpop.permute.xlu0 %4439
        %4441 = vrot.lane.b32.xlu0 %v3778, 2
        %v4442 = vpop.permute.xlu0 %4441
        %4443 = vrot.lane.b32.xlu0 %v3779, 2
        %v4444 = vpop.permute.xlu0 %4443
        %4445 = vrot.lane.b32.xlu0 %v3780, 2
        %v4446 = vpop.permute.xlu0 %4445
        %4447 = vrot.lane.b32.xlu0 %v3781, 2
        %v4448 = vpop.permute.xlu0 %4447
        %4449 = vrot.lane.b32.xlu0 %v3782, 2
        %v4450 = vpop.permute.xlu0 %4449
        %4451 = vrot.lane.b32.xlu0 %v3783, 2
        %v4452 = vpop.permute.xlu0 %4451
        %4453 = vrot.lane.b32.xlu0 %v3784, 2
        %v4454 = vpop.permute.xlu0 %4453
        %4455 = vrot.lane.b32.xlu0 %v3785, 2
        %v4456 = vpop.permute.xlu0 %4455
        %4457 = vrot.lane.b32.xlu0 %v3786, 2
        %v4458 = vpop.permute.xlu0 %4457
        %v4491 = vmul.f32 %v2592, %v4396
        %v4492 = vmul.f32 %v2593, %v4398
        %v4493 = vmul.f32 %v2594, %v4400
        %v4494 = vmul.f32 %v2595, %v4402
        %v4495 = vmul.f32 %v2596, %v4404
        %v4496 = vmul.f32 %v2597, %v4406
        %v4497 = vmul.f32 %v2598, %v4408
        %v4498 = vmul.f32 %v2599, %v4410
        %v4499 = vmul.f32 %v2600, %v4412
        %v4500 = vmul.f32 %v2601, %v4414
        %v4501 = vmul.f32 %v2602, %v4416
        %v4502 = vmul.f32 %v2603, %v4418
        %v4503 = vmul.f32 %v2604, %v4420
        %v4504 = vmul.f32 %v2605, %v4422
        %v4505 = vmul.f32 %v2606, %v4424
        %v4506 = vmul.f32 %v2607, %v4426
        %v4507 = vmul.f32 %v2608, %v4428
        %v4508 = vmul.f32 %v2609, %v4430
        %v4509 = vmul.f32 %v2610, %v4432
        %v4510 = vmul.f32 %v2611, %v4434
        %v4511 = vmul.f32 %v2612, %v4436
        %v4512 = vmul.f32 %v2613, %v4438
        %v4513 = vmul.f32 %v2614, %v4440
        %v4514 = vmul.f32 %v2615, %v4442
        %v4515 = vmul.f32 %v2616, %v4444
        %v4516 = vmul.f32 %v2617, %v4446
        %v4517 = vmul.f32 %v2618, %v4448
        %v4518 = vmul.f32 %v2619, %v4450
        %v4519 = vmul.f32 %v2620, %v4452
        %v4520 = vmul.f32 %v2621, %v4454
        %v4521 = vmul.f32 %v2622, %v4456
        %v4522 = vmul.f32 %v2623, %v4458
        %4555 = vrot.lane.b32.xlu0 %v4491, 126
        %v4556 = vpop.permute.xlu0 %4555
        %4557 = vrot.lane.b32.xlu0 %v4492, 126
        %v4558 = vpop.permute.xlu0 %4557
        %4559 = vrot.lane.b32.xlu0 %v4493, 126
        %v4560 = vpop.permute.xlu0 %4559
        %4561 = vrot.lane.b32.xlu0 %v4494, 126
        %v4562 = vpop.permute.xlu0 %4561
        %4563 = vrot.lane.b32.xlu0 %v4495, 126
        %v4564 = vpop.permute.xlu0 %4563
        %4565 = vrot.lane.b32.xlu0 %v4496, 126
        %v4566 = vpop.permute.xlu0 %4565
        %4567 = vrot.lane.b32.xlu0 %v4497, 126
        %v4568 = vpop.permute.xlu0 %4567
        %4569 = vrot.lane.b32.xlu0 %v4498, 126
        %v4570 = vpop.permute.xlu0 %4569
        %4571 = vrot.lane.b32.xlu0 %v4499, 126
        %v4572 = vpop.permute.xlu0 %4571
        %4573 = vrot.lane.b32.xlu0 %v4500, 126
        %v4574 = vpop.permute.xlu0 %4573
        %4575 = vrot.lane.b32.xlu0 %v4501, 126
        %v4576 = vpop.permute.xlu0 %4575
        %4577 = vrot.lane.b32.xlu0 %v4502, 126
        %v4578 = vpop.permute.xlu0 %4577
        %4579 = vrot.lane.b32.xlu0 %v4503, 126
        %v4580 = vpop.permute.xlu0 %4579
        %4581 = vrot.lane.b32.xlu0 %v4504, 126
        %v4582 = vpop.permute.xlu0 %4581
        %4583 = vrot.lane.b32.xlu0 %v4505, 126
        %v4584 = vpop.permute.xlu0 %4583
        %4585 = vrot.lane.b32.xlu0 %v4506, 126
        %v4586 = vpop.permute.xlu0 %4585
        %4587 = vrot.lane.b32.xlu0 %v4507, 126
        %v4588 = vpop.permute.xlu0 %4587
        %4589 = vrot.lane.b32.xlu0 %v4508, 126
        %v4590 = vpop.permute.xlu0 %4589
        %4591 = vrot.lane.b32.xlu0 %v4509, 126
        %v4592 = vpop.permute.xlu0 %4591
        %4593 = vrot.lane.b32.xlu0 %v4510, 126
        %v4594 = vpop.permute.xlu0 %4593
        %4595 = vrot.lane.b32.xlu0 %v4511, 126
        %v4596 = vpop.permute.xlu0 %4595
        %4597 = vrot.lane.b32.xlu0 %v4512, 126
        %v4598 = vpop.permute.xlu0 %4597
        %4599 = vrot.lane.b32.xlu0 %v4513, 126
        %v4600 = vpop.permute.xlu0 %4599
        %4601 = vrot.lane.b32.xlu0 %v4514, 126
        %v4602 = vpop.permute.xlu0 %4601
        %4603 = vrot.lane.b32.xlu0 %v4515, 126
        %v4604 = vpop.permute.xlu0 %4603
        %4605 = vrot.lane.b32.xlu0 %v4516, 126
        %v4606 = vpop.permute.xlu0 %4605
        %4607 = vrot.lane.b32.xlu0 %v4517, 126
        %v4608 = vpop.permute.xlu0 %4607
        %4609 = vrot.lane.b32.xlu0 %v4518, 126
        %v4610 = vpop.permute.xlu0 %4609
        %4611 = vrot.lane.b32.xlu0 %v4519, 126
        %v4612 = vpop.permute.xlu0 %4611
        %4613 = vrot.lane.b32.xlu0 %v4520, 126
        %v4614 = vpop.permute.xlu0 %4613
        %4615 = vrot.lane.b32.xlu0 %v4521, 126
        %v4616 = vpop.permute.xlu0 %4615
        %4617 = vrot.lane.b32.xlu0 %v4522, 126
        %v4618 = vpop.permute.xlu0 %4617
        %v4651 = vadd.f32 %v4363, %v4556
        %v4652 = vadd.f32 %v4364, %v4558
        %v4653 = vadd.f32 %v4365, %v4560
        %v4654 = vadd.f32 %v4366, %v4562
        %v4655 = vadd.f32 %v4367, %v4564
        %v4656 = vadd.f32 %v4368, %v4566
        %v4657 = vadd.f32 %v4369, %v4568
        %v4658 = vadd.f32 %v4370, %v4570
        %v4659 = vadd.f32 %v4371, %v4572
        %v4660 = vadd.f32 %v4372, %v4574
        %v4661 = vadd.f32 %v4373, %v4576
        %v4662 = vadd.f32 %v4374, %v4578
        %v4663 = vadd.f32 %v4375, %v4580
        %v4664 = vadd.f32 %v4376, %v4582
        %v4665 = vadd.f32 %v4377, %v4584
        %v4666 = vadd.f32 %v4378, %v4586
        %v4667 = vadd.f32 %v4379, %v4588
        %v4668 = vadd.f32 %v4380, %v4590
        %v4669 = vadd.f32 %v4381, %v4592
        %v4670 = vadd.f32 %v4382, %v4594
        %v4671 = vadd.f32 %v4383, %v4596
        %v4672 = vadd.f32 %v4384, %v4598
        %v4673 = vadd.f32 %v4385, %v4600
        %v4674 = vadd.f32 %v4386, %v4602
        %v4675 = vadd.f32 %v4387, %v4604
        %v4676 = vadd.f32 %v4388, %v4606
        %v4677 = vadd.f32 %v4389, %v4608
        %v4678 = vadd.f32 %v4390, %v4610
        %v4679 = vadd.f32 %v4391, %v4612
        %v4680 = vadd.f32 %v4392, %v4614
        %v4681 = vadd.f32 %v4393, %v4616
        %v4682 = vadd.f32 %v4394, %v4618
        %4715 = vrot.lane.b32.xlu0 %v4363, 124
        %v4716 = vpop.permute.xlu0 %4715
        %4717 = vrot.lane.b32.xlu0 %v4364, 124
        %v4718 = vpop.permute.xlu0 %4717
        %4719 = vrot.lane.b32.xlu0 %v4365, 124
        %v4720 = vpop.permute.xlu0 %4719
        %4721 = vrot.lane.b32.xlu0 %v4366, 124
        %v4722 = vpop.permute.xlu0 %4721
        %4723 = vrot.lane.b32.xlu0 %v4367, 124
        %v4724 = vpop.permute.xlu0 %4723
        %4725 = vrot.lane.b32.xlu0 %v4368, 124
        %v4726 = vpop.permute.xlu0 %4725
        %4727 = vrot.lane.b32.xlu0 %v4369, 124
        %v4728 = vpop.permute.xlu0 %4727
        %4729 = vrot.lane.b32.xlu0 %v4370, 124
        %v4730 = vpop.permute.xlu0 %4729
        %4731 = vrot.lane.b32.xlu0 %v4371, 124
        %v4732 = vpop.permute.xlu0 %4731
        %4733 = vrot.lane.b32.xlu0 %v4372, 124
        %v4734 = vpop.permute.xlu0 %4733
        %4735 = vrot.lane.b32.xlu0 %v4373, 124
        %v4736 = vpop.permute.xlu0 %4735
        %4737 = vrot.lane.b32.xlu0 %v4374, 124
        %v4738 = vpop.permute.xlu0 %4737
        %4739 = vrot.lane.b32.xlu0 %v4375, 124
        %v4740 = vpop.permute.xlu0 %4739
        %4741 = vrot.lane.b32.xlu0 %v4376, 124
        %v4742 = vpop.permute.xlu0 %4741
        %4743 = vrot.lane.b32.xlu0 %v4377, 124
        %v4744 = vpop.permute.xlu0 %4743
        %4745 = vrot.lane.b32.xlu0 %v4378, 124
        %v4746 = vpop.permute.xlu0 %4745
        %4747 = vrot.lane.b32.xlu0 %v4379, 124
        %v4748 = vpop.permute.xlu0 %4747
        %4749 = vrot.lane.b32.xlu0 %v4380, 124
        %v4750 = vpop.permute.xlu0 %4749
        %4751 = vrot.lane.b32.xlu0 %v4381, 124
        %v4752 = vpop.permute.xlu0 %4751
        %4753 = vrot.lane.b32.xlu0 %v4382, 124
        %v4754 = vpop.permute.xlu0 %4753
        %4755 = vrot.lane.b32.xlu0 %v4383, 124
        %v4756 = vpop.permute.xlu0 %4755
        %4757 = vrot.lane.b32.xlu0 %v4384, 124
        %v4758 = vpop.permute.xlu0 %4757
        %4759 = vrot.lane.b32.xlu0 %v4385, 124
        %v4760 = vpop.permute.xlu0 %4759
        %4761 = vrot.lane.b32.xlu0 %v4386, 124
        %v4762 = vpop.permute.xlu0 %4761
        %4763 = vrot.lane.b32.xlu0 %v4387, 124
        %v4764 = vpop.permute.xlu0 %4763
        %4765 = vrot.lane.b32.xlu0 %v4388, 124
        %v4766 = vpop.permute.xlu0 %4765
        %4767 = vrot.lane.b32.xlu0 %v4389, 124
        %v4768 = vpop.permute.xlu0 %4767
        %4769 = vrot.lane.b32.xlu0 %v4390, 124
        %v4770 = vpop.permute.xlu0 %4769
        %4771 = vrot.lane.b32.xlu0 %v4391, 124
        %v4772 = vpop.permute.xlu0 %4771
        %4773 = vrot.lane.b32.xlu0 %v4392, 124
        %v4774 = vpop.permute.xlu0 %4773
        %4775 = vrot.lane.b32.xlu0 %v4393, 124
        %v4776 = vpop.permute.xlu0 %4775
        %4777 = vrot.lane.b32.xlu0 %v4394, 124
        %v4778 = vpop.permute.xlu0 %4777
        %v4811 = vadd.f32 %v4651, %v4716
        %v4812 = vadd.f32 %v4652, %v4718
        %v4813 = vadd.f32 %v4653, %v4720
        %v4814 = vadd.f32 %v4654, %v4722
        %v4815 = vadd.f32 %v4655, %v4724
        %v4816 = vadd.f32 %v4656, %v4726
        %v4817 = vadd.f32 %v4657, %v4728
        %v4818 = vadd.f32 %v4658, %v4730
        %v4819 = vadd.f32 %v4659, %v4732
        %v4820 = vadd.f32 %v4660, %v4734
        %v4821 = vadd.f32 %v4661, %v4736
        %v4822 = vadd.f32 %v4662, %v4738
        %v4823 = vadd.f32 %v4663, %v4740
        %v4824 = vadd.f32 %v4664, %v4742
        %v4825 = vadd.f32 %v4665, %v4744
        %v4826 = vadd.f32 %v4666, %v4746
        %v4827 = vadd.f32 %v4667, %v4748
        %v4828 = vadd.f32 %v4668, %v4750
        %v4829 = vadd.f32 %v4669, %v4752
        %v4830 = vadd.f32 %v4670, %v4754
        %v4831 = vadd.f32 %v4671, %v4756
        %v4832 = vadd.f32 %v4672, %v4758
        %v4833 = vadd.f32 %v4673, %v4760
        %v4834 = vadd.f32 %v4674, %v4762
        %v4835 = vadd.f32 %v4675, %v4764
        %v4836 = vadd.f32 %v4676, %v4766
        %v4837 = vadd.f32 %v4677, %v4768
        %v4838 = vadd.f32 %v4678, %v4770
        %v4839 = vadd.f32 %v4679, %v4772
        %v4840 = vadd.f32 %v4680, %v4774
        %v4841 = vadd.f32 %v4681, %v4776
        %v4842 = vadd.f32 %v4682, %v4778
        %4843 = vrot.lane.b32.xlu0 %v4491, 122
        %v4844 = vpop.permute.xlu0 %4843
        %4845 = vrot.lane.b32.xlu0 %v4492, 122
        %v4846 = vpop.permute.xlu0 %4845
        %4847 = vrot.lane.b32.xlu0 %v4493, 122
        %v4848 = vpop.permute.xlu0 %4847
        %4849 = vrot.lane.b32.xlu0 %v4494, 122
        %v4850 = vpop.permute.xlu0 %4849
        %4851 = vrot.lane.b32.xlu0 %v4495, 122
        %v4852 = vpop.permute.xlu0 %4851
        %4853 = vrot.lane.b32.xlu0 %v4496, 122
        %v4854 = vpop.permute.xlu0 %4853
        %4855 = vrot.lane.b32.xlu0 %v4497, 122
        %v4856 = vpop.permute.xlu0 %4855
        %4857 = vrot.lane.b32.xlu0 %v4498, 122
        %v4858 = vpop.permute.xlu0 %4857
        %4859 = vrot.lane.b32.xlu0 %v4499, 122
        %v4860 = vpop.permute.xlu0 %4859
        %4861 = vrot.lane.b32.xlu0 %v4500, 122
        %v4862 = vpop.permute.xlu0 %4861
        %4863 = vrot.lane.b32.xlu0 %v4501, 122
        %v4864 = vpop.permute.xlu0 %4863
        %4865 = vrot.lane.b32.xlu0 %v4502, 122
        %v4866 = vpop.permute.xlu0 %4865
        %4867 = vrot.lane.b32.xlu0 %v4503, 122
        %v4868 = vpop.permute.xlu0 %4867
        %4869 = vrot.lane.b32.xlu0 %v4504, 122
        %v4870 = vpop.permute.xlu0 %4869
        %4871 = vrot.lane.b32.xlu0 %v4505, 122
        %v4872 = vpop.permute.xlu0 %4871
        %4873 = vrot.lane.b32.xlu0 %v4506, 122
        %v4874 = vpop.permute.xlu0 %4873
        %4875 = vrot.lane.b32.xlu0 %v4507, 122
        %v4876 = vpop.permute.xlu0 %4875
        %4877 = vrot.lane.b32.xlu0 %v4508, 122
        %v4878 = vpop.permute.xlu0 %4877
        %4879 = vrot.lane.b32.xlu0 %v4509, 122
        %v4880 = vpop.permute.xlu0 %4879
        %4881 = vrot.lane.b32.xlu0 %v4510, 122
        %v4882 = vpop.permute.xlu0 %4881
        %4883 = vrot.lane.b32.xlu0 %v4511, 122
        %v4884 = vpop.permute.xlu0 %4883
        %4885 = vrot.lane.b32.xlu0 %v4512, 122
        %v4886 = vpop.permute.xlu0 %4885
        %4887 = vrot.lane.b32.xlu0 %v4513, 122
        %v4888 = vpop.permute.xlu0 %4887
        %4889 = vrot.lane.b32.xlu0 %v4514, 122
        %v4890 = vpop.permute.xlu0 %4889
        %4891 = vrot.lane.b32.xlu0 %v4515, 122
        %v4892 = vpop.permute.xlu0 %4891
        %4893 = vrot.lane.b32.xlu0 %v4516, 122
        %v4894 = vpop.permute.xlu0 %4893
        %4895 = vrot.lane.b32.xlu0 %v4517, 122
        %v4896 = vpop.permute.xlu0 %4895
        %4897 = vrot.lane.b32.xlu0 %v4518, 122
        %v4898 = vpop.permute.xlu0 %4897
        %4899 = vrot.lane.b32.xlu0 %v4519, 122
        %v4900 = vpop.permute.xlu0 %4899
        %4901 = vrot.lane.b32.xlu0 %v4520, 122
        %v4902 = vpop.permute.xlu0 %4901
        %4903 = vrot.lane.b32.xlu0 %v4521, 122
        %v4904 = vpop.permute.xlu0 %4903
        %4905 = vrot.lane.b32.xlu0 %v4522, 122
        %v4906 = vpop.permute.xlu0 %4905
        %v4939 = vsub.f32 %v4811, %v4844
        %v4940 = vsub.f32 %v4812, %v4846
        %v4941 = vsub.f32 %v4813, %v4848
        %v4942 = vsub.f32 %v4814, %v4850
        %v4943 = vsub.f32 %v4815, %v4852
        %v4944 = vsub.f32 %v4816, %v4854
        %v4945 = vsub.f32 %v4817, %v4856
        %v4946 = vsub.f32 %v4818, %v4858
        %v4947 = vsub.f32 %v4819, %v4860
        %v4948 = vsub.f32 %v4820, %v4862
        %v4949 = vsub.f32 %v4821, %v4864
        %v4950 = vsub.f32 %v4822, %v4866
        %v4951 = vsub.f32 %v4823, %v4868
        %v4952 = vsub.f32 %v4824, %v4870
        %v4953 = vsub.f32 %v4825, %v4872
        %v4954 = vsub.f32 %v4826, %v4874
        %v4955 = vsub.f32 %v4827, %v4876
        %v4956 = vsub.f32 %v4828, %v4878
        %v4957 = vsub.f32 %v4829, %v4880
        %v4958 = vsub.f32 %v4830, %v4882
        %v4959 = vsub.f32 %v4831, %v4884
        %v4960 = vsub.f32 %v4832, %v4886
        %v4961 = vsub.f32 %v4833, %v4888
        %v4962 = vsub.f32 %v4834, %v4890
        %v4963 = vsub.f32 %v4835, %v4892
        %v4964 = vsub.f32 %v4836, %v4894
        %v4965 = vsub.f32 %v4837, %v4896
        %v4966 = vsub.f32 %v4838, %v4898
        %v4967 = vsub.f32 %v4839, %v4900
        %v4968 = vsub.f32 %v4840, %v4902
        %v4969 = vsub.f32 %v4841, %v4904
        %v4970 = vsub.f32 %v4842, %v4906
        %4971 = vrot.lane.b32.xlu0 %v3755, 124
        %v4972 = vpop.permute.xlu0 %4971
        %4973 = vrot.lane.b32.xlu0 %v3756, 124
        %v4974 = vpop.permute.xlu0 %4973
        %4975 = vrot.lane.b32.xlu0 %v3757, 124
        %v4976 = vpop.permute.xlu0 %4975
        %4977 = vrot.lane.b32.xlu0 %v3758, 124
        %v4978 = vpop.permute.xlu0 %4977
        %4979 = vrot.lane.b32.xlu0 %v3759, 124
        %v4980 = vpop.permute.xlu0 %4979
        %4981 = vrot.lane.b32.xlu0 %v3760, 124
        %v4982 = vpop.permute.xlu0 %4981
        %4983 = vrot.lane.b32.xlu0 %v3761, 124
        %v4984 = vpop.permute.xlu0 %4983
        %4985 = vrot.lane.b32.xlu0 %v3762, 124
        %v4986 = vpop.permute.xlu0 %4985
        %4987 = vrot.lane.b32.xlu0 %v3763, 124
        %v4988 = vpop.permute.xlu0 %4987
        %4989 = vrot.lane.b32.xlu0 %v3764, 124
        %v4990 = vpop.permute.xlu0 %4989
        %4991 = vrot.lane.b32.xlu0 %v3765, 124
        %v4992 = vpop.permute.xlu0 %4991
        %4993 = vrot.lane.b32.xlu0 %v3766, 124
        %v4994 = vpop.permute.xlu0 %4993
        %4995 = vrot.lane.b32.xlu0 %v3767, 124
        %v4996 = vpop.permute.xlu0 %4995
        %4997 = vrot.lane.b32.xlu0 %v3768, 124
        %v4998 = vpop.permute.xlu0 %4997
        %4999 = vrot.lane.b32.xlu0 %v3769, 124
        %v5000 = vpop.permute.xlu0 %4999
        %5001 = vrot.lane.b32.xlu0 %v3770, 124
        %v5002 = vpop.permute.xlu0 %5001
        %5003 = vrot.lane.b32.xlu0 %v3771, 124
        %v5004 = vpop.permute.xlu0 %5003
        %5005 = vrot.lane.b32.xlu0 %v3772, 124
        %v5006 = vpop.permute.xlu0 %5005
        %5007 = vrot.lane.b32.xlu0 %v3773, 124
        %v5008 = vpop.permute.xlu0 %5007
        %5009 = vrot.lane.b32.xlu0 %v3774, 124
        %v5010 = vpop.permute.xlu0 %5009
        %5011 = vrot.lane.b32.xlu0 %v3775, 124
        %v5012 = vpop.permute.xlu0 %5011
        %5013 = vrot.lane.b32.xlu0 %v3776, 124
        %v5014 = vpop.permute.xlu0 %5013
        %5015 = vrot.lane.b32.xlu0 %v3777, 124
        %v5016 = vpop.permute.xlu0 %5015
        %5017 = vrot.lane.b32.xlu0 %v3778, 124
        %v5018 = vpop.permute.xlu0 %5017
        %5019 = vrot.lane.b32.xlu0 %v3779, 124
        %v5020 = vpop.permute.xlu0 %5019
        %5021 = vrot.lane.b32.xlu0 %v3780, 124
        %v5022 = vpop.permute.xlu0 %5021
        %5023 = vrot.lane.b32.xlu0 %v3781, 124
        %v5024 = vpop.permute.xlu0 %5023
        %5025 = vrot.lane.b32.xlu0 %v3782, 124
        %v5026 = vpop.permute.xlu0 %5025
        %5027 = vrot.lane.b32.xlu0 %v3783, 124
        %v5028 = vpop.permute.xlu0 %5027
        %5029 = vrot.lane.b32.xlu0 %v3784, 124
        %v5030 = vpop.permute.xlu0 %5029
        %5031 = vrot.lane.b32.xlu0 %v3785, 124
        %v5032 = vpop.permute.xlu0 %5031
        %5033 = vrot.lane.b32.xlu0 %v3786, 124
        %v5034 = vpop.permute.xlu0 %5033
        %v5067 = vmul.f32 %v2592, %v4972
        %v5068 = vmul.f32 %v2593, %v4974
        %v5069 = vmul.f32 %v2594, %v4976
        %v5070 = vmul.f32 %v2595, %v4978
        %v5071 = vmul.f32 %v2596, %v4980
        %v5072 = vmul.f32 %v2597, %v4982
        %v5073 = vmul.f32 %v2598, %v4984
        %v5074 = vmul.f32 %v2599, %v4986
        %v5075 = vmul.f32 %v2600, %v4988
        %v5076 = vmul.f32 %v2601, %v4990
        %v5077 = vmul.f32 %v2602, %v4992
        %v5078 = vmul.f32 %v2603, %v4994
        %v5079 = vmul.f32 %v2604, %v4996
        %v5080 = vmul.f32 %v2605, %v4998
        %v5081 = vmul.f32 %v2606, %v5000
        %v5082 = vmul.f32 %v2607, %v5002
        %v5083 = vmul.f32 %v2608, %v5004
        %v5084 = vmul.f32 %v2609, %v5006
        %v5085 = vmul.f32 %v2610, %v5008
        %v5086 = vmul.f32 %v2611, %v5010
        %v5087 = vmul.f32 %v2612, %v5012
        %v5088 = vmul.f32 %v2613, %v5014
        %v5089 = vmul.f32 %v2614, %v5016
        %v5090 = vmul.f32 %v2615, %v5018
        %v5091 = vmul.f32 %v2616, %v5020
        %v5092 = vmul.f32 %v2617, %v5022
        %v5093 = vmul.f32 %v2618, %v5024
        %v5094 = vmul.f32 %v2619, %v5026
        %v5095 = vmul.f32 %v2620, %v5028
        %v5096 = vmul.f32 %v2621, %v5030
        %v5097 = vmul.f32 %v2622, %v5032
        %v5098 = vmul.f32 %v2623, %v5034
        %5131 = vrot.lane.b32.xlu0 %v5067, 126
        %v5132 = vpop.permute.xlu0 %5131
        %5133 = vrot.lane.b32.xlu0 %v5068, 126
        %v5134 = vpop.permute.xlu0 %5133
        %5135 = vrot.lane.b32.xlu0 %v5069, 126
        %v5136 = vpop.permute.xlu0 %5135
        %5137 = vrot.lane.b32.xlu0 %v5070, 126
        %v5138 = vpop.permute.xlu0 %5137
        %5139 = vrot.lane.b32.xlu0 %v5071, 126
        %v5140 = vpop.permute.xlu0 %5139
        %5141 = vrot.lane.b32.xlu0 %v5072, 126
        %v5142 = vpop.permute.xlu0 %5141
        %5143 = vrot.lane.b32.xlu0 %v5073, 126
        %v5144 = vpop.permute.xlu0 %5143
        %5145 = vrot.lane.b32.xlu0 %v5074, 126
        %v5146 = vpop.permute.xlu0 %5145
        %5147 = vrot.lane.b32.xlu0 %v5075, 126
        %v5148 = vpop.permute.xlu0 %5147
        %5149 = vrot.lane.b32.xlu0 %v5076, 126
        %v5150 = vpop.permute.xlu0 %5149
        %5151 = vrot.lane.b32.xlu0 %v5077, 126
        %v5152 = vpop.permute.xlu0 %5151
        %5153 = vrot.lane.b32.xlu0 %v5078, 126
        %v5154 = vpop.permute.xlu0 %5153
        %5155 = vrot.lane.b32.xlu0 %v5079, 126
        %v5156 = vpop.permute.xlu0 %5155
        %5157 = vrot.lane.b32.xlu0 %v5080, 126
        %v5158 = vpop.permute.xlu0 %5157
        %5159 = vrot.lane.b32.xlu0 %v5081, 126
        %v5160 = vpop.permute.xlu0 %5159
        %5161 = vrot.lane.b32.xlu0 %v5082, 126
        %v5162 = vpop.permute.xlu0 %5161
        %5163 = vrot.lane.b32.xlu0 %v5083, 126
        %v5164 = vpop.permute.xlu0 %5163
        %5165 = vrot.lane.b32.xlu0 %v5084, 126
        %v5166 = vpop.permute.xlu0 %5165
        %5167 = vrot.lane.b32.xlu0 %v5085, 126
        %v5168 = vpop.permute.xlu0 %5167
        %5169 = vrot.lane.b32.xlu0 %v5086, 126
        %v5170 = vpop.permute.xlu0 %5169
        %5171 = vrot.lane.b32.xlu0 %v5087, 126
        %v5172 = vpop.permute.xlu0 %5171
        %5173 = vrot.lane.b32.xlu0 %v5088, 126
        %v5174 = vpop.permute.xlu0 %5173
        %5175 = vrot.lane.b32.xlu0 %v5089, 126
        %v5176 = vpop.permute.xlu0 %5175
        %5177 = vrot.lane.b32.xlu0 %v5090, 126
        %v5178 = vpop.permute.xlu0 %5177
        %5179 = vrot.lane.b32.xlu0 %v5091, 126
        %v5180 = vpop.permute.xlu0 %5179
        %5181 = vrot.lane.b32.xlu0 %v5092, 126
        %v5182 = vpop.permute.xlu0 %5181
        %5183 = vrot.lane.b32.xlu0 %v5093, 126
        %v5184 = vpop.permute.xlu0 %5183
        %5185 = vrot.lane.b32.xlu0 %v5094, 126
        %v5186 = vpop.permute.xlu0 %5185
        %5187 = vrot.lane.b32.xlu0 %v5095, 126
        %v5188 = vpop.permute.xlu0 %5187
        %5189 = vrot.lane.b32.xlu0 %v5096, 126
        %v5190 = vpop.permute.xlu0 %5189
        %5191 = vrot.lane.b32.xlu0 %v5097, 126
        %v5192 = vpop.permute.xlu0 %5191
        %5193 = vrot.lane.b32.xlu0 %v5098, 126
        %v5194 = vpop.permute.xlu0 %5193
        %v5227 = vsub.f32 %v5067, %v5132
        %v5228 = vsub.f32 %v5068, %v5134
        %v5229 = vsub.f32 %v5069, %v5136
        %v5230 = vsub.f32 %v5070, %v5138
        %v5231 = vsub.f32 %v5071, %v5140
        %v5232 = vsub.f32 %v5072, %v5142
        %v5233 = vsub.f32 %v5073, %v5144
        %v5234 = vsub.f32 %v5074, %v5146
        %v5235 = vsub.f32 %v5075, %v5148
        %v5236 = vsub.f32 %v5076, %v5150
        %v5237 = vsub.f32 %v5077, %v5152
        %v5238 = vsub.f32 %v5078, %v5154
        %v5239 = vsub.f32 %v5079, %v5156
        %v5240 = vsub.f32 %v5080, %v5158
        %v5241 = vsub.f32 %v5081, %v5160
        %v5242 = vsub.f32 %v5082, %v5162
        %v5243 = vsub.f32 %v5083, %v5164
        %v5244 = vsub.f32 %v5084, %v5166
        %v5245 = vsub.f32 %v5085, %v5168
        %v5246 = vsub.f32 %v5086, %v5170
        %v5247 = vsub.f32 %v5087, %v5172
        %v5248 = vsub.f32 %v5088, %v5174
        %v5249 = vsub.f32 %v5089, %v5176
        %v5250 = vsub.f32 %v5090, %v5178
        %v5251 = vsub.f32 %v5091, %v5180
        %v5252 = vsub.f32 %v5092, %v5182
        %v5253 = vsub.f32 %v5093, %v5184
        %v5254 = vsub.f32 %v5094, %v5186
        %v5255 = vsub.f32 %v5095, %v5188
        %v5256 = vsub.f32 %v5096, %v5190
        %v5257 = vsub.f32 %v5097, %v5192
        %v5258 = vsub.f32 %v5098, %v5194
        %5259 = vrot.lane.b32.xlu0 %v3755, 4
        %v5260 = vpop.permute.xlu0 %5259
        %5261 = vrot.lane.b32.xlu0 %v3756, 4
        %v5262 = vpop.permute.xlu0 %5261
        %5263 = vrot.lane.b32.xlu0 %v3757, 4
        %v5264 = vpop.permute.xlu0 %5263
        %5265 = vrot.lane.b32.xlu0 %v3758, 4
        %v5266 = vpop.permute.xlu0 %5265
        %5267 = vrot.lane.b32.xlu0 %v3759, 4
        %v5268 = vpop.permute.xlu0 %5267
        %5269 = vrot.lane.b32.xlu0 %v3760, 4
        %v5270 = vpop.permute.xlu0 %5269
        %5271 = vrot.lane.b32.xlu0 %v3761, 4
        %v5272 = vpop.permute.xlu0 %5271
        %5273 = vrot.lane.b32.xlu0 %v3762, 4
        %v5274 = vpop.permute.xlu0 %5273
        %5275 = vrot.lane.b32.xlu0 %v3763, 4
        %v5276 = vpop.permute.xlu0 %5275
        %5277 = vrot.lane.b32.xlu0 %v3764, 4
        %v5278 = vpop.permute.xlu0 %5277
        %5279 = vrot.lane.b32.xlu0 %v3765, 4
        %v5280 = vpop.permute.xlu0 %5279
        %5281 = vrot.lane.b32.xlu0 %v3766, 4
        %v5282 = vpop.permute.xlu0 %5281
        %5283 = vrot.lane.b32.xlu0 %v3767, 4
        %v5284 = vpop.permute.xlu0 %5283
        %5285 = vrot.lane.b32.xlu0 %v3768, 4
        %v5286 = vpop.permute.xlu0 %5285
        %5287 = vrot.lane.b32.xlu0 %v3769, 4
        %v5288 = vpop.permute.xlu0 %5287
        %5289 = vrot.lane.b32.xlu0 %v3770, 4
        %v5290 = vpop.permute.xlu0 %5289
        %5291 = vrot.lane.b32.xlu0 %v3771, 4
        %v5292 = vpop.permute.xlu0 %5291
        %5293 = vrot.lane.b32.xlu0 %v3772, 4
        %v5294 = vpop.permute.xlu0 %5293
        %5295 = vrot.lane.b32.xlu0 %v3773, 4
        %v5296 = vpop.permute.xlu0 %5295
        %5297 = vrot.lane.b32.xlu0 %v3774, 4
        %v5298 = vpop.permute.xlu0 %5297
        %5299 = vrot.lane.b32.xlu0 %v3775, 4
        %v5300 = vpop.permute.xlu0 %5299
        %5301 = vrot.lane.b32.xlu0 %v3776, 4
        %v5302 = vpop.permute.xlu0 %5301
        %5303 = vrot.lane.b32.xlu0 %v3777, 4
        %v5304 = vpop.permute.xlu0 %5303
        %5305 = vrot.lane.b32.xlu0 %v3778, 4
        %v5306 = vpop.permute.xlu0 %5305
        %5307 = vrot.lane.b32.xlu0 %v3779, 4
        %v5308 = vpop.permute.xlu0 %5307
        %5309 = vrot.lane.b32.xlu0 %v3780, 4
        %v5310 = vpop.permute.xlu0 %5309
        %5311 = vrot.lane.b32.xlu0 %v3781, 4
        %v5312 = vpop.permute.xlu0 %5311
        %5313 = vrot.lane.b32.xlu0 %v3782, 4
        %v5314 = vpop.permute.xlu0 %5313
        %5315 = vrot.lane.b32.xlu0 %v3783, 4
        %v5316 = vpop.permute.xlu0 %5315
        %5317 = vrot.lane.b32.xlu0 %v3784, 4
        %v5318 = vpop.permute.xlu0 %5317
        %5319 = vrot.lane.b32.xlu0 %v3785, 4
        %v5320 = vpop.permute.xlu0 %5319
        %5321 = vrot.lane.b32.xlu0 %v3786, 4
        %v5322 = vpop.permute.xlu0 %5321
        %v5355 = vmul.f32 %v2592, %v5260
        %v5356 = vmul.f32 %v2593, %v5262
        %v5357 = vmul.f32 %v2594, %v5264
        %v5358 = vmul.f32 %v2595, %v5266
        %v5359 = vmul.f32 %v2596, %v5268
        %v5360 = vmul.f32 %v2597, %v5270
        %v5361 = vmul.f32 %v2598, %v5272
        %v5362 = vmul.f32 %v2599, %v5274
        %v5363 = vmul.f32 %v2600, %v5276
        %v5364 = vmul.f32 %v2601, %v5278
        %v5365 = vmul.f32 %v2602, %v5280
        %v5366 = vmul.f32 %v2603, %v5282
        %v5367 = vmul.f32 %v2604, %v5284
        %v5368 = vmul.f32 %v2605, %v5286
        %v5369 = vmul.f32 %v2606, %v5288
        %v5370 = vmul.f32 %v2607, %v5290
        %v5371 = vmul.f32 %v2608, %v5292
        %v5372 = vmul.f32 %v2609, %v5294
        %v5373 = vmul.f32 %v2610, %v5296
        %v5374 = vmul.f32 %v2611, %v5298
        %v5375 = vmul.f32 %v2612, %v5300
        %v5376 = vmul.f32 %v2613, %v5302
        %v5377 = vmul.f32 %v2614, %v5304
        %v5378 = vmul.f32 %v2615, %v5306
        %v5379 = vmul.f32 %v2616, %v5308
        %v5380 = vmul.f32 %v2617, %v5310
        %v5381 = vmul.f32 %v2618, %v5312
        %v5382 = vmul.f32 %v2619, %v5314
        %v5383 = vmul.f32 %v2620, %v5316
        %v5384 = vmul.f32 %v2621, %v5318
        %v5385 = vmul.f32 %v2622, %v5320
        %v5386 = vmul.f32 %v2623, %v5322
        %5419 = vrot.lane.b32.xlu0 %v5355, 124
        %v5420 = vpop.permute.xlu0 %5419
        %5421 = vrot.lane.b32.xlu0 %v5356, 124
        %v5422 = vpop.permute.xlu0 %5421
        %5423 = vrot.lane.b32.xlu0 %v5357, 124
        %v5424 = vpop.permute.xlu0 %5423
        %5425 = vrot.lane.b32.xlu0 %v5358, 124
        %v5426 = vpop.permute.xlu0 %5425
        %5427 = vrot.lane.b32.xlu0 %v5359, 124
        %v5428 = vpop.permute.xlu0 %5427
        %5429 = vrot.lane.b32.xlu0 %v5360, 124
        %v5430 = vpop.permute.xlu0 %5429
        %5431 = vrot.lane.b32.xlu0 %v5361, 124
        %v5432 = vpop.permute.xlu0 %5431
        %5433 = vrot.lane.b32.xlu0 %v5362, 124
        %v5434 = vpop.permute.xlu0 %5433
        %5435 = vrot.lane.b32.xlu0 %v5363, 124
        %v5436 = vpop.permute.xlu0 %5435
        %5437 = vrot.lane.b32.xlu0 %v5364, 124
        %v5438 = vpop.permute.xlu0 %5437
        %5439 = vrot.lane.b32.xlu0 %v5365, 124
        %v5440 = vpop.permute.xlu0 %5439
        %5441 = vrot.lane.b32.xlu0 %v5366, 124
        %v5442 = vpop.permute.xlu0 %5441
        %5443 = vrot.lane.b32.xlu0 %v5367, 124
        %v5444 = vpop.permute.xlu0 %5443
        %5445 = vrot.lane.b32.xlu0 %v5368, 124
        %v5446 = vpop.permute.xlu0 %5445
        %5447 = vrot.lane.b32.xlu0 %v5369, 124
        %v5448 = vpop.permute.xlu0 %5447
        %5449 = vrot.lane.b32.xlu0 %v5370, 124
        %v5450 = vpop.permute.xlu0 %5449
        %5451 = vrot.lane.b32.xlu0 %v5371, 124
        %v5452 = vpop.permute.xlu0 %5451
        %5453 = vrot.lane.b32.xlu0 %v5372, 124
        %v5454 = vpop.permute.xlu0 %5453
        %5455 = vrot.lane.b32.xlu0 %v5373, 124
        %v5456 = vpop.permute.xlu0 %5455
        %5457 = vrot.lane.b32.xlu0 %v5374, 124
        %v5458 = vpop.permute.xlu0 %5457
        %5459 = vrot.lane.b32.xlu0 %v5375, 124
        %v5460 = vpop.permute.xlu0 %5459
        %5461 = vrot.lane.b32.xlu0 %v5376, 124
        %v5462 = vpop.permute.xlu0 %5461
        %5463 = vrot.lane.b32.xlu0 %v5377, 124
        %v5464 = vpop.permute.xlu0 %5463
        %5465 = vrot.lane.b32.xlu0 %v5378, 124
        %v5466 = vpop.permute.xlu0 %5465
        %5467 = vrot.lane.b32.xlu0 %v5379, 124
        %v5468 = vpop.permute.xlu0 %5467
        %5469 = vrot.lane.b32.xlu0 %v5380, 124
        %v5470 = vpop.permute.xlu0 %5469
        %5471 = vrot.lane.b32.xlu0 %v5381, 124
        %v5472 = vpop.permute.xlu0 %5471
        %5473 = vrot.lane.b32.xlu0 %v5382, 124
        %v5474 = vpop.permute.xlu0 %5473
        %5475 = vrot.lane.b32.xlu0 %v5383, 124
        %v5476 = vpop.permute.xlu0 %5475
        %5477 = vrot.lane.b32.xlu0 %v5384, 124
        %v5478 = vpop.permute.xlu0 %5477
        %5479 = vrot.lane.b32.xlu0 %v5385, 124
        %v5480 = vpop.permute.xlu0 %5479
        %5481 = vrot.lane.b32.xlu0 %v5386, 124
        %v5482 = vpop.permute.xlu0 %5481
        %v5515 = vadd.f32 %v5227, %v5420
        %v5516 = vadd.f32 %v5228, %v5422
        %v5517 = vadd.f32 %v5229, %v5424
        %v5518 = vadd.f32 %v5230, %v5426
        %v5519 = vadd.f32 %v5231, %v5428
        %v5520 = vadd.f32 %v5232, %v5430
        %v5521 = vadd.f32 %v5233, %v5432
        %v5522 = vadd.f32 %v5234, %v5434
        %v5523 = vadd.f32 %v5235, %v5436
        %v5524 = vadd.f32 %v5236, %v5438
        %v5525 = vadd.f32 %v5237, %v5440
        %v5526 = vadd.f32 %v5238, %v5442
        %v5527 = vadd.f32 %v5239, %v5444
        %v5528 = vadd.f32 %v5240, %v5446
        %v5529 = vadd.f32 %v5241, %v5448
        %v5530 = vadd.f32 %v5242, %v5450
        %v5531 = vadd.f32 %v5243, %v5452
        %v5532 = vadd.f32 %v5244, %v5454
        %v5533 = vadd.f32 %v5245, %v5456
        %v5534 = vadd.f32 %v5246, %v5458
        %v5535 = vadd.f32 %v5247, %v5460
        %v5536 = vadd.f32 %v5248, %v5462
        %v5537 = vadd.f32 %v5249, %v5464
        %v5538 = vadd.f32 %v5250, %v5466
        %v5539 = vadd.f32 %v5251, %v5468
        %v5540 = vadd.f32 %v5252, %v5470
        %v5541 = vadd.f32 %v5253, %v5472
        %v5542 = vadd.f32 %v5254, %v5474
        %v5543 = vadd.f32 %v5255, %v5476
        %v5544 = vadd.f32 %v5256, %v5478
        %v5545 = vadd.f32 %v5257, %v5480
        %v5546 = vadd.f32 %v5258, %v5482
        %5547 = vrot.lane.b32.xlu0 %v5355, 122
        %v5548 = vpop.permute.xlu0 %5547
        %5549 = vrot.lane.b32.xlu0 %v5356, 122
        %v5550 = vpop.permute.xlu0 %5549
        %5551 = vrot.lane.b32.xlu0 %v5357, 122
        %v5552 = vpop.permute.xlu0 %5551
        %5553 = vrot.lane.b32.xlu0 %v5358, 122
        %v5554 = vpop.permute.xlu0 %5553
        %5555 = vrot.lane.b32.xlu0 %v5359, 122
        %v5556 = vpop.permute.xlu0 %5555
        %5557 = vrot.lane.b32.xlu0 %v5360, 122
        %v5558 = vpop.permute.xlu0 %5557
        %5559 = vrot.lane.b32.xlu0 %v5361, 122
        %v5560 = vpop.permute.xlu0 %5559
        %5561 = vrot.lane.b32.xlu0 %v5362, 122
        %v5562 = vpop.permute.xlu0 %5561
        %5563 = vrot.lane.b32.xlu0 %v5363, 122
        %v5564 = vpop.permute.xlu0 %5563
        %5565 = vrot.lane.b32.xlu0 %v5364, 122
        %v5566 = vpop.permute.xlu0 %5565
        %5567 = vrot.lane.b32.xlu0 %v5365, 122
        %v5568 = vpop.permute.xlu0 %5567
        %5569 = vrot.lane.b32.xlu0 %v5366, 122
        %v5570 = vpop.permute.xlu0 %5569
        %5571 = vrot.lane.b32.xlu0 %v5367, 122
        %v5572 = vpop.permute.xlu0 %5571
        %5573 = vrot.lane.b32.xlu0 %v5368, 122
        %v5574 = vpop.permute.xlu0 %5573
        %5575 = vrot.lane.b32.xlu0 %v5369, 122
        %v5576 = vpop.permute.xlu0 %5575
        %5577 = vrot.lane.b32.xlu0 %v5370, 122
        %v5578 = vpop.permute.xlu0 %5577
        %5579 = vrot.lane.b32.xlu0 %v5371, 122
        %v5580 = vpop.permute.xlu0 %5579
        %5581 = vrot.lane.b32.xlu0 %v5372, 122
        %v5582 = vpop.permute.xlu0 %5581
        %5583 = vrot.lane.b32.xlu0 %v5373, 122
        %v5584 = vpop.permute.xlu0 %5583
        %5585 = vrot.lane.b32.xlu0 %v5374, 122
        %v5586 = vpop.permute.xlu0 %5585
        %5587 = vrot.lane.b32.xlu0 %v5375, 122
        %v5588 = vpop.permute.xlu0 %5587
        %5589 = vrot.lane.b32.xlu0 %v5376, 122
        %v5590 = vpop.permute.xlu0 %5589
        %5591 = vrot.lane.b32.xlu0 %v5377, 122
        %v5592 = vpop.permute.xlu0 %5591
        %5593 = vrot.lane.b32.xlu0 %v5378, 122
        %v5594 = vpop.permute.xlu0 %5593
        %5595 = vrot.lane.b32.xlu0 %v5379, 122
        %v5596 = vpop.permute.xlu0 %5595
        %5597 = vrot.lane.b32.xlu0 %v5380, 122
        %v5598 = vpop.permute.xlu0 %5597
        %5599 = vrot.lane.b32.xlu0 %v5381, 122
        %v5600 = vpop.permute.xlu0 %5599
        %5601 = vrot.lane.b32.xlu0 %v5382, 122
        %v5602 = vpop.permute.xlu0 %5601
        %5603 = vrot.lane.b32.xlu0 %v5383, 122
        %v5604 = vpop.permute.xlu0 %5603
        %5605 = vrot.lane.b32.xlu0 %v5384, 122
        %v5606 = vpop.permute.xlu0 %5605
        %5607 = vrot.lane.b32.xlu0 %v5385, 122
        %v5608 = vpop.permute.xlu0 %5607
        %5609 = vrot.lane.b32.xlu0 %v5386, 122
        %v5610 = vpop.permute.xlu0 %5609
        %v5643 = vadd.f32 %v5515, %v5548
        %v5644 = vadd.f32 %v5516, %v5550
        %v5645 = vadd.f32 %v5517, %v5552
        %v5646 = vadd.f32 %v5518, %v5554
        %v5647 = vadd.f32 %v5519, %v5556
        %v5648 = vadd.f32 %v5520, %v5558
        %v5649 = vadd.f32 %v5521, %v5560
        %v5650 = vadd.f32 %v5522, %v5562
        %v5651 = vadd.f32 %v5523, %v5564
        %v5652 = vadd.f32 %v5524, %v5566
        %v5653 = vadd.f32 %v5525, %v5568
        %v5654 = vadd.f32 %v5526, %v5570
        %v5655 = vadd.f32 %v5527, %v5572
        %v5656 = vadd.f32 %v5528, %v5574
        %v5657 = vadd.f32 %v5529, %v5576
        %v5658 = vadd.f32 %v5530, %v5578
        %v5659 = vadd.f32 %v5531, %v5580
        %v5660 = vadd.f32 %v5532, %v5582
        %v5661 = vadd.f32 %v5533, %v5584
        %v5662 = vadd.f32 %v5534, %v5586
        %v5663 = vadd.f32 %v5535, %v5588
        %v5664 = vadd.f32 %v5536, %v5590
        %v5665 = vadd.f32 %v5537, %v5592
        %v5666 = vadd.f32 %v5538, %v5594
        %v5667 = vadd.f32 %v5539, %v5596
        %v5668 = vadd.f32 %v5540, %v5598
        %v5669 = vadd.f32 %v5541, %v5600
        %v5670 = vadd.f32 %v5542, %v5602
        %v5671 = vadd.f32 %v5543, %v5604
        %v5672 = vadd.f32 %v5544, %v5606
        %v5673 = vadd.f32 %v5545, %v5608
        %v5674 = vadd.f32 %v5546, %v5610
        %5675 = vrot.lane.b32.xlu0 %v3755, 122
        %v5676 = vpop.permute.xlu0 %5675
        %5677 = vrot.lane.b32.xlu0 %v3756, 122
        %v5678 = vpop.permute.xlu0 %5677
        %5679 = vrot.lane.b32.xlu0 %v3757, 122
        %v5680 = vpop.permute.xlu0 %5679
        %5681 = vrot.lane.b32.xlu0 %v3758, 122
        %v5682 = vpop.permute.xlu0 %5681
        %5683 = vrot.lane.b32.xlu0 %v3759, 122
        %v5684 = vpop.permute.xlu0 %5683
        %5685 = vrot.lane.b32.xlu0 %v3760, 122
        %v5686 = vpop.permute.xlu0 %5685
        %5687 = vrot.lane.b32.xlu0 %v3761, 122
        %v5688 = vpop.permute.xlu0 %5687
        %5689 = vrot.lane.b32.xlu0 %v3762, 122
        %v5690 = vpop.permute.xlu0 %5689
        %5691 = vrot.lane.b32.xlu0 %v3763, 122
        %v5692 = vpop.permute.xlu0 %5691
        %5693 = vrot.lane.b32.xlu0 %v3764, 122
        %v5694 = vpop.permute.xlu0 %5693
        %5695 = vrot.lane.b32.xlu0 %v3765, 122
        %v5696 = vpop.permute.xlu0 %5695
        %5697 = vrot.lane.b32.xlu0 %v3766, 122
        %v5698 = vpop.permute.xlu0 %5697
        %5699 = vrot.lane.b32.xlu0 %v3767, 122
        %v5700 = vpop.permute.xlu0 %5699
        %5701 = vrot.lane.b32.xlu0 %v3768, 122
        %v5702 = vpop.permute.xlu0 %5701
        %5703 = vrot.lane.b32.xlu0 %v3769, 122
        %v5704 = vpop.permute.xlu0 %5703
        %5705 = vrot.lane.b32.xlu0 %v3770, 122
        %v5706 = vpop.permute.xlu0 %5705
        %5707 = vrot.lane.b32.xlu0 %v3771, 122
        %v5708 = vpop.permute.xlu0 %5707
        %5709 = vrot.lane.b32.xlu0 %v3772, 122
        %v5710 = vpop.permute.xlu0 %5709
        %5711 = vrot.lane.b32.xlu0 %v3773, 122
        %v5712 = vpop.permute.xlu0 %5711
        %5713 = vrot.lane.b32.xlu0 %v3774, 122
        %v5714 = vpop.permute.xlu0 %5713
        %5715 = vrot.lane.b32.xlu0 %v3775, 122
        %v5716 = vpop.permute.xlu0 %5715
        %5717 = vrot.lane.b32.xlu0 %v3776, 122
        %v5718 = vpop.permute.xlu0 %5717
        %5719 = vrot.lane.b32.xlu0 %v3777, 122
        %v5720 = vpop.permute.xlu0 %5719
        %5721 = vrot.lane.b32.xlu0 %v3778, 122
        %v5722 = vpop.permute.xlu0 %5721
        %5723 = vrot.lane.b32.xlu0 %v3779, 122
        %v5724 = vpop.permute.xlu0 %5723
        %5725 = vrot.lane.b32.xlu0 %v3780, 122
        %v5726 = vpop.permute.xlu0 %5725
        %5727 = vrot.lane.b32.xlu0 %v3781, 122
        %v5728 = vpop.permute.xlu0 %5727
        %5729 = vrot.lane.b32.xlu0 %v3782, 122
        %v5730 = vpop.permute.xlu0 %5729
        %5731 = vrot.lane.b32.xlu0 %v3783, 122
        %v5732 = vpop.permute.xlu0 %5731
        %5733 = vrot.lane.b32.xlu0 %v3784, 122
        %v5734 = vpop.permute.xlu0 %5733
        %5735 = vrot.lane.b32.xlu0 %v3785, 122
        %v5736 = vpop.permute.xlu0 %5735
        %5737 = vrot.lane.b32.xlu0 %v3786, 122
        %v5738 = vpop.permute.xlu0 %5737
        %v5771 = vmul.f32 %v2592, %v5676
        %v5772 = vmul.f32 %v2593, %v5678
        %v5773 = vmul.f32 %v2594, %v5680
        %v5774 = vmul.f32 %v2595, %v5682
        %v5775 = vmul.f32 %v2596, %v5684
        %v5776 = vmul.f32 %v2597, %v5686
        %v5777 = vmul.f32 %v2598, %v5688
        %v5778 = vmul.f32 %v2599, %v5690
        %v5779 = vmul.f32 %v2600, %v5692
        %v5780 = vmul.f32 %v2601, %v5694
        %v5781 = vmul.f32 %v2602, %v5696
        %v5782 = vmul.f32 %v2603, %v5698
        %v5783 = vmul.f32 %v2604, %v5700
        %v5784 = vmul.f32 %v2605, %v5702
        %v5785 = vmul.f32 %v2606, %v5704
        %v5786 = vmul.f32 %v2607, %v5706
        %v5787 = vmul.f32 %v2608, %v5708
        %v5788 = vmul.f32 %v2609, %v5710
        %v5789 = vmul.f32 %v2610, %v5712
        %v5790 = vmul.f32 %v2611, %v5714
        %v5791 = vmul.f32 %v2612, %v5716
        %v5792 = vmul.f32 %v2613, %v5718
        %v5793 = vmul.f32 %v2614, %v5720
        %v5794 = vmul.f32 %v2615, %v5722
        %v5795 = vmul.f32 %v2616, %v5724
        %v5796 = vmul.f32 %v2617, %v5726
        %v5797 = vmul.f32 %v2618, %v5728
        %v5798 = vmul.f32 %v2619, %v5730
        %v5799 = vmul.f32 %v2620, %v5732
        %v5800 = vmul.f32 %v2621, %v5734
        %v5801 = vmul.f32 %v2622, %v5736
        %v5802 = vmul.f32 %v2623, %v5738
        %5803 = vrot.lane.b32.xlu0 %v4363, 126
        %v5804 = vpop.permute.xlu0 %5803
        %5805 = vrot.lane.b32.xlu0 %v4364, 126
        %v5806 = vpop.permute.xlu0 %5805
        %5807 = vrot.lane.b32.xlu0 %v4365, 126
        %v5808 = vpop.permute.xlu0 %5807
        %5809 = vrot.lane.b32.xlu0 %v4366, 126
        %v5810 = vpop.permute.xlu0 %5809
        %5811 = vrot.lane.b32.xlu0 %v4367, 126
        %v5812 = vpop.permute.xlu0 %5811
        %5813 = vrot.lane.b32.xlu0 %v4368, 126
        %v5814 = vpop.permute.xlu0 %5813
        %5815 = vrot.lane.b32.xlu0 %v4369, 126
        %v5816 = vpop.permute.xlu0 %5815
        %5817 = vrot.lane.b32.xlu0 %v4370, 126
        %v5818 = vpop.permute.xlu0 %5817
        %5819 = vrot.lane.b32.xlu0 %v4371, 126
        %v5820 = vpop.permute.xlu0 %5819
        %5821 = vrot.lane.b32.xlu0 %v4372, 126
        %v5822 = vpop.permute.xlu0 %5821
        %5823 = vrot.lane.b32.xlu0 %v4373, 126
        %v5824 = vpop.permute.xlu0 %5823
        %5825 = vrot.lane.b32.xlu0 %v4374, 126
        %v5826 = vpop.permute.xlu0 %5825
        %5827 = vrot.lane.b32.xlu0 %v4375, 126
        %v5828 = vpop.permute.xlu0 %5827
        %5829 = vrot.lane.b32.xlu0 %v4376, 126
        %v5830 = vpop.permute.xlu0 %5829
        %5831 = vrot.lane.b32.xlu0 %v4377, 126
        %v5832 = vpop.permute.xlu0 %5831
        %5833 = vrot.lane.b32.xlu0 %v4378, 126
        %v5834 = vpop.permute.xlu0 %5833
        %5835 = vrot.lane.b32.xlu0 %v4379, 126
        %v5836 = vpop.permute.xlu0 %5835
        %5837 = vrot.lane.b32.xlu0 %v4380, 126
        %v5838 = vpop.permute.xlu0 %5837
        %5839 = vrot.lane.b32.xlu0 %v4381, 126
        %v5840 = vpop.permute.xlu0 %5839
        %5841 = vrot.lane.b32.xlu0 %v4382, 126
        %v5842 = vpop.permute.xlu0 %5841
        %5843 = vrot.lane.b32.xlu0 %v4383, 126
        %v5844 = vpop.permute.xlu0 %5843
        %5845 = vrot.lane.b32.xlu0 %v4384, 126
        %v5846 = vpop.permute.xlu0 %5845
        %5847 = vrot.lane.b32.xlu0 %v4385, 126
        %v5848 = vpop.permute.xlu0 %5847
        %5849 = vrot.lane.b32.xlu0 %v4386, 126
        %v5850 = vpop.permute.xlu0 %5849
        %5851 = vrot.lane.b32.xlu0 %v4387, 126
        %v5852 = vpop.permute.xlu0 %5851
        %5853 = vrot.lane.b32.xlu0 %v4388, 126
        %v5854 = vpop.permute.xlu0 %5853
        %5855 = vrot.lane.b32.xlu0 %v4389, 126
        %v5856 = vpop.permute.xlu0 %5855
        %5857 = vrot.lane.b32.xlu0 %v4390, 126
        %v5858 = vpop.permute.xlu0 %5857
        %5859 = vrot.lane.b32.xlu0 %v4391, 126
        %v5860 = vpop.permute.xlu0 %5859
        %5861 = vrot.lane.b32.xlu0 %v4392, 126
        %v5862 = vpop.permute.xlu0 %5861
        %5863 = vrot.lane.b32.xlu0 %v4393, 126
        %v5864 = vpop.permute.xlu0 %5863
        %5865 = vrot.lane.b32.xlu0 %v4394, 126
        %v5866 = vpop.permute.xlu0 %5865
        %v5899 = vadd.f32 %v5771, %v5804
        %v5900 = vadd.f32 %v5772, %v5806
        %v5901 = vadd.f32 %v5773, %v5808
        %v5902 = vadd.f32 %v5774, %v5810
        %v5903 = vadd.f32 %v5775, %v5812
        %v5904 = vadd.f32 %v5776, %v5814
        %v5905 = vadd.f32 %v5777, %v5816
        %v5906 = vadd.f32 %v5778, %v5818
        %v5907 = vadd.f32 %v5779, %v5820
        %v5908 = vadd.f32 %v5780, %v5822
        %v5909 = vadd.f32 %v5781, %v5824
        %v5910 = vadd.f32 %v5782, %v5826
        %v5911 = vadd.f32 %v5783, %v5828
        %v5912 = vadd.f32 %v5784, %v5830
        %v5913 = vadd.f32 %v5785, %v5832
        %v5914 = vadd.f32 %v5786, %v5834
        %v5915 = vadd.f32 %v5787, %v5836
        %v5916 = vadd.f32 %v5788, %v5838
        %v5917 = vadd.f32 %v5789, %v5840
        %v5918 = vadd.f32 %v5790, %v5842
        %v5919 = vadd.f32 %v5791, %v5844
        %v5920 = vadd.f32 %v5792, %v5846
        %v5921 = vadd.f32 %v5793, %v5848
        %v5922 = vadd.f32 %v5794, %v5850
        %v5923 = vadd.f32 %v5795, %v5852
        %v5924 = vadd.f32 %v5796, %v5854
        %v5925 = vadd.f32 %v5797, %v5856
        %v5926 = vadd.f32 %v5798, %v5858
        %v5927 = vadd.f32 %v5799, %v5860
        %v5928 = vadd.f32 %v5800, %v5862
        %v5929 = vadd.f32 %v5801, %v5864
        %v5930 = vadd.f32 %v5802, %v5866
        %5931 = vrot.lane.b32.xlu0 %v4491, 124
        %v5932 = vpop.permute.xlu0 %5931
        %5933 = vrot.lane.b32.xlu0 %v4492, 124
        %v5934 = vpop.permute.xlu0 %5933
        %5935 = vrot.lane.b32.xlu0 %v4493, 124
        %v5936 = vpop.permute.xlu0 %5935
        %5937 = vrot.lane.b32.xlu0 %v4494, 124
        %v5938 = vpop.permute.xlu0 %5937
        %5939 = vrot.lane.b32.xlu0 %v4495, 124
        %v5940 = vpop.permute.xlu0 %5939
        %5941 = vrot.lane.b32.xlu0 %v4496, 124
        %v5942 = vpop.permute.xlu0 %5941
        %5943 = vrot.lane.b32.xlu0 %v4497, 124
        %v5944 = vpop.permute.xlu0 %5943
        %5945 = vrot.lane.b32.xlu0 %v4498, 124
        %v5946 = vpop.permute.xlu0 %5945
        %5947 = vrot.lane.b32.xlu0 %v4499, 124
        %v5948 = vpop.permute.xlu0 %5947
        %5949 = vrot.lane.b32.xlu0 %v4500, 124
        %v5950 = vpop.permute.xlu0 %5949
        %5951 = vrot.lane.b32.xlu0 %v4501, 124
        %v5952 = vpop.permute.xlu0 %5951
        %5953 = vrot.lane.b32.xlu0 %v4502, 124
        %v5954 = vpop.permute.xlu0 %5953
        %5955 = vrot.lane.b32.xlu0 %v4503, 124
        %v5956 = vpop.permute.xlu0 %5955
        %5957 = vrot.lane.b32.xlu0 %v4504, 124
        %v5958 = vpop.permute.xlu0 %5957
        %5959 = vrot.lane.b32.xlu0 %v4505, 124
        %v5960 = vpop.permute.xlu0 %5959
        %5961 = vrot.lane.b32.xlu0 %v4506, 124
        %v5962 = vpop.permute.xlu0 %5961
        %5963 = vrot.lane.b32.xlu0 %v4507, 124
        %v5964 = vpop.permute.xlu0 %5963
        %5965 = vrot.lane.b32.xlu0 %v4508, 124
        %v5966 = vpop.permute.xlu0 %5965
        %5967 = vrot.lane.b32.xlu0 %v4509, 124
        %v5968 = vpop.permute.xlu0 %5967
        %5969 = vrot.lane.b32.xlu0 %v4510, 124
        %v5970 = vpop.permute.xlu0 %5969
        %5971 = vrot.lane.b32.xlu0 %v4511, 124
        %v5972 = vpop.permute.xlu0 %5971
        %5973 = vrot.lane.b32.xlu0 %v4512, 124
        %v5974 = vpop.permute.xlu0 %5973
        %5975 = vrot.lane.b32.xlu0 %v4513, 124
        %v5976 = vpop.permute.xlu0 %5975
        %5977 = vrot.lane.b32.xlu0 %v4514, 124
        %v5978 = vpop.permute.xlu0 %5977
        %5979 = vrot.lane.b32.xlu0 %v4515, 124
        %v5980 = vpop.permute.xlu0 %5979
        %5981 = vrot.lane.b32.xlu0 %v4516, 124
        %v5982 = vpop.permute.xlu0 %5981
        %5983 = vrot.lane.b32.xlu0 %v4517, 124
        %v5984 = vpop.permute.xlu0 %5983
        %5985 = vrot.lane.b32.xlu0 %v4518, 124
        %v5986 = vpop.permute.xlu0 %5985
        %5987 = vrot.lane.b32.xlu0 %v4519, 124
        %v5988 = vpop.permute.xlu0 %5987
        %5989 = vrot.lane.b32.xlu0 %v4520, 124
        %v5990 = vpop.permute.xlu0 %5989
        %5991 = vrot.lane.b32.xlu0 %v4521, 124
        %v5992 = vpop.permute.xlu0 %5991
        %5993 = vrot.lane.b32.xlu0 %v4522, 124
        %v5994 = vpop.permute.xlu0 %5993
        %v6027 = vsub.f32 %v5899, %v5932
        %v6028 = vsub.f32 %v5900, %v5934
        %v6029 = vsub.f32 %v5901, %v5936
        %v6030 = vsub.f32 %v5902, %v5938
        %v6031 = vsub.f32 %v5903, %v5940
        %v6032 = vsub.f32 %v5904, %v5942
        %v6033 = vsub.f32 %v5905, %v5944
        %v6034 = vsub.f32 %v5906, %v5946
        %v6035 = vsub.f32 %v5907, %v5948
        %v6036 = vsub.f32 %v5908, %v5950
        %v6037 = vsub.f32 %v5909, %v5952
        %v6038 = vsub.f32 %v5910, %v5954
        %v6039 = vsub.f32 %v5911, %v5956
        %v6040 = vsub.f32 %v5912, %v5958
        %v6041 = vsub.f32 %v5913, %v5960
        %v6042 = vsub.f32 %v5914, %v5962
        %v6043 = vsub.f32 %v5915, %v5964
        %v6044 = vsub.f32 %v5916, %v5966
        %v6045 = vsub.f32 %v5917, %v5968
        %v6046 = vsub.f32 %v5918, %v5970
        %v6047 = vsub.f32 %v5919, %v5972
        %v6048 = vsub.f32 %v5920, %v5974
        %v6049 = vsub.f32 %v5921, %v5976
        %v6050 = vsub.f32 %v5922, %v5978
        %v6051 = vsub.f32 %v5923, %v5980
        %v6052 = vsub.f32 %v5924, %v5982
        %v6053 = vsub.f32 %v5925, %v5984
        %v6054 = vsub.f32 %v5926, %v5986
        %v6055 = vsub.f32 %v5927, %v5988
        %v6056 = vsub.f32 %v5928, %v5990
        %v6057 = vsub.f32 %v5929, %v5992
        %v6058 = vsub.f32 %v5930, %v5994
        %6059 = vrot.lane.b32.xlu0 %v3755, 6
        %v6060 = vpop.permute.xlu0 %6059
        %6061 = vrot.lane.b32.xlu0 %v3756, 6
        %v6062 = vpop.permute.xlu0 %6061
        %6063 = vrot.lane.b32.xlu0 %v3757, 6
        %v6064 = vpop.permute.xlu0 %6063
        %6065 = vrot.lane.b32.xlu0 %v3758, 6
        %v6066 = vpop.permute.xlu0 %6065
        %6067 = vrot.lane.b32.xlu0 %v3759, 6
        %v6068 = vpop.permute.xlu0 %6067
        %6069 = vrot.lane.b32.xlu0 %v3760, 6
        %v6070 = vpop.permute.xlu0 %6069
        %6071 = vrot.lane.b32.xlu0 %v3761, 6
        %v6072 = vpop.permute.xlu0 %6071
        %6073 = vrot.lane.b32.xlu0 %v3762, 6
        %v6074 = vpop.permute.xlu0 %6073
        %6075 = vrot.lane.b32.xlu0 %v3763, 6
        %v6076 = vpop.permute.xlu0 %6075
        %6077 = vrot.lane.b32.xlu0 %v3764, 6
        %v6078 = vpop.permute.xlu0 %6077
        %6079 = vrot.lane.b32.xlu0 %v3765, 6
        %v6080 = vpop.permute.xlu0 %6079
        %6081 = vrot.lane.b32.xlu0 %v3766, 6
        %v6082 = vpop.permute.xlu0 %6081
        %6083 = vrot.lane.b32.xlu0 %v3767, 6
        %v6084 = vpop.permute.xlu0 %6083
        %6085 = vrot.lane.b32.xlu0 %v3768, 6
        %v6086 = vpop.permute.xlu0 %6085
        %6087 = vrot.lane.b32.xlu0 %v3769, 6
        %v6088 = vpop.permute.xlu0 %6087
        %6089 = vrot.lane.b32.xlu0 %v3770, 6
        %v6090 = vpop.permute.xlu0 %6089
        %6091 = vrot.lane.b32.xlu0 %v3771, 6
        %v6092 = vpop.permute.xlu0 %6091
        %6093 = vrot.lane.b32.xlu0 %v3772, 6
        %v6094 = vpop.permute.xlu0 %6093
        %6095 = vrot.lane.b32.xlu0 %v3773, 6
        %v6096 = vpop.permute.xlu0 %6095
        %6097 = vrot.lane.b32.xlu0 %v3774, 6
        %v6098 = vpop.permute.xlu0 %6097
        %6099 = vrot.lane.b32.xlu0 %v3775, 6
        %v6100 = vpop.permute.xlu0 %6099
        %6101 = vrot.lane.b32.xlu0 %v3776, 6
        %v6102 = vpop.permute.xlu0 %6101
        %6103 = vrot.lane.b32.xlu0 %v3777, 6
        %v6104 = vpop.permute.xlu0 %6103
        %6105 = vrot.lane.b32.xlu0 %v3778, 6
        %v6106 = vpop.permute.xlu0 %6105
        %6107 = vrot.lane.b32.xlu0 %v3779, 6
        %v6108 = vpop.permute.xlu0 %6107
        %6109 = vrot.lane.b32.xlu0 %v3780, 6
        %v6110 = vpop.permute.xlu0 %6109
        %6111 = vrot.lane.b32.xlu0 %v3781, 6
        %v6112 = vpop.permute.xlu0 %6111
        %6113 = vrot.lane.b32.xlu0 %v3782, 6
        %v6114 = vpop.permute.xlu0 %6113
        %6115 = vrot.lane.b32.xlu0 %v3783, 6
        %v6116 = vpop.permute.xlu0 %6115
        %6117 = vrot.lane.b32.xlu0 %v3784, 6
        %v6118 = vpop.permute.xlu0 %6117
        %6119 = vrot.lane.b32.xlu0 %v3785, 6
        %v6120 = vpop.permute.xlu0 %6119
        %6121 = vrot.lane.b32.xlu0 %v3786, 6
        %v6122 = vpop.permute.xlu0 %6121
        %v6155 = vmul.f32 %v2592, %v6060
        %v6156 = vmul.f32 %v2593, %v6062
        %v6157 = vmul.f32 %v2594, %v6064
        %v6158 = vmul.f32 %v2595, %v6066
        %v6159 = vmul.f32 %v2596, %v6068
        %v6160 = vmul.f32 %v2597, %v6070
        %v6161 = vmul.f32 %v2598, %v6072
        %v6162 = vmul.f32 %v2599, %v6074
        %v6163 = vmul.f32 %v2600, %v6076
        %v6164 = vmul.f32 %v2601, %v6078
        %v6165 = vmul.f32 %v2602, %v6080
        %v6166 = vmul.f32 %v2603, %v6082
        %v6167 = vmul.f32 %v2604, %v6084
        %v6168 = vmul.f32 %v2605, %v6086
        %v6169 = vmul.f32 %v2606, %v6088
        %v6170 = vmul.f32 %v2607, %v6090
        %v6171 = vmul.f32 %v2608, %v6092
        %v6172 = vmul.f32 %v2609, %v6094
        %v6173 = vmul.f32 %v2610, %v6096
        %v6174 = vmul.f32 %v2611, %v6098
        %v6175 = vmul.f32 %v2612, %v6100
        %v6176 = vmul.f32 %v2613, %v6102
        %v6177 = vmul.f32 %v2614, %v6104
        %v6178 = vmul.f32 %v2615, %v6106
        %v6179 = vmul.f32 %v2616, %v6108
        %v6180 = vmul.f32 %v2617, %v6110
        %v6181 = vmul.f32 %v2618, %v6112
        %v6182 = vmul.f32 %v2619, %v6114
        %v6183 = vmul.f32 %v2620, %v6116
        %v6184 = vmul.f32 %v2621, %v6118
        %v6185 = vmul.f32 %v2622, %v6120
        %v6186 = vmul.f32 %v2623, %v6122
        %6219 = vrot.lane.b32.xlu0 %v6155, 122
        %v6220 = vpop.permute.xlu0 %6219
        %6221 = vrot.lane.b32.xlu0 %v6156, 122
        %v6222 = vpop.permute.xlu0 %6221
        %6223 = vrot.lane.b32.xlu0 %v6157, 122
        %v6224 = vpop.permute.xlu0 %6223
        %6225 = vrot.lane.b32.xlu0 %v6158, 122
        %v6226 = vpop.permute.xlu0 %6225
        %6227 = vrot.lane.b32.xlu0 %v6159, 122
        %v6228 = vpop.permute.xlu0 %6227
        %6229 = vrot.lane.b32.xlu0 %v6160, 122
        %v6230 = vpop.permute.xlu0 %6229
        %6231 = vrot.lane.b32.xlu0 %v6161, 122
        %v6232 = vpop.permute.xlu0 %6231
        %6233 = vrot.lane.b32.xlu0 %v6162, 122
        %v6234 = vpop.permute.xlu0 %6233
        %6235 = vrot.lane.b32.xlu0 %v6163, 122
        %v6236 = vpop.permute.xlu0 %6235
        %6237 = vrot.lane.b32.xlu0 %v6164, 122
        %v6238 = vpop.permute.xlu0 %6237
        %6239 = vrot.lane.b32.xlu0 %v6165, 122
        %v6240 = vpop.permute.xlu0 %6239
        %6241 = vrot.lane.b32.xlu0 %v6166, 122
        %v6242 = vpop.permute.xlu0 %6241
        %6243 = vrot.lane.b32.xlu0 %v6167, 122
        %v6244 = vpop.permute.xlu0 %6243
        %6245 = vrot.lane.b32.xlu0 %v6168, 122
        %v6246 = vpop.permute.xlu0 %6245
        %6247 = vrot.lane.b32.xlu0 %v6169, 122
        %v6248 = vpop.permute.xlu0 %6247
        %6249 = vrot.lane.b32.xlu0 %v6170, 122
        %v6250 = vpop.permute.xlu0 %6249
        %6251 = vrot.lane.b32.xlu0 %v6171, 122
        %v6252 = vpop.permute.xlu0 %6251
        %6253 = vrot.lane.b32.xlu0 %v6172, 122
        %v6254 = vpop.permute.xlu0 %6253
        %6255 = vrot.lane.b32.xlu0 %v6173, 122
        %v6256 = vpop.permute.xlu0 %6255
        %6257 = vrot.lane.b32.xlu0 %v6174, 122
        %v6258 = vpop.permute.xlu0 %6257
        %6259 = vrot.lane.b32.xlu0 %v6175, 122
        %v6260 = vpop.permute.xlu0 %6259
        %6261 = vrot.lane.b32.xlu0 %v6176, 122
        %v6262 = vpop.permute.xlu0 %6261
        %6263 = vrot.lane.b32.xlu0 %v6177, 122
        %v6264 = vpop.permute.xlu0 %6263
        %6265 = vrot.lane.b32.xlu0 %v6178, 122
        %v6266 = vpop.permute.xlu0 %6265
        %6267 = vrot.lane.b32.xlu0 %v6179, 122
        %v6268 = vpop.permute.xlu0 %6267
        %6269 = vrot.lane.b32.xlu0 %v6180, 122
        %v6270 = vpop.permute.xlu0 %6269
        %6271 = vrot.lane.b32.xlu0 %v6181, 122
        %v6272 = vpop.permute.xlu0 %6271
        %6273 = vrot.lane.b32.xlu0 %v6182, 122
        %v6274 = vpop.permute.xlu0 %6273
        %6275 = vrot.lane.b32.xlu0 %v6183, 122
        %v6276 = vpop.permute.xlu0 %6275
        %6277 = vrot.lane.b32.xlu0 %v6184, 122
        %v6278 = vpop.permute.xlu0 %6277
        %6279 = vrot.lane.b32.xlu0 %v6185, 122
        %v6280 = vpop.permute.xlu0 %6279
        %6281 = vrot.lane.b32.xlu0 %v6186, 122
        %v6282 = vpop.permute.xlu0 %6281
        %v6315 = vadd.f32 %v6027, %v6220
        %v6316 = vadd.f32 %v6028, %v6222
        %v6317 = vadd.f32 %v6029, %v6224
        %v6318 = vadd.f32 %v6030, %v6226
        %v6319 = vadd.f32 %v6031, %v6228
        %v6320 = vadd.f32 %v6032, %v6230
        %v6321 = vadd.f32 %v6033, %v6232
        %v6322 = vadd.f32 %v6034, %v6234
        %v6323 = vadd.f32 %v6035, %v6236
        %v6324 = vadd.f32 %v6036, %v6238
        %v6325 = vadd.f32 %v6037, %v6240
        %v6326 = vadd.f32 %v6038, %v6242
        %v6327 = vadd.f32 %v6039, %v6244
        %v6328 = vadd.f32 %v6040, %v6246
        %v6329 = vadd.f32 %v6041, %v6248
        %v6330 = vadd.f32 %v6042, %v6250
        %v6331 = vadd.f32 %v6043, %v6252
        %v6332 = vadd.f32 %v6044, %v6254
        %v6333 = vadd.f32 %v6045, %v6256
        %v6334 = vadd.f32 %v6046, %v6258
        %v6335 = vadd.f32 %v6047, %v6260
        %v6336 = vadd.f32 %v6048, %v6262
        %v6337 = vadd.f32 %v6049, %v6264
        %v6338 = vadd.f32 %v6050, %v6266
        %v6339 = vadd.f32 %v6051, %v6268
        %v6340 = vadd.f32 %v6052, %v6270
        %v6341 = vadd.f32 %v6053, %v6272
        %v6342 = vadd.f32 %v6054, %v6274
        %v6343 = vadd.f32 %v6055, %v6276
        %v6344 = vadd.f32 %v6056, %v6278
        %v6345 = vadd.f32 %v6057, %v6280
        %v6346 = vadd.f32 %v6058, %v6282
        %6379 = vrot.lane.b32.xlu0 %v4939, 2
        %v6380 = vpop.permute.xlu0 %6379
        %6381 = vrot.lane.b32.xlu0 %v4940, 2
        %v6382 = vpop.permute.xlu0 %6381
        %6383 = vrot.lane.b32.xlu0 %v4941, 2
        %v6384 = vpop.permute.xlu0 %6383
        %6385 = vrot.lane.b32.xlu0 %v4942, 2
        %v6386 = vpop.permute.xlu0 %6385
        %6387 = vrot.lane.b32.xlu0 %v4943, 2
        %v6388 = vpop.permute.xlu0 %6387
        %6389 = vrot.lane.b32.xlu0 %v4944, 2
        %v6390 = vpop.permute.xlu0 %6389
        %6391 = vrot.lane.b32.xlu0 %v4945, 2
        %v6392 = vpop.permute.xlu0 %6391
        %6393 = vrot.lane.b32.xlu0 %v4946, 2
        %v6394 = vpop.permute.xlu0 %6393
        %6395 = vrot.lane.b32.xlu0 %v4947, 2
        %v6396 = vpop.permute.xlu0 %6395
        %6397 = vrot.lane.b32.xlu0 %v4948, 2
        %v6398 = vpop.permute.xlu0 %6397
        %6399 = vrot.lane.b32.xlu0 %v4949, 2
        %v6400 = vpop.permute.xlu0 %6399
        %6401 = vrot.lane.b32.xlu0 %v4950, 2
        %v6402 = vpop.permute.xlu0 %6401
        %6403 = vrot.lane.b32.xlu0 %v4951, 2
        %v6404 = vpop.permute.xlu0 %6403
        %6405 = vrot.lane.b32.xlu0 %v4952, 2
        %v6406 = vpop.permute.xlu0 %6405
        %6407 = vrot.lane.b32.xlu0 %v4953, 2
        %v6408 = vpop.permute.xlu0 %6407
        %6409 = vrot.lane.b32.xlu0 %v4954, 2
        %v6410 = vpop.permute.xlu0 %6409
        %6411 = vrot.lane.b32.xlu0 %v4955, 2
        %v6412 = vpop.permute.xlu0 %6411
        %6413 = vrot.lane.b32.xlu0 %v4956, 2
        %v6414 = vpop.permute.xlu0 %6413
        %6415 = vrot.lane.b32.xlu0 %v4957, 2
        %v6416 = vpop.permute.xlu0 %6415
        %6417 = vrot.lane.b32.xlu0 %v4958, 2
        %v6418 = vpop.permute.xlu0 %6417
        %6419 = vrot.lane.b32.xlu0 %v4959, 2
        %v6420 = vpop.permute.xlu0 %6419
        %6421 = vrot.lane.b32.xlu0 %v4960, 2
        %v6422 = vpop.permute.xlu0 %6421
        %6423 = vrot.lane.b32.xlu0 %v4961, 2
        %v6424 = vpop.permute.xlu0 %6423
        %6425 = vrot.lane.b32.xlu0 %v4962, 2
        %v6426 = vpop.permute.xlu0 %6425
        %6427 = vrot.lane.b32.xlu0 %v4963, 2
        %v6428 = vpop.permute.xlu0 %6427
        %6429 = vrot.lane.b32.xlu0 %v4964, 2
        %v6430 = vpop.permute.xlu0 %6429
        %6431 = vrot.lane.b32.xlu0 %v4965, 2
        %v6432 = vpop.permute.xlu0 %6431
        %6433 = vrot.lane.b32.xlu0 %v4966, 2
        %v6434 = vpop.permute.xlu0 %6433
        %6435 = vrot.lane.b32.xlu0 %v4967, 2
        %v6436 = vpop.permute.xlu0 %6435
        %6437 = vrot.lane.b32.xlu0 %v4968, 2
        %v6438 = vpop.permute.xlu0 %6437
        %6439 = vrot.lane.b32.xlu0 %v4969, 2
        %v6440 = vpop.permute.xlu0 %6439
        %6441 = vrot.lane.b32.xlu0 %v4970, 2
        %v6442 = vpop.permute.xlu0 %6441
        %6507 = vrot.lane.b32.xlu0 %v5643, 4
        %v6508 = vpop.permute.xlu0 %6507
        %6509 = vrot.lane.b32.xlu0 %v5644, 4
        %v6510 = vpop.permute.xlu0 %6509
        %6511 = vrot.lane.b32.xlu0 %v5645, 4
        %v6512 = vpop.permute.xlu0 %6511
        %6513 = vrot.lane.b32.xlu0 %v5646, 4
        %v6514 = vpop.permute.xlu0 %6513
        %6515 = vrot.lane.b32.xlu0 %v5647, 4
        %v6516 = vpop.permute.xlu0 %6515
        %6517 = vrot.lane.b32.xlu0 %v5648, 4
        %v6518 = vpop.permute.xlu0 %6517
        %6519 = vrot.lane.b32.xlu0 %v5649, 4
        %v6520 = vpop.permute.xlu0 %6519
        %6521 = vrot.lane.b32.xlu0 %v5650, 4
        %v6522 = vpop.permute.xlu0 %6521
        %6523 = vrot.lane.b32.xlu0 %v5651, 4
        %v6524 = vpop.permute.xlu0 %6523
        %6525 = vrot.lane.b32.xlu0 %v5652, 4
        %v6526 = vpop.permute.xlu0 %6525
        %6527 = vrot.lane.b32.xlu0 %v5653, 4
        %v6528 = vpop.permute.xlu0 %6527
        %6529 = vrot.lane.b32.xlu0 %v5654, 4
        %v6530 = vpop.permute.xlu0 %6529
        %6531 = vrot.lane.b32.xlu0 %v5655, 4
        %v6532 = vpop.permute.xlu0 %6531
        %6533 = vrot.lane.b32.xlu0 %v5656, 4
        %v6534 = vpop.permute.xlu0 %6533
        %6535 = vrot.lane.b32.xlu0 %v5657, 4
        %v6536 = vpop.permute.xlu0 %6535
        %6537 = vrot.lane.b32.xlu0 %v5658, 4
        %v6538 = vpop.permute.xlu0 %6537
        %6539 = vrot.lane.b32.xlu0 %v5659, 4
        %v6540 = vpop.permute.xlu0 %6539
        %6541 = vrot.lane.b32.xlu0 %v5660, 4
        %v6542 = vpop.permute.xlu0 %6541
        %6543 = vrot.lane.b32.xlu0 %v5661, 4
        %v6544 = vpop.permute.xlu0 %6543
        %6545 = vrot.lane.b32.xlu0 %v5662, 4
        %v6546 = vpop.permute.xlu0 %6545
        %6547 = vrot.lane.b32.xlu0 %v5663, 4
        %v6548 = vpop.permute.xlu0 %6547
        %6549 = vrot.lane.b32.xlu0 %v5664, 4
        %v6550 = vpop.permute.xlu0 %6549
        %6551 = vrot.lane.b32.xlu0 %v5665, 4
        %v6552 = vpop.permute.xlu0 %6551
        %6553 = vrot.lane.b32.xlu0 %v5666, 4
        %v6554 = vpop.permute.xlu0 %6553
        %6555 = vrot.lane.b32.xlu0 %v5667, 4
        %v6556 = vpop.permute.xlu0 %6555
        %6557 = vrot.lane.b32.xlu0 %v5668, 4
        %v6558 = vpop.permute.xlu0 %6557
        %6559 = vrot.lane.b32.xlu0 %v5669, 4
        %v6560 = vpop.permute.xlu0 %6559
        %6561 = vrot.lane.b32.xlu0 %v5670, 4
        %v6562 = vpop.permute.xlu0 %6561
        %6563 = vrot.lane.b32.xlu0 %v5671, 4
        %v6564 = vpop.permute.xlu0 %6563
        %6565 = vrot.lane.b32.xlu0 %v5672, 4
        %v6566 = vpop.permute.xlu0 %6565
        %6567 = vrot.lane.b32.xlu0 %v5673, 4
        %v6568 = vpop.permute.xlu0 %6567
        %6569 = vrot.lane.b32.xlu0 %v5674, 4
        %v6570 = vpop.permute.xlu0 %6569
        %6635 = vrot.lane.b32.xlu0 %v6315, 6
        %v6636 = vpop.permute.xlu0 %6635
        %6637 = vrot.lane.b32.xlu0 %v6316, 6
        %v6638 = vpop.permute.xlu0 %6637
        %6639 = vrot.lane.b32.xlu0 %v6317, 6
        %v6640 = vpop.permute.xlu0 %6639
        %6641 = vrot.lane.b32.xlu0 %v6318, 6
        %v6642 = vpop.permute.xlu0 %6641
        %6643 = vrot.lane.b32.xlu0 %v6319, 6
        %v6644 = vpop.permute.xlu0 %6643
        %6645 = vrot.lane.b32.xlu0 %v6320, 6
        %v6646 = vpop.permute.xlu0 %6645
        %6647 = vrot.lane.b32.xlu0 %v6321, 6
        %v6648 = vpop.permute.xlu0 %6647
        %6649 = vrot.lane.b32.xlu0 %v6322, 6
        %v6650 = vpop.permute.xlu0 %6649
        %6651 = vrot.lane.b32.xlu0 %v6323, 6
        %v6652 = vpop.permute.xlu0 %6651
        %6653 = vrot.lane.b32.xlu0 %v6324, 6
        %v6654 = vpop.permute.xlu0 %6653
        %6655 = vrot.lane.b32.xlu0 %v6325, 6
        %v6656 = vpop.permute.xlu0 %6655
        %6657 = vrot.lane.b32.xlu0 %v6326, 6
        %v6658 = vpop.permute.xlu0 %6657
        %6659 = vrot.lane.b32.xlu0 %v6327, 6
        %v6660 = vpop.permute.xlu0 %6659
        %6661 = vrot.lane.b32.xlu0 %v6328, 6
        %v6662 = vpop.permute.xlu0 %6661
        %6663 = vrot.lane.b32.xlu0 %v6329, 6
        %v6664 = vpop.permute.xlu0 %6663
        %6665 = vrot.lane.b32.xlu0 %v6330, 6
        %v6666 = vpop.permute.xlu0 %6665
        %6667 = vrot.lane.b32.xlu0 %v6331, 6
        %v6668 = vpop.permute.xlu0 %6667
        %6669 = vrot.lane.b32.xlu0 %v6332, 6
        %v6670 = vpop.permute.xlu0 %6669
        %6671 = vrot.lane.b32.xlu0 %v6333, 6
        %v6672 = vpop.permute.xlu0 %6671
        %6673 = vrot.lane.b32.xlu0 %v6334, 6
        %v6674 = vpop.permute.xlu0 %6673
        %6675 = vrot.lane.b32.xlu0 %v6335, 6
        %v6676 = vpop.permute.xlu0 %6675
        %6677 = vrot.lane.b32.xlu0 %v6336, 6
        %v6678 = vpop.permute.xlu0 %6677
        %6679 = vrot.lane.b32.xlu0 %v6337, 6
        %v6680 = vpop.permute.xlu0 %6679
        %6681 = vrot.lane.b32.xlu0 %v6338, 6
        %v6682 = vpop.permute.xlu0 %6681
        %6683 = vrot.lane.b32.xlu0 %v6339, 6
        %v6684 = vpop.permute.xlu0 %6683
        %6685 = vrot.lane.b32.xlu0 %v6340, 6
        %v6686 = vpop.permute.xlu0 %6685
        %6687 = vrot.lane.b32.xlu0 %v6341, 6
        %v6688 = vpop.permute.xlu0 %6687
        %6689 = vrot.lane.b32.xlu0 %v6342, 6
        %v6690 = vpop.permute.xlu0 %6689
        %6691 = vrot.lane.b32.xlu0 %v6343, 6
        %v6692 = vpop.permute.xlu0 %6691
        %6693 = vrot.lane.b32.xlu0 %v6344, 6
        %v6694 = vpop.permute.xlu0 %6693
        %6695 = vrot.lane.b32.xlu0 %v6345, 6
        %v6696 = vpop.permute.xlu0 %6695
        %6697 = vrot.lane.b32.xlu0 %v6346, 6
        %v6698 = vpop.permute.xlu0 %6697
        %vm6731 = vcmask 15360
        %v6732 = vsel %vm6731, %v4203, %v6380
        %v6733 = vsel %vm6731, %v4204, %v6382
        %v6734 = vsel %vm6731, %v4205, %v6384
        %v6735 = vsel %vm6731, %v4206, %v6386
        %v6736 = vsel %vm6731, %v4207, %v6388
        %v6737 = vsel %vm6731, %v4208, %v6390
        %v6738 = vsel %vm6731, %v4209, %v6392
        %v6739 = vsel %vm6731, %v4210, %v6394
        %v6740 = vsel %vm6731, %v4211, %v6396
        %v6741 = vsel %vm6731, %v4212, %v6398
        %v6742 = vsel %vm6731, %v4213, %v6400
        %v6743 = vsel %vm6731, %v4214, %v6402
        %v6744 = vsel %vm6731, %v4215, %v6404
        %v6745 = vsel %vm6731, %v4216, %v6406
        %v6746 = vsel %vm6731, %v4217, %v6408
        %v6747 = vsel %vm6731, %v4218, %v6410
        %v6748 = vsel %vm6731, %v4219, %v6412
        %v6749 = vsel %vm6731, %v4220, %v6414
        %v6750 = vsel %vm6731, %v4221, %v6416
        %v6751 = vsel %vm6731, %v4222, %v6418
        %v6752 = vsel %vm6731, %v4223, %v6420
        %v6753 = vsel %vm6731, %v4224, %v6422
        %v6754 = vsel %vm6731, %v4225, %v6424
        %v6755 = vsel %vm6731, %v4226, %v6426
        %v6756 = vsel %vm6731, %v4227, %v6428
        %v6757 = vsel %vm6731, %v4228, %v6430
        %v6758 = vsel %vm6731, %v4229, %v6432
        %v6759 = vsel %vm6731, %v4230, %v6434
        %v6760 = vsel %vm6731, %v4231, %v6436
        %v6761 = vsel %vm6731, %v4232, %v6438
        %v6762 = vsel %vm6731, %v4233, %v6440
        %v6763 = vsel %vm6731, %v4234, %v6442
        %vm6764 = vcmask 31744
        %v6765 = vsel %vm6764, %v6732, %v6508
        %v6766 = vsel %vm6764, %v6733, %v6510
        %v6767 = vsel %vm6764, %v6734, %v6512
        %v6768 = vsel %vm6764, %v6735, %v6514
        %v6769 = vsel %vm6764, %v6736, %v6516
        %v6770 = vsel %vm6764, %v6737, %v6518
        %v6771 = vsel %vm6764, %v6738, %v6520
        %v6772 = vsel %vm6764, %v6739, %v6522
        %v6773 = vsel %vm6764, %v6740, %v6524
        %v6774 = vsel %vm6764, %v6741, %v6526
        %v6775 = vsel %vm6764, %v6742, %v6528
        %v6776 = vsel %vm6764, %v6743, %v6530
        %v6777 = vsel %vm6764, %v6744, %v6532
        %v6778 = vsel %vm6764, %v6745, %v6534
        %v6779 = vsel %vm6764, %v6746, %v6536
        %v6780 = vsel %vm6764, %v6747, %v6538
        %v6781 = vsel %vm6764, %v6748, %v6540
        %v6782 = vsel %vm6764, %v6749, %v6542
        %v6783 = vsel %vm6764, %v6750, %v6544
        %v6784 = vsel %vm6764, %v6751, %v6546
        %v6785 = vsel %vm6764, %v6752, %v6548
        %v6786 = vsel %vm6764, %v6753, %v6550
        %v6787 = vsel %vm6764, %v6754, %v6552
        %v6788 = vsel %vm6764, %v6755, %v6554
        %v6789 = vsel %vm6764, %v6756, %v6556
        %v6790 = vsel %vm6764, %v6757, %v6558
        %v6791 = vsel %vm6764, %v6758, %v6560
        %v6792 = vsel %vm6764, %v6759, %v6562
        %v6793 = vsel %vm6764, %v6760, %v6564
        %v6794 = vsel %vm6764, %v6761, %v6566
        %v6795 = vsel %vm6764, %v6762, %v6568
        %v6796 = vsel %vm6764, %v6763, %v6570
        %vm6797 = vcmask 48128
        %v6798 = vsel %vm6797, %v6765, %v6636
        %v6799 = vsel %vm6797, %v6766, %v6638
        %v6800 = vsel %vm6797, %v6767, %v6640
        %v6801 = vsel %vm6797, %v6768, %v6642
        %v6802 = vsel %vm6797, %v6769, %v6644
        %v6803 = vsel %vm6797, %v6770, %v6646
        %v6804 = vsel %vm6797, %v6771, %v6648
        %v6805 = vsel %vm6797, %v6772, %v6650
        %v6806 = vsel %vm6797, %v6773, %v6652
        %v6807 = vsel %vm6797, %v6774, %v6654
        %v6808 = vsel %vm6797, %v6775, %v6656
        %v6809 = vsel %vm6797, %v6776, %v6658
        %v6810 = vsel %vm6797, %v6777, %v6660
        %v6811 = vsel %vm6797, %v6778, %v6662
        %v6812 = vsel %vm6797, %v6779, %v6664
        %v6813 = vsel %vm6797, %v6780, %v6666
        %v6814 = vsel %vm6797, %v6781, %v6668
        %v6815 = vsel %vm6797, %v6782, %v6670
        %v6816 = vsel %vm6797, %v6783, %v6672
        %v6817 = vsel %vm6797, %v6784, %v6674
        %v6818 = vsel %vm6797, %v6785, %v6676
        %v6819 = vsel %vm6797, %v6786, %v6678
        %v6820 = vsel %vm6797, %v6787, %v6680
        %v6821 = vsel %vm6797, %v6788, %v6682
        %v6822 = vsel %vm6797, %v6789, %v6684
        %v6823 = vsel %vm6797, %v6790, %v6686
        %v6824 = vsel %vm6797, %v6791, %v6688
        %v6825 = vsel %vm6797, %v6792, %v6690
        %v6826 = vsel %vm6797, %v6793, %v6692
        %v6827 = vsel %vm6797, %v6794, %v6694
        %v6828 = vsel %vm6797, %v6795, %v6696
        %v6829 = vsel %vm6797, %v6796, %v6698
        %v6830 = vsel %vm359, %v6798, 0.0
        %v6831 = vsel %vm359, %v6799, 0.0
        %v6832 = vsel %vm359, %v6800, 0.0
        %v6833 = vsel %vm359, %v6801, 0.0
        %v6834 = vsel %vm359, %v6802, 0.0
        %v6835 = vsel %vm359, %v6803, 0.0
        %v6836 = vsel %vm359, %v6804, 0.0
        %v6837 = vsel %vm359, %v6805, 0.0
        %v6838 = vsel %vm359, %v6806, 0.0
        %v6839 = vsel %vm359, %v6807, 0.0
        %v6840 = vsel %vm359, %v6808, 0.0
        %v6841 = vsel %vm359, %v6809, 0.0
        %v6842 = vsel %vm359, %v6810, 0.0
        %v6843 = vsel %vm359, %v6811, 0.0
        %v6844 = vsel %vm359, %v6812, 0.0
        %v6845 = vsel %vm359, %v6813, 0.0
        %v6846 = vsel %vm359, %v6814, 0.0
        %v6847 = vsel %vm359, %v6815, 0.0
        %v6848 = vsel %vm359, %v6816, 0.0
        %v6849 = vsel %vm359, %v6817, 0.0
        %v6850 = vsel %vm359, %v6818, 0.0
        %v6851 = vsel %vm359, %v6819, 0.0
        %v6852 = vsel %vm359, %v6820, 0.0
        %v6853 = vsel %vm359, %v6821, 0.0
        %v6854 = vsel %vm359, %v6822, 0.0
        %v6855 = vsel %vm359, %v6823, 0.0
        %v6856 = vsel %vm359, %v6824, 0.0
        %v6857 = vsel %vm359, %v6825, 0.0
        %v6858 = vsel %vm359, %v6826, 0.0
        %v6859 = vsel %vm359, %v6827, 0.0
        %v6860 = vsel %vm359, %v6828, 0.0
        %v6861 = vsel %vm359, %v6829, 0.0
        %6862 = vst [vmem:[%s163] sm:$0xff] %v6830
        %6863 = vst [vmem:[%s163 + $0x8] sm:$0xff] %v6831
        %6864 = vst [vmem:[%s163 + $0x10] sm:$0xff] %v6832
        %6865 = vst [vmem:[%s163 + $0x18] sm:$0xff] %v6833
        %6866 = vst [vmem:[%s163 + $0x20] sm:$0xff] %v6834
        %6867 = vst [vmem:[%s163 + $0x28] sm:$0xff] %v6835
        %6868 = vst [vmem:[%s163 + $0x30] sm:$0xff] %v6836
        %6869 = vst [vmem:[%s163 + $0x38] sm:$0xff] %v6837
        %6870 = vst [vmem:[%s163 + $0x40] sm:$0xff] %v6838
        %6871 = vst [vmem:[%s163 + $0x48] sm:$0xff] %v6839
        %6872 = vst [vmem:[%s163 + $0x50] sm:$0xff] %v6840
        %6873 = vst [vmem:[%s163 + $0x58] sm:$0xff] %v6841
        %6874 = vst [vmem:[%s163 + $0x60] sm:$0xff] %v6842
        %6875 = vst [vmem:[%s163 + $0x68] sm:$0xff] %v6843
        %6876 = vst [vmem:[%s163 + $0x70] sm:$0xff] %v6844
        %6877 = vst [vmem:[%s163 + $0x78] sm:$0xff] %v6845
        %6878 = vst [vmem:[%s163 + $0x80] sm:$0xff] %v6846
        %6879 = vst [vmem:[%s163 + $0x88] sm:$0xff] %v6847
        %6880 = vst [vmem:[%s163 + $0x90] sm:$0xff] %v6848
        %6881 = vst [vmem:[%s163 + $0x98] sm:$0xff] %v6849
        %6882 = vst [vmem:[%s163 + $0xa0] sm:$0xff] %v6850
        %6883 = vst [vmem:[%s163 + $0xa8] sm:$0xff] %v6851
        %6884 = vst [vmem:[%s163 + $0xb0] sm:$0xff] %v6852
        %6885 = vst [vmem:[%s163 + $0xb8] sm:$0xff] %v6853
        %6886 = vst [vmem:[%s163 + $0xc0] sm:$0xff] %v6854
        %6887 = vst [vmem:[%s163 + $0xc8] sm:$0xff] %v6855
        %6888 = vst [vmem:[%s163 + $0xd0] sm:$0xff] %v6856
        %6889 = vst [vmem:[%s163 + $0xd8] sm:$0xff] %v6857
        %6890 = vst [vmem:[%s163 + $0xe0] sm:$0xff] %v6858
        %6891 = vst [vmem:[%s163 + $0xe8] sm:$0xff] %v6859
        %6892 = vst [vmem:[%s163 + $0xf0] sm:$0xff] %v6860
        %6893 = vst [vmem:[%s163 + $0xf8] sm:$0xff] %v6861
        %s6894 = sand.u32 %s93, 1
        %s6895 = scalar_lea.sflag [#allocation4], %s6894
        %s6896 = sand.u32 %s93, 1
        %s6897 = smul.addr %s6896, 256
        %s6898 = scalar_lea.vmem [#allocation3], %s6897
        // Predicated region
        $region33: #{tpu_custom_call.1} parent=31 // pred_check
          %p6899 = pneg %p103
        $region34: #{tpu_custom_call.1} parent=31 // pred_check_branch
          %6901 = sbr.rel (%p6899) target = $region36
        $region35: #{tpu_custom_call.1} parent=31 // pred_region
          %s6902 = smul.u32 32, %s17
          %s6904 = ssub.s32 4096, 4096
          %6905 = vsyncadd %s6895, %s6904
          %s6906 = smul.addr %s6902, 128
          %s6907 = scalar_lea.hbm %s3, %s6906
          %s6908 = sshll.u32 %s6898, 4
          %s6909 = int_to_ptr.vmem [resolvable:$true] %s6908
          %6914 = dma.vmem_to_hbm [thread:$0]  %s6909, 4096, %s6907, %s6895, 128, 128, 8
        $region36: #{tpu_custom_call.1} parent=31 // pred_fallthru
          _
      $region32: #{tpu_custom_call.1} parent=5 // pred_fallthru
        _
      %p6915 = scmp.le.s32.totalorder 2, %s12
      // Predicated region
      $region37: #{tpu_custom_call.1} parent=5 // pred_check
        %p6916 = pneg %p6915
      $region38: #{tpu_custom_call.1} parent=5 // pred_check_branch
        %6918 = sbr.rel (%p6916) target = $region40
      $region39: #{tpu_custom_call.1} parent=5 // pred_region
        %s6919 = ssub.s32 %s12, 2
        // Predicated region
        $region41: #{tpu_custom_call.1} parent=39 // pred_check
          %p6920 = pneg %p109
        $region42: #{tpu_custom_call.1} parent=39 // pred_check_branch
          %6922 = sbr.rel (%p6920) target = $region44
        $region43: #{tpu_custom_call.1} parent=39 // pred_region
          %s6923 = sand.u32 %s94, 1
          %s6924 = scalar_lea.sflag [#allocation4], %s6923
          %s6925 = sand.u32 %s94, 1
          %s6926 = smul.addr %s6925, 256
          %s6927 = scalar_lea.vmem [#allocation3], %s6926
          %6928 = dma.done %s6924, 4096
        $region44: #{tpu_custom_call.1} parent=39 // pred_fallthru
          _
      $region40: #{tpu_custom_call.1} parent=5 // pred_fallthru
        _
    $region6: #{tpu_custom_call.1} parent=1 // loop_footer
      %s16 = sadd.s32 1, %s12
    $region7: #{tpu_custom_call.1} parent=1 // loop_footer_branch
      %11 = sbr.rel target = $region3
    $region8: #{tpu_custom_call.1} parent=1 // loop_exit
      _
    %6929 = vsyncpa [#allocation4], 1
    %s6930 = scalar_lea.sflag [#allocation4], 1
    %6931 = vsyncpa %s6930, 1

</llo_original>
